<compile_context>
chip_gen: v7x
topology: tpu7x:2x2x1
jax: 0.10.0
libtpu: 0.0.40
codegen_flags: <defaults>
</compile_context>

<pallas_src>
import functools
import math

import jax
import jax.numpy as jnp
from jax.experimental import pallas as pl
from jax.experimental.pallas import tpu as pltpu  # noqa: F401  (TPU backend)

# ----------------------------- model config (small) -----------------------------
VOCAB_SIZE = 100
HIDDEN = 32          # stands in for 768
NUM_HEADS = 4
HEAD_DIM = HIDDEN // NUM_HEADS
INTERMEDIATE = 64    # stands in for 3072
NUM_LAYERS = 2       # stands in for 12
MAX_POS = 64         # pad_size
NUM_CLASSES = 5
LN_EPS = 1e-12
LANE = 128           # classifier output padded to a full lane width
ATTN_SCALE = 1.0 / math.sqrt(HEAD_DIM)


# ----------------------------- in-kernel helpers ---------------------------------
def _layernorm(x, g, b):
    mean = jnp.mean(x, axis=-1, keepdims=True)
    var = jnp.mean(jnp.square(x - mean), axis=-1, keepdims=True)
    return (x - mean) * jax.lax.rsqrt(var + LN_EPS) * g + b


def _gelu(x):
    # BERT gelu (tanh approximation).
    c = 0.7978845608028654  # sqrt(2/pi)
    return 0.5 * x * (1.0 + jnp.tanh(c * (x + 0.044715 * x * x * x)))


# ----------------------------- the fused kernel ----------------------------------
def _fused_bert_kernel(B, S,
                       mask_ref, emb_ref, gvec_ref, lvec_ref,
                       qkv_w_ref, o_w_ref, ff1_w_ref, ff2_w_ref, head_w_ref,
                       logits_ref):
    H, D, NH, I = HIDDEN, HEAD_DIM, NUM_HEADS, INTERMEDIATE
    f32, bf16 = jnp.float32, jnp.bfloat16

    # additive attention-mask bias, BERT convention: (1 - mask) * -10000
    bias = (1.0 - mask_ref[...].astype(f32)) * -10000.0          # [B, S]
    bias = bias[:, None, :]                                      # [B, 1, S]

    gv = gvec_ref[...]                                           # [4, 128]
    # embedding LayerNorm
    x = _layernorm(emb_ref[...], gv[0:1, :H], gv[1:2, :H])       # [B*S, H] f32

    for l in range(NUM_LAYERS):
        lv = lvec_ref[l]                                         # [8, 128] f32

        # fused QKV projection (1/sqrt(D) already folded into the Q columns)
        qkv = jnp.dot(x.astype(bf16), qkv_w_ref[l],
                      preferred_element_type=f32) + lv[0:1, :3 * H]   # [B*S, 3H]

        # self-attention: batched over B per head, context kept in registers
        heads = []
        for h in range(NH):
            q_h = qkv[:, h * D:(h + 1) * D].reshape(B, S, D)
            k_h = qkv[:, H + h * D:H + (h + 1) * D].reshape(B, S, D)
            v_h = qkv[:, 2 * H + h * D:2 * H + (h + 1) * D].reshape(B, S, D)
            s = jnp.einsum('bqd,bkd->bqk', q_h, k_h,
                           preferred_element_type=f32) + bias         # [B, S, S]
            e = jnp.exp(s - jnp.max(s, axis=-1, keepdims=True))
            p = e * pl.reciprocal(jnp.sum(e, axis=-1, keepdims=True), approx=True)
            ctx_h = jnp.einsum('bqk,bkd->bqd', p, v_h,
                               preferred_element_type=f32)            # [B, S, D]
            heads.append(ctx_h.reshape(B * S, D))
        ctx = jnp.concatenate(heads, axis=-1)                         # [B*S, H]

        attn = jnp.dot(ctx.astype(bf16), o_w_ref[l],
                       preferred_element_type=f32) + lv[1:2, :H]
        x = _layernorm(attn + x, lv[2:3, :H], lv[3:4, :H])

        # feed-forward
        hid = _gelu(jnp.dot(x.astype(bf16), ff1_w_ref[l],
                            preferred_element_type=f32) + lv[4:5, :I])
        ffn = jnp.dot(hid.astype(bf16), ff2_w_ref[l],
                      preferred_element_type=f32) + lv[5:6, :H]
        x = _layernorm(ffn + x, lv[6:7, :H], lv[7:8, :H])

    # epilogue: gather all first tokens -> one pooler matmul + tanh -> one
    # classifier matmul -> single unmasked lane-dense store.
    firsts = x.reshape(B, S, H)[:, 0, :]                              # [B, H]
    pooled = jnp.tanh(jnp.dot(firsts.astype(bf16), head_w_ref[:, LANE:],
                              preferred_element_type=f32) + gv[2:3, :H])
    logits_ref[...] = jnp.dot(pooled.astype(bf16), head_w_ref[:, :LANE],
                              preferred_element_type=f32) + gv[3:4, :]


# ----------------------------- parameter construction ----------------------------
def init_params(key):
    def nrm(k, shape, scale=0.02):
        return scale * jax.random.normal(k, shape, dtype=jnp.float32)

    L, H, I = NUM_LAYERS, HIDDEN, INTERMEDIATE
    keys = iter(jax.random.split(key, 12))

    word_emb = nrm(next(keys), (VOCAB_SIZE, H))
    pos_emb = nrm(next(keys), (MAX_POS, H))
    type_emb = nrm(next(keys), (2, H))

    # Q/K/V concatenated; attention scale folded into the Q columns + Q bias.
    qkv_w = nrm(next(keys), (L, H, 3 * H))
    qkv_w = qkv_w.at[:, :, :H].multiply(ATTN_SCALE)
    qkv_b = jnp.zeros((L, 3 * H), jnp.float32)
    qkv_b = qkv_b.at[:, :H].multiply(ATTN_SCALE)

    o_w = nrm(next(keys), (L, H, H))
    ff1_w = nrm(next(keys), (L, H, I))
    ff2_w = nrm(next(keys), (L, I, H))
    pool_w = nrm(next(keys), (H, H))
    fc_w = nrm(next(keys), (H, NUM_CLASSES))
    fc_b = jnp.zeros((NUM_CLASSES,), jnp.float32)

    # per-layer vectors packed into one [L, 8, 128] array:
    # rows: qkv_b, o_b, ln1_g, ln1_b, ff1_b, ff2_b, ln2_g, ln2_b
    lvecs = jnp.zeros((L, 8, LANE), jnp.float32)
    lvecs = lvecs.at[:, 0, :3 * H].set(qkv_b)
    lvecs = lvecs.at[:, 2, :H].set(1.0)   # ln1 gamma
    lvecs = lvecs.at[:, 6, :H].set(1.0)   # ln2 gamma
    # (o_b, ff1_b, ff2_b, ln betas stay zero)

    # global vectors packed into one [4, 128] array:
    # rows: emb_ln_g, emb_ln_b, pool_b, fc_b (lane-padded)
    gvecs = jnp.zeros((4, LANE), jnp.float32)
    gvecs = gvecs.at[0, :H].set(1.0)                      # emb LN gamma
    gvecs = gvecs.at[3, :NUM_CLASSES].set(fc_b)

    # classifier weight lane-padded to 128 cols; packed with the pooler weight
    # into one [H, 128 + H] array (both slices lane-aligned in the kernel).
    fc_w_pad = jnp.zeros((H, LANE), jnp.float32).at[:, :NUM_CLASSES].set(fc_w)
    head_w = jnp.concatenate([fc_w_pad, pool_w], axis=1)  # [H, 160]

    bf16 = jnp.bfloat16
    return {
        "word_emb": word_emb, "pos_emb": pos_emb, "type_emb": type_emb,
        "gvecs": gvecs, "lvecs": lvecs,
        "qkv_w": qkv_w.astype(bf16),
        "o_w": o_w.astype(bf16),
        "ff1_w": ff1_w.astype(bf16),
        "ff2_w": ff2_w.astype(bf16),
        "head_w": head_w.astype(bf16),
    }


# ----------------------------- forward pass ---------------------------------------
def bert_classifier_forward(params, context, mask):
    """context: [B, S] int32 token ids; mask: [B, S] (1 = real token, 0 = pad)."""
    B, S = context.shape

    # embedding gather + adds are XLA glue; everything else is ONE fused Pallas call
    word = jnp.take(params["word_emb"], context, axis=0)          # [B, S, H]
    pos = params["pos_emb"][:S][None, :, :]                       # [1, S, H]
    typ = params["type_emb"][0][None, None, :]                    # token_type_id = 0
    emb = (word + pos + typ).reshape(B * S, HIDDEN)

    kernel = functools.partial(_fused_bert_kernel, B, S)
    logits_padded = pl.pallas_call(
        kernel,
        out_shape=jax.ShapeDtypeStruct((B, LANE), jnp.float32),
    )(mask, emb, params["gvecs"], params["lvecs"],
      params["qkv_w"], params["o_w"], params["ff1_w"], params["ff2_w"],
      params["head_w"])

    return logits_padded[:, :NUM_CLASSES]


# ----------------------------- main ------------------------------------------------
if __name__ == "__main__":
    key = jax.random.PRNGKey(0)
    k_params, k_tok = jax.random.split(key)

    B, S = 2, 8
    params = init_params(k_params)

    context = jax.random.randint(k_tok, (B, S), 0, VOCAB_SIZE, dtype=jnp.int32)
    # mask: second example has 2 padding positions at the end
    mask = jnp.array([[1, 1, 1, 1, 1, 1, 1, 1],
                      [1, 1, 1, 1, 1, 1, 0, 0]], dtype=jnp.int32)

    logits = jax.jit(bert_classifier_forward)(params, context, mask)
    jax.block_until_ready(logits)
    assert logits.shape == (B, NUM_CLASSES)
    assert bool(jnp.all(jnp.isfinite(logits)))
    print("KERNEL_OK")
</pallas_src>

<mosaic_0001>
module attributes {stable_mosaic.version = 11 : i64} {
  func.func @_fused_bert_kernel(%arg0: memref<2x8xi32, #tpu.memory_space<vmem>>, %arg1: memref<16x32xf32, #tpu.memory_space<vmem>>, %arg2: memref<4x128xf32, #tpu.memory_space<vmem>>, %arg3: memref<2x8x128xf32, #tpu.memory_space<vmem>>, %arg4: memref<2x32x96xbf16, #tpu.memory_space<vmem>>, %arg5: memref<2x32x32xbf16, #tpu.memory_space<vmem>>, %arg6: memref<2x32x64xbf16, #tpu.memory_space<vmem>>, %arg7: memref<2x64x32xbf16, #tpu.memory_space<vmem>>, %arg8: memref<32x160xbf16, #tpu.memory_space<vmem>>, %arg9: memref<2x128xf32, #tpu.memory_space<vmem>>) attributes {dimension_semantics = [], scalar_prefetch = 0 : i64, scratch_operands = 0 : i64, tpu.core_type = #tpu.core_type<tc>} {
    %c0 = arith.constant 0 : index
    %c0_0 = arith.constant 0 : index
    %0 = vector.load %arg0[%c0, %c0_0] : memref<2x8xi32, #tpu.memory_space<vmem>>, vector<2x8xi32>
    %1 = arith.sitofp %0 : vector<2x8xi32> to vector<2x8xf32>
    %cst = arith.constant 1.000000e+00 : f32
    %2 = vector.broadcast %cst : f32 to vector<2x8xf32>
    %3 = arith.subf %2, %1 : vector<2x8xf32>
    %cst_1 = arith.constant -1.000000e+04 : f32
    %4 = vector.broadcast %cst_1 : f32 to vector<2x8xf32>
    %5 = arith.mulf %3, %4 : vector<2x8xf32>
    %6 = vector.shape_cast %5 : vector<2x8xf32> to vector<2x1x8xf32>
    %c0_2 = arith.constant 0 : index
    %c0_3 = arith.constant 0 : index
    %7 = vector.load %arg2[%c0_2, %c0_3] : memref<4x128xf32, #tpu.memory_space<vmem>>, vector<4x128xf32>
    %c0_4 = arith.constant 0 : index
    %c0_5 = arith.constant 0 : index
    %8 = vector.load %arg1[%c0_4, %c0_5] : memref<16x32xf32, #tpu.memory_space<vmem>>, vector<16x32xf32>
    %9 = vector.extract_strided_slice %7 {offsets = [0, 0], sizes = [1, 32], strides = [1, 1]} : vector<4x128xf32> to vector<1x32xf32>
    %10 = vector.extract_strided_slice %7 {offsets = [1, 0], sizes = [1, 32], strides = [1, 1]} : vector<4x128xf32> to vector<1x32xf32>
    %cst_6 = arith.constant dense<0.000000e+00> : vector<16xf32>
    %11 = vector.multi_reduction <add>, %8, %cst_6 [1] : vector<16x32xf32> to vector<16xf32>
    %12 = vector.shape_cast %11 : vector<16xf32> to vector<16x1xf32>
    %cst_7 = arith.constant 3.200000e+01 : f32
    %13 = vector.broadcast %cst_7 : f32 to vector<16x1xf32>
    %14 = arith.divf %12, %13 : vector<16x1xf32>
    %15 = vector.broadcast %14 : vector<16x1xf32> to vector<16x32xf32>
    %16 = arith.subf %8, %15 : vector<16x32xf32>
    %17 = arith.mulf %16, %16 : vector<16x32xf32>
    %cst_8 = arith.constant dense<0.000000e+00> : vector<16xf32>
    %18 = vector.multi_reduction <add>, %17, %cst_8 [1] : vector<16x32xf32> to vector<16xf32>
    %19 = vector.shape_cast %18 : vector<16xf32> to vector<16x1xf32>
    %cst_9 = arith.constant 3.200000e+01 : f32
    %20 = vector.broadcast %cst_9 : f32 to vector<16x1xf32>
    %21 = arith.divf %19, %20 : vector<16x1xf32>
    %22 = vector.broadcast %14 : vector<16x1xf32> to vector<16x32xf32>
    %23 = arith.subf %8, %22 : vector<16x32xf32>
    %cst_10 = arith.constant 9.99999996E-13 : f32
    %24 = vector.broadcast %cst_10 : f32 to vector<16x1xf32>
    %25 = arith.addf %21, %24 : vector<16x1xf32>
    %26 = math.rsqrt %25 : vector<16x1xf32>
    %27 = vector.broadcast %26 : vector<16x1xf32> to vector<16x32xf32>
    %28 = arith.mulf %23, %27 : vector<16x32xf32>
    %29 = vector.broadcast %9 : vector<1x32xf32> to vector<16x32xf32>
    %30 = arith.mulf %28, %29 : vector<16x32xf32>
    %31 = vector.broadcast %10 : vector<1x32xf32> to vector<16x32xf32>
    %32 = arith.addf %30, %31 : vector<16x32xf32>
    %c0_11 = arith.constant 0 : index
    %c0_12 = arith.constant 0 : index
    %c0_13 = arith.constant 0 : index
    %33 = vector.load %arg3[%c0_11, %c0_12, %c0_13] : memref<2x8x128xf32, #tpu.memory_space<vmem>>, vector<1x8x128xf32>
    %34 = vector.shape_cast %33 : vector<1x8x128xf32> to vector<8x128xf32>
    %35 = arith.truncf %32 : vector<16x32xf32> to vector<16x32xbf16>
    %c0_14 = arith.constant 0 : index
    %c0_15 = arith.constant 0 : index
    %c0_16 = arith.constant 0 : index
    %36 = vector.load %arg4[%c0_14, %c0_15, %c0_16] : memref<2x32x96xbf16, #tpu.memory_space<vmem>>, vector<1x32x96xbf16>
    %37 = vector.shape_cast %36 : vector<1x32x96xbf16> to vector<32x96xbf16>
    %cst_17 = arith.constant dense<0.000000e+00> : vector<16x96xf32>
    %38 = tpu.matmul %35, %37, %cst_17 {dimension_numbers = #tpu.dot_dimension_numbers<[1], [0], [0], [1], [0, 0, 1, 1], [], []>} : vector<16x32xbf16>, vector<32x96xbf16>, vector<16x96xf32> -> vector<16x96xf32>
    %39 = vector.extract_strided_slice %34 {offsets = [0, 0], sizes = [1, 96], strides = [1, 1]} : vector<8x128xf32> to vector<1x96xf32>
    %40 = vector.broadcast %39 : vector<1x96xf32> to vector<16x96xf32>
    %41 = arith.addf %38, %40 : vector<16x96xf32>
    %42 = vector.extract_strided_slice %41 {offsets = [0, 0], sizes = [16, 8], strides = [1, 1]} : vector<16x96xf32> to vector<16x8xf32>
    %43 = vector.shape_cast %42 : vector<16x8xf32> to vector<2x8x8xf32>
    %44 = vector.extract_strided_slice %41 {offsets = [0, 32], sizes = [16, 8], strides = [1, 1]} : vector<16x96xf32> to vector<16x8xf32>
    %45 = vector.shape_cast %44 : vector<16x8xf32> to vector<2x8x8xf32>
    %46 = vector.extract_strided_slice %41 {offsets = [0, 64], sizes = [16, 8], strides = [1, 1]} : vector<16x96xf32> to vector<16x8xf32>
    %47 = vector.shape_cast %46 : vector<16x8xf32> to vector<2x8x8xf32>
    "tpu.trace_start"() <{level = 10 : i32, message = "bqd,bkd->bqk"}> : () -> ()
    %cst_18 = arith.constant dense<0.000000e+00> : vector<2x8x8xf32>
    %48 = tpu.matmul %43, %45, %cst_18 {dimension_numbers = #tpu.dot_dimension_numbers<[2], [2], [1], [1], [0, 0, 0, 1, 1, 1], [0], [0]>} : vector<2x8x8xf32>, vector<2x8x8xf32>, vector<2x8x8xf32> -> vector<2x8x8xf32>
    "tpu.trace_stop"() : () -> ()
    %49 = vector.broadcast %6 : vector<2x1x8xf32> to vector<2x8x8xf32>
    %50 = arith.addf %48, %49 : vector<2x8x8xf32>
    %cst_19 = arith.constant dense<0xFF800000> : vector<2x8xf32>
    %51 = vector.multi_reduction <maximumf>, %50, %cst_19 [2] : vector<2x8x8xf32> to vector<2x8xf32>
    %52 = vector.shape_cast %51 : vector<2x8xf32> to vector<2x8x1xf32>
    %53 = vector.broadcast %52 : vector<2x8x1xf32> to vector<2x8x8xf32>
    %54 = arith.subf %50, %53 : vector<2x8x8xf32>
    %55 = math.exp %54 : vector<2x8x8xf32>
    %cst_20 = arith.constant dense<0.000000e+00> : vector<2x8xf32>
    %56 = vector.multi_reduction <add>, %55, %cst_20 [2] : vector<2x8x8xf32> to vector<2x8xf32>
    %57 = vector.shape_cast %56 : vector<2x8xf32> to vector<2x8x1xf32>
    %58 = tpu.reciprocal %57 {approx = true} : vector<2x8x1xf32> -> vector<2x8x1xf32>
    %59 = vector.broadcast %58 : vector<2x8x1xf32> to vector<2x8x8xf32>
    %60 = arith.mulf %55, %59 : vector<2x8x8xf32>
    "tpu.trace_start"() <{level = 10 : i32, message = "bqk,bkd->bqd"}> : () -> ()
    %cst_21 = arith.constant dense<0.000000e+00> : vector<2x8x8xf32>
    %61 = tpu.matmul %60, %47, %cst_21 {dimension_numbers = #tpu.dot_dimension_numbers<[2], [1], [1], [2], [0, 0, 0, 1, 1, 2], [0], [0]>} : vector<2x8x8xf32>, vector<2x8x8xf32>, vector<2x8x8xf32> -> vector<2x8x8xf32>
    "tpu.trace_stop"() : () -> ()
    %62 = vector.shape_cast %61 : vector<2x8x8xf32> to vector<16x8xf32>
    %63 = vector.extract_strided_slice %41 {offsets = [0, 8], sizes = [16, 8], strides = [1, 1]} : vector<16x96xf32> to vector<16x8xf32>
    %64 = vector.shape_cast %63 : vector<16x8xf32> to vector<2x8x8xf32>
    %65 = vector.extract_strided_slice %41 {offsets = [0, 40], sizes = [16, 8], strides = [1, 1]} : vector<16x96xf32> to vector<16x8xf32>
    %66 = vector.shape_cast %65 : vector<16x8xf32> to vector<2x8x8xf32>
    %67 = vector.extract_strided_slice %41 {offsets = [0, 72], sizes = [16, 8], strides = [1, 1]} : vector<16x96xf32> to vector<16x8xf32>
    %68 = vector.shape_cast %67 : vector<16x8xf32> to vector<2x8x8xf32>
    "tpu.trace_start"() <{level = 10 : i32, message = "bqd,bkd->bqk"}> : () -> ()
    %cst_22 = arith.constant dense<0.000000e+00> : vector<2x8x8xf32>
    %69 = tpu.matmul %64, %66, %cst_22 {dimension_numbers = #tpu.dot_dimension_numbers<[2], [2], [1], [1], [0, 0, 0, 1, 1, 1], [0], [0]>} : vector<2x8x8xf32>, vector<2x8x8xf32>, vector<2x8x8xf32> -> vector<2x8x8xf32>
    "tpu.trace_stop"() : () -> ()
    %70 = vector.broadcast %6 : vector<2x1x8xf32> to vector<2x8x8xf32>
    %71 = arith.addf %69, %70 : vector<2x8x8xf32>
    %cst_23 = arith.constant dense<0xFF800000> : vector<2x8xf32>
    %72 = vector.multi_reduction <maximumf>, %71, %cst_23 [2] : vector<2x8x8xf32> to vector<2x8xf32>
    %73 = vector.shape_cast %72 : vector<2x8xf32> to vector<2x8x1xf32>
    %74 = vector.broadcast %73 : vector<2x8x1xf32> to vector<2x8x8xf32>
    %75 = arith.subf %71, %74 : vector<2x8x8xf32>
    %76 = math.exp %75 : vector<2x8x8xf32>
    %cst_24 = arith.constant dense<0.000000e+00> : vector<2x8xf32>
    %77 = vector.multi_reduction <add>, %76, %cst_24 [2] : vector<2x8x8xf32> to vector<2x8xf32>
    %78 = vector.shape_cast %77 : vector<2x8xf32> to vector<2x8x1xf32>
    %79 = tpu.reciprocal %78 {approx = true} : vector<2x8x1xf32> -> vector<2x8x1xf32>
    %80 = vector.broadcast %79 : vector<2x8x1xf32> to vector<2x8x8xf32>
    %81 = arith.mulf %76, %80 : vector<2x8x8xf32>
    "tpu.trace_start"() <{level = 10 : i32, message = "bqk,bkd->bqd"}> : () -> ()
    %cst_25 = arith.constant dense<0.000000e+00> : vector<2x8x8xf32>
    %82 = tpu.matmul %81, %68, %cst_25 {dimension_numbers = #tpu.dot_dimension_numbers<[2], [1], [1], [2], [0, 0, 0, 1, 1, 2], [0], [0]>} : vector<2x8x8xf32>, vector<2x8x8xf32>, vector<2x8x8xf32> -> vector<2x8x8xf32>
    "tpu.trace_stop"() : () -> ()
    %83 = vector.shape_cast %82 : vector<2x8x8xf32> to vector<16x8xf32>
    %84 = vector.extract_strided_slice %41 {offsets = [0, 16], sizes = [16, 8], strides = [1, 1]} : vector<16x96xf32> to vector<16x8xf32>
    %85 = vector.shape_cast %84 : vector<16x8xf32> to vector<2x8x8xf32>
    %86 = vector.extract_strided_slice %41 {offsets = [0, 48], sizes = [16, 8], strides = [1, 1]} : vector<16x96xf32> to vector<16x8xf32>
    %87 = vector.shape_cast %86 : vector<16x8xf32> to vector<2x8x8xf32>
    %88 = vector.extract_strided_slice %41 {offsets = [0, 80], sizes = [16, 8], strides = [1, 1]} : vector<16x96xf32> to vector<16x8xf32>
    %89 = vector.shape_cast %88 : vector<16x8xf32> to vector<2x8x8xf32>
    "tpu.trace_start"() <{level = 10 : i32, message = "bqd,bkd->bqk"}> : () -> ()
    %cst_26 = arith.constant dense<0.000000e+00> : vector<2x8x8xf32>
    %90 = tpu.matmul %85, %87, %cst_26 {dimension_numbers = #tpu.dot_dimension_numbers<[2], [2], [1], [1], [0, 0, 0, 1, 1, 1], [0], [0]>} : vector<2x8x8xf32>, vector<2x8x8xf32>, vector<2x8x8xf32> -> vector<2x8x8xf32>
    "tpu.trace_stop"() : () -> ()
    %91 = vector.broadcast %6 : vector<2x1x8xf32> to vector<2x8x8xf32>
    %92 = arith.addf %90, %91 : vector<2x8x8xf32>
    %cst_27 = arith.constant dense<0xFF800000> : vector<2x8xf32>
    %93 = vector.multi_reduction <maximumf>, %92, %cst_27 [2] : vector<2x8x8xf32> to vector<2x8xf32>
    %94 = vector.shape_cast %93 : vector<2x8xf32> to vector<2x8x1xf32>
    %95 = vector.broadcast %94 : vector<2x8x1xf32> to vector<2x8x8xf32>
    %96 = arith.subf %92, %95 : vector<2x8x8xf32>
    %97 = math.exp %96 : vector<2x8x8xf32>
    %cst_28 = arith.constant dense<0.000000e+00> : vector<2x8xf32>
    %98 = vector.multi_reduction <add>, %97, %cst_28 [2] : vector<2x8x8xf32> to vector<2x8xf32>
    %99 = vector.shape_cast %98 : vector<2x8xf32> to vector<2x8x1xf32>
    %100 = tpu.reciprocal %99 {approx = true} : vector<2x8x1xf32> -> vector<2x8x1xf32>
    %101 = vector.broadcast %100 : vector<2x8x1xf32> to vector<2x8x8xf32>
    %102 = arith.mulf %97, %101 : vector<2x8x8xf32>
    "tpu.trace_start"() <{level = 10 : i32, message = "bqk,bkd->bqd"}> : () -> ()
    %cst_29 = arith.constant dense<0.000000e+00> : vector<2x8x8xf32>
    %103 = tpu.matmul %102, %89, %cst_29 {dimension_numbers = #tpu.dot_dimension_numbers<[2], [1], [1], [2], [0, 0, 0, 1, 1, 2], [0], [0]>} : vector<2x8x8xf32>, vector<2x8x8xf32>, vector<2x8x8xf32> -> vector<2x8x8xf32>
    "tpu.trace_stop"() : () -> ()
    %104 = vector.shape_cast %103 : vector<2x8x8xf32> to vector<16x8xf32>
    %105 = vector.extract_strided_slice %41 {offsets = [0, 24], sizes = [16, 8], strides = [1, 1]} : vector<16x96xf32> to vector<16x8xf32>
    %106 = vector.shape_cast %105 : vector<16x8xf32> to vector<2x8x8xf32>
    %107 = vector.extract_strided_slice %41 {offsets = [0, 56], sizes = [16, 8], strides = [1, 1]} : vector<16x96xf32> to vector<16x8xf32>
    %108 = vector.shape_cast %107 : vector<16x8xf32> to vector<2x8x8xf32>
    %109 = vector.extract_strided_slice %41 {offsets = [0, 88], sizes = [16, 8], strides = [1, 1]} : vector<16x96xf32> to vector<16x8xf32>
    %110 = vector.shape_cast %109 : vector<16x8xf32> to vector<2x8x8xf32>
    "tpu.trace_start"() <{level = 10 : i32, message = "bqd,bkd->bqk"}> : () -> ()
    %cst_30 = arith.constant dense<0.000000e+00> : vector<2x8x8xf32>
    %111 = tpu.matmul %106, %108, %cst_30 {dimension_numbers = #tpu.dot_dimension_numbers<[2], [2], [1], [1], [0, 0, 0, 1, 1, 1], [0], [0]>} : vector<2x8x8xf32>, vector<2x8x8xf32>, vector<2x8x8xf32> -> vector<2x8x8xf32>
    "tpu.trace_stop"() : () -> ()
    %112 = vector.broadcast %6 : vector<2x1x8xf32> to vector<2x8x8xf32>
    %113 = arith.addf %111, %112 : vector<2x8x8xf32>
    %cst_31 = arith.constant dense<0xFF800000> : vector<2x8xf32>
    %114 = vector.multi_reduction <maximumf>, %113, %cst_31 [2] : vector<2x8x8xf32> to vector<2x8xf32>
    %115 = vector.shape_cast %114 : vector<2x8xf32> to vector<2x8x1xf32>
    %116 = vector.broadcast %115 : vector<2x8x1xf32> to vector<2x8x8xf32>
    %117 = arith.subf %113, %116 : vector<2x8x8xf32>
    %118 = math.exp %117 : vector<2x8x8xf32>
    %cst_32 = arith.constant dense<0.000000e+00> : vector<2x8xf32>
    %119 = vector.multi_reduction <add>, %118, %cst_32 [2] : vector<2x8x8xf32> to vector<2x8xf32>
    %120 = vector.shape_cast %119 : vector<2x8xf32> to vector<2x8x1xf32>
    %121 = tpu.reciprocal %120 {approx = true} : vector<2x8x1xf32> -> vector<2x8x1xf32>
    %122 = vector.broadcast %121 : vector<2x8x1xf32> to vector<2x8x8xf32>
    %123 = arith.mulf %118, %122 : vector<2x8x8xf32>
    "tpu.trace_start"() <{level = 10 : i32, message = "bqk,bkd->bqd"}> : () -> ()
    %cst_33 = arith.constant dense<0.000000e+00> : vector<2x8x8xf32>
    %124 = tpu.matmul %123, %110, %cst_33 {dimension_numbers = #tpu.dot_dimension_numbers<[2], [1], [1], [2], [0, 0, 0, 1, 1, 2], [0], [0]>} : vector<2x8x8xf32>, vector<2x8x8xf32>, vector<2x8x8xf32> -> vector<2x8x8xf32>
    "tpu.trace_stop"() : () -> ()
    %125 = vector.shape_cast %124 : vector<2x8x8xf32> to vector<16x8xf32>
    %126 = tpu.concatenate %62, %83, %104, %125 in 1 : vector<16x8xf32>, vector<16x8xf32>, vector<16x8xf32>, vector<16x8xf32> -> vector<16x32xf32>
    %127 = arith.truncf %126 : vector<16x32xf32> to vector<16x32xbf16>
    %c0_34 = arith.constant 0 : index
    %c0_35 = arith.constant 0 : index
    %c0_36 = arith.constant 0 : index
    %128 = vector.load %arg5[%c0_34, %c0_35, %c0_36] : memref<2x32x32xbf16, #tpu.memory_space<vmem>>, vector<1x32x32xbf16>
    %129 = vector.shape_cast %128 : vector<1x32x32xbf16> to vector<32x32xbf16>
    %cst_37 = arith.constant dense<0.000000e+00> : vector<16x32xf32>
    %130 = tpu.matmul %127, %129, %cst_37 {dimension_numbers = #tpu.dot_dimension_numbers<[1], [0], [0], [1], [0, 0, 1, 1], [], []>} : vector<16x32xbf16>, vector<32x32xbf16>, vector<16x32xf32> -> vector<16x32xf32>
    %131 = vector.extract_strided_slice %34 {offsets = [1, 0], sizes = [1, 32], strides = [1, 1]} : vector<8x128xf32> to vector<1x32xf32>
    %132 = vector.broadcast %131 : vector<1x32xf32> to vector<16x32xf32>
    %133 = arith.addf %130, %132 : vector<16x32xf32>
    %134 = arith.addf %133, %32 : vector<16x32xf32>
    %135 = vector.extract_strided_slice %34 {offsets = [2, 0], sizes = [1, 32], strides = [1, 1]} : vector<8x128xf32> to vector<1x32xf32>
    %136 = vector.extract_strided_slice %34 {offsets = [3, 0], sizes = [1, 32], strides = [1, 1]} : vector<8x128xf32> to vector<1x32xf32>
    %cst_38 = arith.constant dense<0.000000e+00> : vector<16xf32>
    %137 = vector.multi_reduction <add>, %134, %cst_38 [1] : vector<16x32xf32> to vector<16xf32>
    %138 = vector.shape_cast %137 : vector<16xf32> to vector<16x1xf32>
    %cst_39 = arith.constant 3.200000e+01 : f32
    %139 = vector.broadcast %cst_39 : f32 to vector<16x1xf32>
    %140 = arith.divf %138, %139 : vector<16x1xf32>
    %141 = vector.broadcast %140 : vector<16x1xf32> to vector<16x32xf32>
    %142 = arith.subf %134, %141 : vector<16x32xf32>
    %143 = arith.mulf %142, %142 : vector<16x32xf32>
    %cst_40 = arith.constant dense<0.000000e+00> : vector<16xf32>
    %144 = vector.multi_reduction <add>, %143, %cst_40 [1] : vector<16x32xf32> to vector<16xf32>
    %145 = vector.shape_cast %144 : vector<16xf32> to vector<16x1xf32>
    %cst_41 = arith.constant 3.200000e+01 : f32
    %146 = vector.broadcast %cst_41 : f32 to vector<16x1xf32>
    %147 = arith.divf %145, %146 : vector<16x1xf32>
    %148 = vector.broadcast %140 : vector<16x1xf32> to vector<16x32xf32>
    %149 = arith.subf %134, %148 : vector<16x32xf32>
    %cst_42 = arith.constant 9.99999996E-13 : f32
    %150 = vector.broadcast %cst_42 : f32 to vector<16x1xf32>
    %151 = arith.addf %147, %150 : vector<16x1xf32>
    %152 = math.rsqrt %151 : vector<16x1xf32>
    %153 = vector.broadcast %152 : vector<16x1xf32> to vector<16x32xf32>
    %154 = arith.mulf %149, %153 : vector<16x32xf32>
    %155 = vector.broadcast %135 : vector<1x32xf32> to vector<16x32xf32>
    %156 = arith.mulf %154, %155 : vector<16x32xf32>
    %157 = vector.broadcast %136 : vector<1x32xf32> to vector<16x32xf32>
    %158 = arith.addf %156, %157 : vector<16x32xf32>
    %159 = arith.truncf %158 : vector<16x32xf32> to vector<16x32xbf16>
    %c0_43 = arith.constant 0 : index
    %c0_44 = arith.constant 0 : index
    %c0_45 = arith.constant 0 : index
    %160 = vector.load %arg6[%c0_43, %c0_44, %c0_45] : memref<2x32x64xbf16, #tpu.memory_space<vmem>>, vector<1x32x64xbf16>
    %161 = vector.shape_cast %160 : vector<1x32x64xbf16> to vector<32x64xbf16>
    %cst_46 = arith.constant dense<0.000000e+00> : vector<16x64xf32>
    %162 = tpu.matmul %159, %161, %cst_46 {dimension_numbers = #tpu.dot_dimension_numbers<[1], [0], [0], [1], [0, 0, 1, 1], [], []>} : vector<16x32xbf16>, vector<32x64xbf16>, vector<16x64xf32> -> vector<16x64xf32>
    %163 = vector.extract_strided_slice %34 {offsets = [4, 0], sizes = [1, 64], strides = [1, 1]} : vector<8x128xf32> to vector<1x64xf32>
    %164 = vector.broadcast %163 : vector<1x64xf32> to vector<16x64xf32>
    %165 = arith.addf %162, %164 : vector<16x64xf32>
    %cst_47 = arith.constant 5.000000e-01 : f32
    %166 = vector.broadcast %cst_47 : f32 to vector<16x64xf32>
    %167 = arith.mulf %166, %165 : vector<16x64xf32>
    %cst_48 = arith.constant 4.471500e-02 : f32
    %168 = vector.broadcast %cst_48 : f32 to vector<16x64xf32>
    %169 = arith.mulf %168, %165 : vector<16x64xf32>
    %170 = arith.mulf %169, %165 : vector<16x64xf32>
    %171 = arith.mulf %170, %165 : vector<16x64xf32>
    %172 = arith.addf %165, %171 : vector<16x64xf32>
    %cst_49 = arith.constant 0.797884583 : f32
    %173 = vector.broadcast %cst_49 : f32 to vector<16x64xf32>
    %174 = arith.mulf %173, %172 : vector<16x64xf32>
    %175 = math.tanh %174 : vector<16x64xf32>
    %cst_50 = arith.constant 1.000000e+00 : f32
    %176 = vector.broadcast %cst_50 : f32 to vector<16x64xf32>
    %177 = arith.addf %176, %175 : vector<16x64xf32>
    %178 = arith.mulf %167, %177 : vector<16x64xf32>
    %179 = arith.truncf %178 : vector<16x64xf32> to vector<16x64xbf16>
    %c0_51 = arith.constant 0 : index
    %c0_52 = arith.constant 0 : index
    %c0_53 = arith.constant 0 : index
    %180 = vector.load %arg7[%c0_51, %c0_52, %c0_53] : memref<2x64x32xbf16, #tpu.memory_space<vmem>>, vector<1x64x32xbf16>
    %181 = vector.shape_cast %180 : vector<1x64x32xbf16> to vector<64x32xbf16>
    %cst_54 = arith.constant dense<0.000000e+00> : vector<16x32xf32>
    %182 = tpu.matmul %179, %181, %cst_54 {dimension_numbers = #tpu.dot_dimension_numbers<[1], [0], [0], [1], [0, 0, 1, 1], [], []>} : vector<16x64xbf16>, vector<64x32xbf16>, vector<16x32xf32> -> vector<16x32xf32>
    %183 = vector.extract_strided_slice %34 {offsets = [5, 0], sizes = [1, 32], strides = [1, 1]} : vector<8x128xf32> to vector<1x32xf32>
    %184 = vector.broadcast %183 : vector<1x32xf32> to vector<16x32xf32>
    %185 = arith.addf %182, %184 : vector<16x32xf32>
    %186 = arith.addf %185, %158 : vector<16x32xf32>
    %187 = vector.extract_strided_slice %34 {offsets = [6, 0], sizes = [1, 32], strides = [1, 1]} : vector<8x128xf32> to vector<1x32xf32>
    %188 = vector.extract_strided_slice %34 {offsets = [7, 0], sizes = [1, 32], strides = [1, 1]} : vector<8x128xf32> to vector<1x32xf32>
    %cst_55 = arith.constant dense<0.000000e+00> : vector<16xf32>
    %189 = vector.multi_reduction <add>, %186, %cst_55 [1] : vector<16x32xf32> to vector<16xf32>
    %190 = vector.shape_cast %189 : vector<16xf32> to vector<16x1xf32>
    %cst_56 = arith.constant 3.200000e+01 : f32
    %191 = vector.broadcast %cst_56 : f32 to vector<16x1xf32>
    %192 = arith.divf %190, %191 : vector<16x1xf32>
    %193 = vector.broadcast %192 : vector<16x1xf32> to vector<16x32xf32>
    %194 = arith.subf %186, %193 : vector<16x32xf32>
    %195 = arith.mulf %194, %194 : vector<16x32xf32>
    %cst_57 = arith.constant dense<0.000000e+00> : vector<16xf32>
    %196 = vector.multi_reduction <add>, %195, %cst_57 [1] : vector<16x32xf32> to vector<16xf32>
    %197 = vector.shape_cast %196 : vector<16xf32> to vector<16x1xf32>
    %cst_58 = arith.constant 3.200000e+01 : f32
    %198 = vector.broadcast %cst_58 : f32 to vector<16x1xf32>
    %199 = arith.divf %197, %198 : vector<16x1xf32>
    %200 = vector.broadcast %192 : vector<16x1xf32> to vector<16x32xf32>
    %201 = arith.subf %186, %200 : vector<16x32xf32>
    %cst_59 = arith.constant 9.99999996E-13 : f32
    %202 = vector.broadcast %cst_59 : f32 to vector<16x1xf32>
    %203 = arith.addf %199, %202 : vector<16x1xf32>
    %204 = math.rsqrt %203 : vector<16x1xf32>
    %205 = vector.broadcast %204 : vector<16x1xf32> to vector<16x32xf32>
    %206 = arith.mulf %201, %205 : vector<16x32xf32>
    %207 = vector.broadcast %187 : vector<1x32xf32> to vector<16x32xf32>
    %208 = arith.mulf %206, %207 : vector<16x32xf32>
    %209 = vector.broadcast %188 : vector<1x32xf32> to vector<16x32xf32>
    %210 = arith.addf %208, %209 : vector<16x32xf32>
    %c1 = arith.constant 1 : index
    %c0_60 = arith.constant 0 : index
    %c0_61 = arith.constant 0 : index
    %211 = vector.load %arg3[%c1, %c0_60, %c0_61] : memref<2x8x128xf32, #tpu.memory_space<vmem>>, vector<1x8x128xf32>
    %212 = vector.shape_cast %211 : vector<1x8x128xf32> to vector<8x128xf32>
    %213 = arith.truncf %210 : vector<16x32xf32> to vector<16x32xbf16>
    %c1_62 = arith.constant 1 : index
    %c0_63 = arith.constant 0 : index
    %c0_64 = arith.constant 0 : index
    %214 = vector.load %arg4[%c1_62, %c0_63, %c0_64] : memref<2x32x96xbf16, #tpu.memory_space<vmem>>, vector<1x32x96xbf16>
    %215 = vector.shape_cast %214 : vector<1x32x96xbf16> to vector<32x96xbf16>
    %cst_65 = arith.constant dense<0.000000e+00> : vector<16x96xf32>
    %216 = tpu.matmul %213, %215, %cst_65 {dimension_numbers = #tpu.dot_dimension_numbers<[1], [0], [0], [1], [0, 0, 1, 1], [], []>} : vector<16x32xbf16>, vector<32x96xbf16>, vector<16x96xf32> -> vector<16x96xf32>
    %217 = vector.extract_strided_slice %212 {offsets = [0, 0], sizes = [1, 96], strides = [1, 1]} : vector<8x128xf32> to vector<1x96xf32>
    %218 = vector.broadcast %217 : vector<1x96xf32> to vector<16x96xf32>
    %219 = arith.addf %216, %218 : vector<16x96xf32>
    %220 = vector.extract_strided_slice %219 {offsets = [0, 0], sizes = [16, 8], strides = [1, 1]} : vector<16x96xf32> to vector<16x8xf32>
    %221 = vector.shape_cast %220 : vector<16x8xf32> to vector<2x8x8xf32>
    %222 = vector.extract_strided_slice %219 {offsets = [0, 32], sizes = [16, 8], strides = [1, 1]} : vector<16x96xf32> to vector<16x8xf32>
    %223 = vector.shape_cast %222 : vector<16x8xf32> to vector<2x8x8xf32>
    %224 = vector.extract_strided_slice %219 {offsets = [0, 64], sizes = [16, 8], strides = [1, 1]} : vector<16x96xf32> to vector<16x8xf32>
    %225 = vector.shape_cast %224 : vector<16x8xf32> to vector<2x8x8xf32>
    "tpu.trace_start"() <{level = 10 : i32, message = "bqd,bkd->bqk"}> : () -> ()
    %cst_66 = arith.constant dense<0.000000e+00> : vector<2x8x8xf32>
    %226 = tpu.matmul %221, %223, %cst_66 {dimension_numbers = #tpu.dot_dimension_numbers<[2], [2], [1], [1], [0, 0, 0, 1, 1, 1], [0], [0]>} : vector<2x8x8xf32>, vector<2x8x8xf32>, vector<2x8x8xf32> -> vector<2x8x8xf32>
    "tpu.trace_stop"() : () -> ()
    %227 = vector.broadcast %6 : vector<2x1x8xf32> to vector<2x8x8xf32>
    %228 = arith.addf %226, %227 : vector<2x8x8xf32>
    %cst_67 = arith.constant dense<0xFF800000> : vector<2x8xf32>
    %229 = vector.multi_reduction <maximumf>, %228, %cst_67 [2] : vector<2x8x8xf32> to vector<2x8xf32>
    %230 = vector.shape_cast %229 : vector<2x8xf32> to vector<2x8x1xf32>
    %231 = vector.broadcast %230 : vector<2x8x1xf32> to vector<2x8x8xf32>
    %232 = arith.subf %228, %231 : vector<2x8x8xf32>
    %233 = math.exp %232 : vector<2x8x8xf32>
    %cst_68 = arith.constant dense<0.000000e+00> : vector<2x8xf32>
    %234 = vector.multi_reduction <add>, %233, %cst_68 [2] : vector<2x8x8xf32> to vector<2x8xf32>
    %235 = vector.shape_cast %234 : vector<2x8xf32> to vector<2x8x1xf32>
    %236 = tpu.reciprocal %235 {approx = true} : vector<2x8x1xf32> -> vector<2x8x1xf32>
    %237 = vector.broadcast %236 : vector<2x8x1xf32> to vector<2x8x8xf32>
    %238 = arith.mulf %233, %237 : vector<2x8x8xf32>
    "tpu.trace_start"() <{level = 10 : i32, message = "bqk,bkd->bqd"}> : () -> ()
    %cst_69 = arith.constant dense<0.000000e+00> : vector<2x8x8xf32>
    %239 = tpu.matmul %238, %225, %cst_69 {dimension_numbers = #tpu.dot_dimension_numbers<[2], [1], [1], [2], [0, 0, 0, 1, 1, 2], [0], [0]>} : vector<2x8x8xf32>, vector<2x8x8xf32>, vector<2x8x8xf32> -> vector<2x8x8xf32>
    "tpu.trace_stop"() : () -> ()
    %240 = vector.shape_cast %239 : vector<2x8x8xf32> to vector<16x8xf32>
    %241 = vector.extract_strided_slice %219 {offsets = [0, 8], sizes = [16, 8], strides = [1, 1]} : vector<16x96xf32> to vector<16x8xf32>
    %242 = vector.shape_cast %241 : vector<16x8xf32> to vector<2x8x8xf32>
    %243 = vector.extract_strided_slice %219 {offsets = [0, 40], sizes = [16, 8], strides = [1, 1]} : vector<16x96xf32> to vector<16x8xf32>
    %244 = vector.shape_cast %243 : vector<16x8xf32> to vector<2x8x8xf32>
    %245 = vector.extract_strided_slice %219 {offsets = [0, 72], sizes = [16, 8], strides = [1, 1]} : vector<16x96xf32> to vector<16x8xf32>
    %246 = vector.shape_cast %245 : vector<16x8xf32> to vector<2x8x8xf32>
    "tpu.trace_start"() <{level = 10 : i32, message = "bqd,bkd->bqk"}> : () -> ()
    %cst_70 = arith.constant dense<0.000000e+00> : vector<2x8x8xf32>
    %247 = tpu.matmul %242, %244, %cst_70 {dimension_numbers = #tpu.dot_dimension_numbers<[2], [2], [1], [1], [0, 0, 0, 1, 1, 1], [0], [0]>} : vector<2x8x8xf32>, vector<2x8x8xf32>, vector<2x8x8xf32> -> vector<2x8x8xf32>
    "tpu.trace_stop"() : () -> ()
    %248 = vector.broadcast %6 : vector<2x1x8xf32> to vector<2x8x8xf32>
    %249 = arith.addf %247, %248 : vector<2x8x8xf32>
    %cst_71 = arith.constant dense<0xFF800000> : vector<2x8xf32>
    %250 = vector.multi_reduction <maximumf>, %249, %cst_71 [2] : vector<2x8x8xf32> to vector<2x8xf32>
    %251 = vector.shape_cast %250 : vector<2x8xf32> to vector<2x8x1xf32>
    %252 = vector.broadcast %251 : vector<2x8x1xf32> to vector<2x8x8xf32>
    %253 = arith.subf %249, %252 : vector<2x8x8xf32>
    %254 = math.exp %253 : vector<2x8x8xf32>
    %cst_72 = arith.constant dense<0.000000e+00> : vector<2x8xf32>
    %255 = vector.multi_reduction <add>, %254, %cst_72 [2] : vector<2x8x8xf32> to vector<2x8xf32>
    %256 = vector.shape_cast %255 : vector<2x8xf32> to vector<2x8x1xf32>
    %257 = tpu.reciprocal %256 {approx = true} : vector<2x8x1xf32> -> vector<2x8x1xf32>
    %258 = vector.broadcast %257 : vector<2x8x1xf32> to vector<2x8x8xf32>
    %259 = arith.mulf %254, %258 : vector<2x8x8xf32>
    "tpu.trace_start"() <{level = 10 : i32, message = "bqk,bkd->bqd"}> : () -> ()
    %cst_73 = arith.constant dense<0.000000e+00> : vector<2x8x8xf32>
    %260 = tpu.matmul %259, %246, %cst_73 {dimension_numbers = #tpu.dot_dimension_numbers<[2], [1], [1], [2], [0, 0, 0, 1, 1, 2], [0], [0]>} : vector<2x8x8xf32>, vector<2x8x8xf32>, vector<2x8x8xf32> -> vector<2x8x8xf32>
    "tpu.trace_stop"() : () -> ()
    %261 = vector.shape_cast %260 : vector<2x8x8xf32> to vector<16x8xf32>
    %262 = vector.extract_strided_slice %219 {offsets = [0, 16], sizes = [16, 8], strides = [1, 1]} : vector<16x96xf32> to vector<16x8xf32>
    %263 = vector.shape_cast %262 : vector<16x8xf32> to vector<2x8x8xf32>
    %264 = vector.extract_strided_slice %219 {offsets = [0, 48], sizes = [16, 8], strides = [1, 1]} : vector<16x96xf32> to vector<16x8xf32>
    %265 = vector.shape_cast %264 : vector<16x8xf32> to vector<2x8x8xf32>
    %266 = vector.extract_strided_slice %219 {offsets = [0, 80], sizes = [16, 8], strides = [1, 1]} : vector<16x96xf32> to vector<16x8xf32>
    %267 = vector.shape_cast %266 : vector<16x8xf32> to vector<2x8x8xf32>
    "tpu.trace_start"() <{level = 10 : i32, message = "bqd,bkd->bqk"}> : () -> ()
    %cst_74 = arith.constant dense<0.000000e+00> : vector<2x8x8xf32>
    %268 = tpu.matmul %263, %265, %cst_74 {dimension_numbers = #tpu.dot_dimension_numbers<[2], [2], [1], [1], [0, 0, 0, 1, 1, 1], [0], [0]>} : vector<2x8x8xf32>, vector<2x8x8xf32>, vector<2x8x8xf32> -> vector<2x8x8xf32>
    "tpu.trace_stop"() : () -> ()
    %269 = vector.broadcast %6 : vector<2x1x8xf32> to vector<2x8x8xf32>
    %270 = arith.addf %268, %269 : vector<2x8x8xf32>
    %cst_75 = arith.constant dense<0xFF800000> : vector<2x8xf32>
    %271 = vector.multi_reduction <maximumf>, %270, %cst_75 [2] : vector<2x8x8xf32> to vector<2x8xf32>
    %272 = vector.shape_cast %271 : vector<2x8xf32> to vector<2x8x1xf32>
    %273 = vector.broadcast %272 : vector<2x8x1xf32> to vector<2x8x8xf32>
    %274 = arith.subf %270, %273 : vector<2x8x8xf32>
    %275 = math.exp %274 : vector<2x8x8xf32>
    %cst_76 = arith.constant dense<0.000000e+00> : vector<2x8xf32>
    %276 = vector.multi_reduction <add>, %275, %cst_76 [2] : vector<2x8x8xf32> to vector<2x8xf32>
    %277 = vector.shape_cast %276 : vector<2x8xf32> to vector<2x8x1xf32>
    %278 = tpu.reciprocal %277 {approx = true} : vector<2x8x1xf32> -> vector<2x8x1xf32>
    %279 = vector.broadcast %278 : vector<2x8x1xf32> to vector<2x8x8xf32>
    %280 = arith.mulf %275, %279 : vector<2x8x8xf32>
    "tpu.trace_start"() <{level = 10 : i32, message = "bqk,bkd->bqd"}> : () -> ()
    %cst_77 = arith.constant dense<0.000000e+00> : vector<2x8x8xf32>
    %281 = tpu.matmul %280, %267, %cst_77 {dimension_numbers = #tpu.dot_dimension_numbers<[2], [1], [1], [2], [0, 0, 0, 1, 1, 2], [0], [0]>} : vector<2x8x8xf32>, vector<2x8x8xf32>, vector<2x8x8xf32> -> vector<2x8x8xf32>
    "tpu.trace_stop"() : () -> ()
    %282 = vector.shape_cast %281 : vector<2x8x8xf32> to vector<16x8xf32>
    %283 = vector.extract_strided_slice %219 {offsets = [0, 24], sizes = [16, 8], strides = [1, 1]} : vector<16x96xf32> to vector<16x8xf32>
    %284 = vector.shape_cast %283 : vector<16x8xf32> to vector<2x8x8xf32>
    %285 = vector.extract_strided_slice %219 {offsets = [0, 56], sizes = [16, 8], strides = [1, 1]} : vector<16x96xf32> to vector<16x8xf32>
    %286 = vector.shape_cast %285 : vector<16x8xf32> to vector<2x8x8xf32>
    %287 = vector.extract_strided_slice %219 {offsets = [0, 88], sizes = [16, 8], strides = [1, 1]} : vector<16x96xf32> to vector<16x8xf32>
    %288 = vector.shape_cast %287 : vector<16x8xf32> to vector<2x8x8xf32>
    "tpu.trace_start"() <{level = 10 : i32, message = "bqd,bkd->bqk"}> : () -> ()
    %cst_78 = arith.constant dense<0.000000e+00> : vector<2x8x8xf32>
    %289 = tpu.matmul %284, %286, %cst_78 {dimension_numbers = #tpu.dot_dimension_numbers<[2], [2], [1], [1], [0, 0, 0, 1, 1, 1], [0], [0]>} : vector<2x8x8xf32>, vector<2x8x8xf32>, vector<2x8x8xf32> -> vector<2x8x8xf32>
    "tpu.trace_stop"() : () -> ()
    %290 = vector.broadcast %6 : vector<2x1x8xf32> to vector<2x8x8xf32>
    %291 = arith.addf %289, %290 : vector<2x8x8xf32>
    %cst_79 = arith.constant dense<0xFF800000> : vector<2x8xf32>
    %292 = vector.multi_reduction <maximumf>, %291, %cst_79 [2] : vector<2x8x8xf32> to vector<2x8xf32>
    %293 = vector.shape_cast %292 : vector<2x8xf32> to vector<2x8x1xf32>
    %294 = vector.broadcast %293 : vector<2x8x1xf32> to vector<2x8x8xf32>
    %295 = arith.subf %291, %294 : vector<2x8x8xf32>
    %296 = math.exp %295 : vector<2x8x8xf32>
    %cst_80 = arith.constant dense<0.000000e+00> : vector<2x8xf32>
    %297 = vector.multi_reduction <add>, %296, %cst_80 [2] : vector<2x8x8xf32> to vector<2x8xf32>
    %298 = vector.shape_cast %297 : vector<2x8xf32> to vector<2x8x1xf32>
    %299 = tpu.reciprocal %298 {approx = true} : vector<2x8x1xf32> -> vector<2x8x1xf32>
    %300 = vector.broadcast %299 : vector<2x8x1xf32> to vector<2x8x8xf32>
    %301 = arith.mulf %296, %300 : vector<2x8x8xf32>
    "tpu.trace_start"() <{level = 10 : i32, message = "bqk,bkd->bqd"}> : () -> ()
    %cst_81 = arith.constant dense<0.000000e+00> : vector<2x8x8xf32>
    %302 = tpu.matmul %301, %288, %cst_81 {dimension_numbers = #tpu.dot_dimension_numbers<[2], [1], [1], [2], [0, 0, 0, 1, 1, 2], [0], [0]>} : vector<2x8x8xf32>, vector<2x8x8xf32>, vector<2x8x8xf32> -> vector<2x8x8xf32>
    "tpu.trace_stop"() : () -> ()
    %303 = vector.shape_cast %302 : vector<2x8x8xf32> to vector<16x8xf32>
    %304 = tpu.concatenate %240, %261, %282, %303 in 1 : vector<16x8xf32>, vector<16x8xf32>, vector<16x8xf32>, vector<16x8xf32> -> vector<16x32xf32>
    %305 = arith.truncf %304 : vector<16x32xf32> to vector<16x32xbf16>
    %c1_82 = arith.constant 1 : index
    %c0_83 = arith.constant 0 : index
    %c0_84 = arith.constant 0 : index
    %306 = vector.load %arg5[%c1_82, %c0_83, %c0_84] : memref<2x32x32xbf16, #tpu.memory_space<vmem>>, vector<1x32x32xbf16>
    %307 = vector.shape_cast %306 : vector<1x32x32xbf16> to vector<32x32xbf16>
    %cst_85 = arith.constant dense<0.000000e+00> : vector<16x32xf32>
    %308 = tpu.matmul %305, %307, %cst_85 {dimension_numbers = #tpu.dot_dimension_numbers<[1], [0], [0], [1], [0, 0, 1, 1], [], []>} : vector<16x32xbf16>, vector<32x32xbf16>, vector<16x32xf32> -> vector<16x32xf32>
    %309 = vector.extract_strided_slice %212 {offsets = [1, 0], sizes = [1, 32], strides = [1, 1]} : vector<8x128xf32> to vector<1x32xf32>
    %310 = vector.broadcast %309 : vector<1x32xf32> to vector<16x32xf32>
    %311 = arith.addf %308, %310 : vector<16x32xf32>
    %312 = arith.addf %311, %210 : vector<16x32xf32>
    %313 = vector.extract_strided_slice %212 {offsets = [2, 0], sizes = [1, 32], strides = [1, 1]} : vector<8x128xf32> to vector<1x32xf32>
    %314 = vector.extract_strided_slice %212 {offsets = [3, 0], sizes = [1, 32], strides = [1, 1]} : vector<8x128xf32> to vector<1x32xf32>
    %cst_86 = arith.constant dense<0.000000e+00> : vector<16xf32>
    %315 = vector.multi_reduction <add>, %312, %cst_86 [1] : vector<16x32xf32> to vector<16xf32>
    %316 = vector.shape_cast %315 : vector<16xf32> to vector<16x1xf32>
    %cst_87 = arith.constant 3.200000e+01 : f32
    %317 = vector.broadcast %cst_87 : f32 to vector<16x1xf32>
    %318 = arith.divf %316, %317 : vector<16x1xf32>
    %319 = vector.broadcast %318 : vector<16x1xf32> to vector<16x32xf32>
    %320 = arith.subf %312, %319 : vector<16x32xf32>
    %321 = arith.mulf %320, %320 : vector<16x32xf32>
    %cst_88 = arith.constant dense<0.000000e+00> : vector<16xf32>
    %322 = vector.multi_reduction <add>, %321, %cst_88 [1] : vector<16x32xf32> to vector<16xf32>
    %323 = vector.shape_cast %322 : vector<16xf32> to vector<16x1xf32>
    %cst_89 = arith.constant 3.200000e+01 : f32
    %324 = vector.broadcast %cst_89 : f32 to vector<16x1xf32>
    %325 = arith.divf %323, %324 : vector<16x1xf32>
    %326 = vector.broadcast %318 : vector<16x1xf32> to vector<16x32xf32>
    %327 = arith.subf %312, %326 : vector<16x32xf32>
    %cst_90 = arith.constant 9.99999996E-13 : f32
    %328 = vector.broadcast %cst_90 : f32 to vector<16x1xf32>
    %329 = arith.addf %325, %328 : vector<16x1xf32>
    %330 = math.rsqrt %329 : vector<16x1xf32>
    %331 = vector.broadcast %330 : vector<16x1xf32> to vector<16x32xf32>
    %332 = arith.mulf %327, %331 : vector<16x32xf32>
    %333 = vector.broadcast %313 : vector<1x32xf32> to vector<16x32xf32>
    %334 = arith.mulf %332, %333 : vector<16x32xf32>
    %335 = vector.broadcast %314 : vector<1x32xf32> to vector<16x32xf32>
    %336 = arith.addf %334, %335 : vector<16x32xf32>
    %337 = arith.truncf %336 : vector<16x32xf32> to vector<16x32xbf16>
    %c1_91 = arith.constant 1 : index
    %c0_92 = arith.constant 0 : index
    %c0_93 = arith.constant 0 : index
    %338 = vector.load %arg6[%c1_91, %c0_92, %c0_93] : memref<2x32x64xbf16, #tpu.memory_space<vmem>>, vector<1x32x64xbf16>
    %339 = vector.shape_cast %338 : vector<1x32x64xbf16> to vector<32x64xbf16>
    %cst_94 = arith.constant dense<0.000000e+00> : vector<16x64xf32>
    %340 = tpu.matmul %337, %339, %cst_94 {dimension_numbers = #tpu.dot_dimension_numbers<[1], [0], [0], [1], [0, 0, 1, 1], [], []>} : vector<16x32xbf16>, vector<32x64xbf16>, vector<16x64xf32> -> vector<16x64xf32>
    %341 = vector.extract_strided_slice %212 {offsets = [4, 0], sizes = [1, 64], strides = [1, 1]} : vector<8x128xf32> to vector<1x64xf32>
    %342 = vector.broadcast %341 : vector<1x64xf32> to vector<16x64xf32>
    %343 = arith.addf %340, %342 : vector<16x64xf32>
    %cst_95 = arith.constant 5.000000e-01 : f32
    %344 = vector.broadcast %cst_95 : f32 to vector<16x64xf32>
    %345 = arith.mulf %344, %343 : vector<16x64xf32>
    %cst_96 = arith.constant 4.471500e-02 : f32
    %346 = vector.broadcast %cst_96 : f32 to vector<16x64xf32>
    %347 = arith.mulf %346, %343 : vector<16x64xf32>
    %348 = arith.mulf %347, %343 : vector<16x64xf32>
    %349 = arith.mulf %348, %343 : vector<16x64xf32>
    %350 = arith.addf %343, %349 : vector<16x64xf32>
    %cst_97 = arith.constant 0.797884583 : f32
    %351 = vector.broadcast %cst_97 : f32 to vector<16x64xf32>
    %352 = arith.mulf %351, %350 : vector<16x64xf32>
    %353 = math.tanh %352 : vector<16x64xf32>
    %cst_98 = arith.constant 1.000000e+00 : f32
    %354 = vector.broadcast %cst_98 : f32 to vector<16x64xf32>
    %355 = arith.addf %354, %353 : vector<16x64xf32>
    %356 = arith.mulf %345, %355 : vector<16x64xf32>
    %357 = arith.truncf %356 : vector<16x64xf32> to vector<16x64xbf16>
    %c1_99 = arith.constant 1 : index
    %c0_100 = arith.constant 0 : index
    %c0_101 = arith.constant 0 : index
    %358 = vector.load %arg7[%c1_99, %c0_100, %c0_101] : memref<2x64x32xbf16, #tpu.memory_space<vmem>>, vector<1x64x32xbf16>
    %359 = vector.shape_cast %358 : vector<1x64x32xbf16> to vector<64x32xbf16>
    %cst_102 = arith.constant dense<0.000000e+00> : vector<16x32xf32>
    %360 = tpu.matmul %357, %359, %cst_102 {dimension_numbers = #tpu.dot_dimension_numbers<[1], [0], [0], [1], [0, 0, 1, 1], [], []>} : vector<16x64xbf16>, vector<64x32xbf16>, vector<16x32xf32> -> vector<16x32xf32>
    %361 = vector.extract_strided_slice %212 {offsets = [5, 0], sizes = [1, 32], strides = [1, 1]} : vector<8x128xf32> to vector<1x32xf32>
    %362 = vector.broadcast %361 : vector<1x32xf32> to vector<16x32xf32>
    %363 = arith.addf %360, %362 : vector<16x32xf32>
    %364 = arith.addf %363, %336 : vector<16x32xf32>
    %365 = vector.extract_strided_slice %212 {offsets = [6, 0], sizes = [1, 32], strides = [1, 1]} : vector<8x128xf32> to vector<1x32xf32>
    %366 = vector.extract_strided_slice %212 {offsets = [7, 0], sizes = [1, 32], strides = [1, 1]} : vector<8x128xf32> to vector<1x32xf32>
    %cst_103 = arith.constant dense<0.000000e+00> : vector<16xf32>
    %367 = vector.multi_reduction <add>, %364, %cst_103 [1] : vector<16x32xf32> to vector<16xf32>
    %368 = vector.shape_cast %367 : vector<16xf32> to vector<16x1xf32>
    %cst_104 = arith.constant 3.200000e+01 : f32
    %369 = vector.broadcast %cst_104 : f32 to vector<16x1xf32>
    %370 = arith.divf %368, %369 : vector<16x1xf32>
    %371 = vector.broadcast %370 : vector<16x1xf32> to vector<16x32xf32>
    %372 = arith.subf %364, %371 : vector<16x32xf32>
    %373 = arith.mulf %372, %372 : vector<16x32xf32>
    %cst_105 = arith.constant dense<0.000000e+00> : vector<16xf32>
    %374 = vector.multi_reduction <add>, %373, %cst_105 [1] : vector<16x32xf32> to vector<16xf32>
    %375 = vector.shape_cast %374 : vector<16xf32> to vector<16x1xf32>
    %cst_106 = arith.constant 3.200000e+01 : f32
    %376 = vector.broadcast %cst_106 : f32 to vector<16x1xf32>
    %377 = arith.divf %375, %376 : vector<16x1xf32>
    %378 = vector.broadcast %370 : vector<16x1xf32> to vector<16x32xf32>
    %379 = arith.subf %364, %378 : vector<16x32xf32>
    %cst_107 = arith.constant 9.99999996E-13 : f32
    %380 = vector.broadcast %cst_107 : f32 to vector<16x1xf32>
    %381 = arith.addf %377, %380 : vector<16x1xf32>
    %382 = math.rsqrt %381 : vector<16x1xf32>
    %383 = vector.broadcast %382 : vector<16x1xf32> to vector<16x32xf32>
    %384 = arith.mulf %379, %383 : vector<16x32xf32>
    %385 = vector.broadcast %365 : vector<1x32xf32> to vector<16x32xf32>
    %386 = arith.mulf %384, %385 : vector<16x32xf32>
    %387 = vector.broadcast %366 : vector<1x32xf32> to vector<16x32xf32>
    %388 = arith.addf %386, %387 : vector<16x32xf32>
    %389 = vector.shape_cast %388 : vector<16x32xf32> to vector<2x8x32xf32>
    %390 = vector.extract_strided_slice %389 {offsets = [0, 0, 0], sizes = [2, 1, 32], strides = [1, 1, 1]} : vector<2x8x32xf32> to vector<2x1x32xf32>
    %391 = vector.shape_cast %390 : vector<2x1x32xf32> to vector<2x32xf32>
    %392 = arith.truncf %391 : vector<2x32xf32> to vector<2x32xbf16>
    %c0_108 = arith.constant 0 : index
    %c128 = arith.constant 128 : index
    %393 = vector.load %arg8[%c0_108, %c128] : memref<32x160xbf16, #tpu.memory_space<vmem>>, vector<32x32xbf16>
    %cst_109 = arith.constant dense<0.000000e+00> : vector<2x32xf32>
    %394 = tpu.matmul %392, %393, %cst_109 {dimension_numbers = #tpu.dot_dimension_numbers<[1], [0], [0], [1], [0, 0, 1, 1], [], []>} : vector<2x32xbf16>, vector<32x32xbf16>, vector<2x32xf32> -> vector<2x32xf32>
    %395 = vector.extract_strided_slice %7 {offsets = [2, 0], sizes = [1, 32], strides = [1, 1]} : vector<4x128xf32> to vector<1x32xf32>
    %396 = vector.broadcast %395 : vector<1x32xf32> to vector<2x32xf32>
    %397 = arith.addf %394, %396 : vector<2x32xf32>
    %398 = math.tanh %397 : vector<2x32xf32>
    %399 = arith.truncf %398 : vector<2x32xf32> to vector<2x32xbf16>
    %c0_110 = arith.constant 0 : index
    %c0_111 = arith.constant 0 : index
    %400 = vector.load %arg8[%c0_110, %c0_111] : memref<32x160xbf16, #tpu.memory_space<vmem>>, vector<32x128xbf16>
    %cst_112 = arith.constant dense<0.000000e+00> : vector<2x128xf32>
    %401 = tpu.matmul %399, %400, %cst_112 {dimension_numbers = #tpu.dot_dimension_numbers<[1], [0], [0], [1], [0, 0, 1, 1], [], []>} : vector<2x32xbf16>, vector<32x128xbf16>, vector<2x128xf32> -> vector<2x128xf32>
    %402 = vector.extract_strided_slice %7 {offsets = [3, 0], sizes = [1, 128], strides = [1, 1]} : vector<4x128xf32> to vector<1x128xf32>
    %403 = vector.broadcast %402 : vector<1x128xf32> to vector<2x128xf32>
    %404 = arith.addf %401, %403 : vector<2x128xf32>
    %c0_113 = arith.constant 0 : index
    %c0_114 = arith.constant 0 : index
    %405 = vector.load %arg9[%c0_113, %c0_114] : memref<2x128xf32, #tpu.memory_space<vmem>>, vector<2x128xf32>
    tpu.vector_store %arg9[%c0_113, %c0_114], %404 {strides = array<i32>} : memref<2x128xf32, #tpu.memory_space<vmem>>, vector<2x128xf32>,
    return
  }
}

</mosaic_0001>

<llo_original>
// kernel: bert_classifier_forward.1
$region0: #{bert_classifier_forward.1}
  #allocation0 [shape = 'u32[]', space=smem, size = 0x4, offset = 0x4, fixed_abs, tag = 'smem constant byte address 0x4 - core index']
  #allocation1 [shape = 'u32[144,128]{1,0:T(1,128)}', space=vmem, size = 0x12000, scoped, tag = 'internal scratch']
  %s0 = inlined_call_operand.vmem [shape: s32[2,8], index: 0, kind: input, shape index: {}]
  %s1 = inlined_call_operand.vmem [shape: f32[16,32], index: 1, kind: input, shape index: {}]
  %s2 = inlined_call_operand.vmem [shape: f32[4,128], index: 2, kind: input, shape index: {}]
  %s3 = inlined_call_operand.vmem [shape: f32[2,8,128], index: 3, kind: input, shape index: {}]
  %s4 = inlined_call_operand.vmem [shape: bf16[2,32,96], index: 4, kind: input, shape index: {}]
  %s5 = inlined_call_operand.vmem [shape: bf16[2,32,32], index: 5, kind: input, shape index: {}]
  %s6 = inlined_call_operand.vmem [shape: bf16[2,32,64], index: 6, kind: input, shape index: {}]
  %s7 = inlined_call_operand.vmem [shape: bf16[2,64,32], index: 7, kind: input, shape index: {}]
  %s8 = inlined_call_operand.vmem [shape: bf16[32,160], index: 8, kind: input, shape index: {}]
  %s9 = inlined_call_operand.hbm [shape: f32[2,128], index: 9, kind: output, shape index: {}]
  %s10 = sld [smem:[#allocation0]]
  $region46: #{bert_classifier_forward.1} parent=0
    _
  %s12 = ssub.s32 1, %s10
  %s13 = scalar_select 0, %s12, %s10
  $region1: #{bert_classifier_forward.1} parent=0
    #allocation2 [shape = 'u8[1024]{0}', space=vmem, size = 0x400, scoped, tag = 'output window, operand 0, single buffered']
    #allocation3 [shape = 's32[1]{0}', space=sflag, size = 0x4, scoped, tag = 'scoped memory for bert_classifier_forward.1']
    %14 = vsyncpa [#allocation3], 0
    // Predicated region
    $region2: #{bert_classifier_forward.1} parent=1 // pred_check
      _
    $region3: #{bert_classifier_forward.1} parent=1 // pred_check_branch
      %16 = sbr.rel (0) target = $region5
    $region4: #{bert_classifier_forward.1} parent=1 // pred_region
      _
    $region5: #{bert_classifier_forward.1} parent=1 // pred_fallthru
      _
    // Predicated region
    $region6: #{bert_classifier_forward.1} parent=1 // pred_check
      _
    $region7: #{bert_classifier_forward.1} parent=1 // pred_check_branch
      %18 = sbr.rel (0) target = $region9
    $region8: #{bert_classifier_forward.1} parent=1 // pred_region
      _
    $region9: #{bert_classifier_forward.1} parent=1 // pred_fallthru
      _
    // Predicated region
    $region10: #{bert_classifier_forward.1} parent=1 // pred_check
      _
    $region11: #{bert_classifier_forward.1} parent=1 // pred_check_branch
      %20 = sbr.rel (0) target = $region13
    $region12: #{bert_classifier_forward.1} parent=1 // pred_region
      _
    $region13: #{bert_classifier_forward.1} parent=1 // pred_fallthru
      _
    // Predicated region
    $region14: #{bert_classifier_forward.1} parent=1 // pred_check
      _
    $region15: #{bert_classifier_forward.1} parent=1 // pred_check_branch
      %22 = sbr.rel (0) target = $region17
    $region16: #{bert_classifier_forward.1} parent=1 // pred_region
      _
    $region17: #{bert_classifier_forward.1} parent=1 // pred_fallthru
      _
    // Predicated region
    $region18: #{bert_classifier_forward.1} parent=1 // pred_check
      _
    $region19: #{bert_classifier_forward.1} parent=1 // pred_check_branch
      %24 = sbr.rel (0) target = $region21
    $region20: #{bert_classifier_forward.1} parent=1 // pred_region
      _
    $region21: #{bert_classifier_forward.1} parent=1 // pred_fallthru
      _
    // Predicated region
    $region22: #{bert_classifier_forward.1} parent=1 // pred_check
      _
    $region23: #{bert_classifier_forward.1} parent=1 // pred_check_branch
      %26 = sbr.rel (0) target = $region25
    $region24: #{bert_classifier_forward.1} parent=1 // pred_region
      _
    $region25: #{bert_classifier_forward.1} parent=1 // pred_fallthru
      _
    // Predicated region
    $region26: #{bert_classifier_forward.1} parent=1 // pred_check
      _
    $region27: #{bert_classifier_forward.1} parent=1 // pred_check_branch
      %28 = sbr.rel (0) target = $region29
    $region28: #{bert_classifier_forward.1} parent=1 // pred_region
      _
    $region29: #{bert_classifier_forward.1} parent=1 // pred_fallthru
      _
    // Predicated region
    $region30: #{bert_classifier_forward.1} parent=1 // pred_check
      _
    $region31: #{bert_classifier_forward.1} parent=1 // pred_check_branch
      %30 = sbr.rel (0) target = $region33
    $region32: #{bert_classifier_forward.1} parent=1 // pred_region
      _
    $region33: #{bert_classifier_forward.1} parent=1 // pred_fallthru
      _
    // Predicated region
    $region34: #{bert_classifier_forward.1} parent=1 // pred_check
      _
    $region35: #{bert_classifier_forward.1} parent=1 // pred_check_branch
      %32 = sbr.rel (0) target = $region37
    $region36: #{bert_classifier_forward.1} parent=1 // pred_region
      _
    $region37: #{bert_classifier_forward.1} parent=1 // pred_fallthru
      _
    %v34 = vld [vmem:[%s0] sm:$0x3]
    %v35 = vcvt.s32.f32 %v34
    %v36 = vsub.f32 1.0, %v35
    %v37 = vmul.f32 %v36, -10000.0
    %v40 = vunpack.c.l.s4 1966171168
    %v41 = vunpack.c.0.s8 %v40
    %v42 = vlaneseq
    %v43 = vshrl.u32 %v42, 7
    %v44 = vsub.s32 %v41, %v43
    %v45 = vrot.slane %v37, %v44
    %v46 = vcombine.high %v45, %v45
    %v48 = vunpack.c.l.s4 1966171168
    %v49 = vunpack.c.0.s8 %v48
    %v50 = vlaneseq
    %v51 = vshrl.u32 %v50, 7
    %v52 = vsub.s32 %v49, %v51
    %v53 = vrot.slane %v45, %v52
    %v55 = vunpack.c.l.s4 1966171168
    %v56 = vunpack.c.0.s8 %v55
    %v57 = vlaneseq
    %v58 = vshrl.u32 %v57, 7
    %v59 = vsub.s32 %v56, %v58
    %v60 = vrot.slane %v46, %v59
    %v61 = vld [vmem:[%s2] sm:$0xf]
    %v62 = vld [vmem:[%s1] sm:$0xff]
    %v63 = vld [vmem:[%s1 + $0x8] sm:$0xff]
    %vm64 = vcmask 261120
    %v65 = vsel %vm64, %v62, 0.0
    %66 = vadd.xlane.f32.xlu0 %v65
    %v67 = vpop.xlane.xlu0 %66
    %v68 = vsel %vm64, %v63, 0.0
    %69 = vadd.xlane.f32.xlu0 %v68
    %v70 = vpop.xlane.xlu0 %69
    %v71 = vrcp.pop 32.0
    %v72 = vmul.f32 %v67, %v71
    %v73 = vmul.f32 %v70, %v71
    %v74 = vsub.f32 %v62, %v72
    %v75 = vsub.f32 %v63, %v73
    %v76 = vmul.f32 %v74, %v74
    %v77 = vmul.f32 %v75, %v75
    %v78 = vsel %vm64, %v76, 0.0
    %79 = vadd.xlane.f32.xlu0 %v78
    %v80 = vpop.xlane.xlu0 %79
    %v81 = vsel %vm64, %v77, 0.0
    %82 = vadd.xlane.f32.xlu0 %v81
    %v83 = vpop.xlane.xlu0 %82
    %v84 = vmul.f32 %v80, %v71
    %v85 = vmul.f32 %v83, %v71
    %v86 = vadd.f32 %v84, 1e-12
    %v87 = vadd.f32 %v85, 1e-12
    %v88 = vrsqrt.pop %v86
    %v89 = vrsqrt.pop %v87
    %v90 = vmul.f32 %v74, %v88
    %v91 = vmul.f32 %v75, %v89
    %v92 = vlaneseq
    %v93 = vshrl.u32 %v92, 7
    %v94 = vsub.s32 0, %v93
    %v95 = vrot.slane %v61, %v94
    %v96 = vmul.f32 %v90, %v95
    %v97 = vmul.f32 %v91, %v95
    %v98 = vlaneseq
    %v99 = vshrl.u32 %v98, 7
    %v100 = vsub.s32 1, %v99
    %v101 = vrot.slane %v61, %v100
    %v102 = vadd.f32 %v96, %v101
    %v103 = vadd.f32 %v97, %v101
    %v104 = vld [vmem:[%s3] sm:$0xff]
    %v105 = vpack.c.bf16 %v103, %v102
    %v106 = vld [vmem:[%s4] sm:$0xf]
    %v107 = vld [vmem:[%s4 + $0x4] sm:$0xf]
    %v108 = vld [vmem:[%s4 + $0x8] sm:$0xf]
    %v109 = vld [vmem:[%s4 + $0xc] sm:$0xf]
    %v110 = vlaneseq
    %v111 = vshrl.u32 %v110, 7
    %v112 = vsub.s32 0, %v111
    %v113 = vrot.slane %v104, %v112
    %v118 = vunpack.c.l.b16 %v106
    %v119 = vunpack.c.l.b16 %v107
    %v120 = vunpack.c.l.b16 %v108
    %v121 = vunpack.c.l.b16 %v109
    %v122 = vpack.c.b16 %v119, %v118
    %v123 = vpack.c.b16 %v121, %v120
    %v127 = vsel %vm64, %v105, 0
    %129 = vmatprep.subr.bf16.mxu0 0
    %130 = vmatpush1.bf16.msra.mxu0 %v122
    %131 = vmatprep.subr.bf16.mxu0 0
    %132 = vmatpush1.bf16.msra.mxu0 %v123
    %133 = vmatprep.subr.bf16.mxu0 0
    %134 = vmatpush1.bf16.msra.mxu0 0
    %135 = vmatprep.subr.bf16.mxu0 0
    %136 = vmatpush1.bf16.msra.mxu0 0
    %137 = vmatprep.subr.bf16.mxu0 0
    %138 = vmatpush1.bf16.msra.mxu0 0
    %139 = vmatprep.subr.bf16.mxu0 0
    %140 = vmatpush1.bf16.msra.mxu0 0
    %141 = vmatprep.subr.bf16.mxu0 0
    %142 = vmatpush1.bf16.msra.mxu0 0
    %143 = vmatprep.subr.bf16.mxu0 0
    %144 = vmatpush1.bf16.msra.mxu0 0
    %145 = vmatprep.subr.bf16.mxu0 0
    %146 = vmatpush1.bf16.msra.mxu0 0
    %147 = vmatprep.subr.bf16.mxu0 0
    %148 = vmatpush1.bf16.msra.mxu0 0
    %149 = vmatprep.subr.bf16.mxu0 0
    %150 = vmatpush1.bf16.msra.mxu0 0
    %151 = vmatprep.subr.bf16.mxu0 0
    %152 = vmatpush1.bf16.msra.mxu0 0
    %153 = vmatprep.subr.bf16.mxu0 0
    %154 = vmatpush1.bf16.msra.mxu0 0
    %155 = vmatprep.subr.bf16.mxu0 0
    %156 = vmatpush1.bf16.msra.mxu0 0
    %157 = vmatprep.subr.bf16.mxu0 0
    %158 = vmatpush1.bf16.msra.mxu0 0
    %159 = vmatprep.subr.bf16.mxu0 0
    %160 = vmatpush1.bf16.msra.mxu0 0
    %161 = vmatprep.mubr.bf16.mxu0 0
    %162 = vmatmul.mubr.bf16.gmra.mrb[0].mxu0 %v127
    %v163 = vpop.f32.mrb[0].mxu0
    %v164 = vadd.f32 %v113, %v163
    %v165 = vpop.f32.mrb[0].mxu0
    %v166 = vpop.f32.mrb[0].mxu0
    %v167 = vadd.f32 %v113, %v166
    %v168 = vpop.f32.mrb[0].mxu0
    %169 = vdwg.mxu0
    %v170 = vlaneseq
    %v171 = vshrl.u32 %v170, 7
    %v172 = vsub.s32 0, %v171
    %v173 = vrot.slane %v53, %v172
    %v174 = vlaneseq
    %v175 = vshrl.u32 %v174, 7
    %v176 = vsub.s32 0, %v175
    %v177 = vrot.slane %v60, %v176
    %181 = vrot.lane.b32.xlu0 %v164, 96
    %v182 = vpop.permute.xlu0 %181
    %vm183 = vcmask 64512
    %v184 = vsel %vm183, %v164, 0
    %v186 = vsel %vm183, %v182, 0
    %188 = vmatprep.subr.mxu0 0.0
    %189 = vmatpush1.xpose.msra.mxu0 %v186
    %190 = vmatprep.subr.mxu0 0.0
    %191 = vmatpush1.xpose.msra.mxu0 0.0
    %192 = vmatprep.subr.mxu0 0.0
    %193 = vmatpush1.xpose.msra.mxu0 0.0
    %194 = vmatprep.subr.mxu0 0.0
    %195 = vmatpush1.xpose.msra.mxu0 0.0
    %196 = vmatprep.subr.mxu0 0.0
    %197 = vmatpush1.xpose.msra.mxu0 0.0
    %198 = vmatprep.subr.mxu0 0.0
    %199 = vmatpush1.xpose.msra.mxu0 0.0
    %200 = vmatprep.subr.mxu0 0.0
    %201 = vmatpush1.xpose.msra.mxu0 0.0
    %202 = vmatprep.subr.mxu0 0.0
    %203 = vmatpush1.xpose.msra.mxu0 0.0
    %204 = vmatprep.subr.mxu0 0.0
    %205 = vmatpush1.xpose.msra.mxu0 0.0
    %206 = vmatprep.subr.mxu0 0.0
    %207 = vmatpush1.xpose.msra.mxu0 0.0
    %208 = vmatprep.subr.mxu0 0.0
    %209 = vmatpush1.xpose.msra.mxu0 0.0
    %210 = vmatprep.subr.mxu0 0.0
    %211 = vmatpush1.xpose.msra.mxu0 0.0
    %212 = vmatprep.subr.mxu0 0.0
    %213 = vmatpush1.xpose.msra.mxu0 0.0
    %214 = vmatprep.subr.mxu0 0.0
    %215 = vmatpush1.xpose.msra.mxu0 0.0
    %216 = vmatprep.subr.mxu0 0.0
    %217 = vmatpush1.xpose.msra.mxu0 0.0
    %218 = vmatprep.subr.mxu0 0.0
    %219 = vmatpush1.xpose.msra.mxu0 0.0
    %220 = vmatprep.subr.mxu0 0.0
    %221 = vmatpush1.xpose.msra.mxu0 0.0
    %222 = vmatprep.subr.mxu0 0.0
    %223 = vmatpush1.xpose.msra.mxu0 0.0
    %224 = vmatprep.subr.mxu0 0.0
    %225 = vmatpush1.xpose.msra.mxu0 0.0
    %226 = vmatprep.subr.mxu0 0.0
    %227 = vmatpush1.xpose.msra.mxu0 0.0
    %228 = vmatprep.subr.mxu0 0.0
    %229 = vmatpush1.xpose.msra.mxu0 0.0
    %230 = vmatprep.subr.mxu0 0.0
    %231 = vmatpush1.xpose.msra.mxu0 0.0
    %232 = vmatprep.subr.mxu0 0.0
    %233 = vmatpush1.xpose.msra.mxu0 0.0
    %234 = vmatprep.subr.mxu0 0.0
    %235 = vmatpush1.xpose.msra.mxu0 0.0
    %236 = vmatprep.subr.mxu0 0.0
    %237 = vmatpush1.xpose.msra.mxu0 0.0
    %238 = vmatprep.subr.mxu0 0.0
    %239 = vmatpush1.xpose.msra.mxu0 0.0
    %240 = vmatprep.subr.mxu0 0.0
    %241 = vmatpush1.xpose.msra.mxu0 0.0
    %242 = vmatprep.subr.mxu0 0.0
    %243 = vmatpush1.xpose.msra.mxu0 0.0
    %244 = vmatprep.subr.mxu0 0.0
    %245 = vmatpush1.xpose.msra.mxu0 0.0
    %246 = vmatprep.subr.mxu0 0.0
    %247 = vmatpush1.xpose.msra.mxu0 0.0
    %248 = vmatprep.subr.mxu0 0.0
    %249 = vmatpush1.xpose.msra.mxu0 0.0
    %250 = vmatprep.subr.mxu0 0.0
    %251 = vmatpush1.xpose.msra.mxu0 0.0
    %252 = vmatprep.mubr.f32.mxu0 0.0
    %253 = vmatmul.mubr.f32.gmra.mrb[0].mxu0 %v184
    %v254 = vpop.f32.mrb[0].mxu0
    %v255 = vadd.f32 %v173, %v254
    %v256 = vpop.f32.mrb[0].mxu0
    %257 = vdwg.mxu0
    %259 = vrot.lane.b32.xlu0 %v167, 96
    %v260 = vpop.permute.xlu0 %259
    %v261 = vsel %vm183, %v167, 0
    %v263 = vsel %vm183, %v260, 0
    %265 = vmatprep.subr.mxu0 0.0
    %266 = vmatpush1.xpose.msra.mxu0 %v263
    %267 = vmatprep.subr.mxu0 0.0
    %268 = vmatpush1.xpose.msra.mxu0 0.0
    %269 = vmatprep.subr.mxu0 0.0
    %270 = vmatpush1.xpose.msra.mxu0 0.0
    %271 = vmatprep.subr.mxu0 0.0
    %272 = vmatpush1.xpose.msra.mxu0 0.0
    %273 = vmatprep.subr.mxu0 0.0
    %274 = vmatpush1.xpose.msra.mxu0 0.0
    %275 = vmatprep.subr.mxu0 0.0
    %276 = vmatpush1.xpose.msra.mxu0 0.0
    %277 = vmatprep.subr.mxu0 0.0
    %278 = vmatpush1.xpose.msra.mxu0 0.0
    %279 = vmatprep.subr.mxu0 0.0
    %280 = vmatpush1.xpose.msra.mxu0 0.0
    %281 = vmatprep.subr.mxu0 0.0
    %282 = vmatpush1.xpose.msra.mxu0 0.0
    %283 = vmatprep.subr.mxu0 0.0
    %284 = vmatpush1.xpose.msra.mxu0 0.0
    %285 = vmatprep.subr.mxu0 0.0
    %286 = vmatpush1.xpose.msra.mxu0 0.0
    %287 = vmatprep.subr.mxu0 0.0
    %288 = vmatpush1.xpose.msra.mxu0 0.0
    %289 = vmatprep.subr.mxu0 0.0
    %290 = vmatpush1.xpose.msra.mxu0 0.0
    %291 = vmatprep.subr.mxu0 0.0
    %292 = vmatpush1.xpose.msra.mxu0 0.0
    %293 = vmatprep.subr.mxu0 0.0
    %294 = vmatpush1.xpose.msra.mxu0 0.0
    %295 = vmatprep.subr.mxu0 0.0
    %296 = vmatpush1.xpose.msra.mxu0 0.0
    %297 = vmatprep.subr.mxu0 0.0
    %298 = vmatpush1.xpose.msra.mxu0 0.0
    %299 = vmatprep.subr.mxu0 0.0
    %300 = vmatpush1.xpose.msra.mxu0 0.0
    %301 = vmatprep.subr.mxu0 0.0
    %302 = vmatpush1.xpose.msra.mxu0 0.0
    %303 = vmatprep.subr.mxu0 0.0
    %304 = vmatpush1.xpose.msra.mxu0 0.0
    %305 = vmatprep.subr.mxu0 0.0
    %306 = vmatpush1.xpose.msra.mxu0 0.0
    %307 = vmatprep.subr.mxu0 0.0
    %308 = vmatpush1.xpose.msra.mxu0 0.0
    %309 = vmatprep.subr.mxu0 0.0
    %310 = vmatpush1.xpose.msra.mxu0 0.0
    %311 = vmatprep.subr.mxu0 0.0
    %312 = vmatpush1.xpose.msra.mxu0 0.0
    %313 = vmatprep.subr.mxu0 0.0
    %314 = vmatpush1.xpose.msra.mxu0 0.0
    %315 = vmatprep.subr.mxu0 0.0
    %316 = vmatpush1.xpose.msra.mxu0 0.0
    %317 = vmatprep.subr.mxu0 0.0
    %318 = vmatpush1.xpose.msra.mxu0 0.0
    %319 = vmatprep.subr.mxu0 0.0
    %320 = vmatpush1.xpose.msra.mxu0 0.0
    %321 = vmatprep.subr.mxu0 0.0
    %322 = vmatpush1.xpose.msra.mxu0 0.0
    %323 = vmatprep.subr.mxu0 0.0
    %324 = vmatpush1.xpose.msra.mxu0 0.0
    %325 = vmatprep.subr.mxu0 0.0
    %326 = vmatpush1.xpose.msra.mxu0 0.0
    %327 = vmatprep.subr.mxu0 0.0
    %328 = vmatpush1.xpose.msra.mxu0 0.0
    %329 = vmatprep.mubr.f32.mxu0 0.0
    %330 = vmatmul.mubr.f32.gmra.mrb[0].mxu0 %v261
    %v331 = vpop.f32.mrb[0].mxu0
    %v332 = vadd.f32 %v177, %v331
    %v333 = vpop.f32.mrb[0].mxu0
    %334 = vdwg.mxu0
    %v335 = vsel %vm183, %v255, -inf
    %336 = vmax.xlane.f32.xlu0 %v335
    %v337 = vpop.xlane.xlu0 %336
    %v338 = vsel %vm183, %v332, -inf
    %339 = vmax.xlane.f32.xlu0 %v338
    %v340 = vpop.xlane.xlu0 %339
    %v341 = vsub.f32 %v255, %v337
    %v342 = vsub.f32 %v332, %v340
    %v343 = vmul.f32 %v341, 1.442695
    %v344 = vpow.pop %v343
    %v345 = vmul.f32 %v342, 1.442695
    %v346 = vpow.pop %v345
    %v347 = vsel %vm183, %v344, 0.0
    %348 = vadd.xlane.f32.xlu0 %v347
    %v349 = vpop.xlane.xlu0 %348
    %v350 = vsel %vm183, %v346, 0.0
    %351 = vadd.xlane.f32.xlu0 %v350
    %v352 = vpop.xlane.xlu0 %351
    %v353 = vrcp.pop %v349
    %v354 = vrcp.pop %v352
    %v355 = vmul.f32 %v344, %v353
    %v356 = vmul.f32 %v346, %v354
    %357 = vrot.lane.b32.xlu0 %v164, 64
    %v358 = vpop.permute.xlu0 %357
    %v361 = vsel %vm183, %v355, 0
    %363 = vmatprep.subr.mxu0 0.0
    %364 = vmatpush1.msra.mxu0 %v358
    %365 = vmatprep.subr.mxu0 0.0
    %366 = vmatpush1.msra.mxu0 0.0
    %367 = vmatprep.subr.mxu0 0.0
    %368 = vmatpush1.msra.mxu0 0.0
    %369 = vmatprep.subr.mxu0 0.0
    %370 = vmatpush1.msra.mxu0 0.0
    %371 = vmatprep.subr.mxu0 0.0
    %372 = vmatpush1.msra.mxu0 0.0
    %373 = vmatprep.subr.mxu0 0.0
    %374 = vmatpush1.msra.mxu0 0.0
    %375 = vmatprep.subr.mxu0 0.0
    %376 = vmatpush1.msra.mxu0 0.0
    %377 = vmatprep.subr.mxu0 0.0
    %378 = vmatpush1.msra.mxu0 0.0
    %379 = vmatprep.subr.mxu0 0.0
    %380 = vmatpush1.msra.mxu0 0.0
    %381 = vmatprep.subr.mxu0 0.0
    %382 = vmatpush1.msra.mxu0 0.0
    %383 = vmatprep.subr.mxu0 0.0
    %384 = vmatpush1.msra.mxu0 0.0
    %385 = vmatprep.subr.mxu0 0.0
    %386 = vmatpush1.msra.mxu0 0.0
    %387 = vmatprep.subr.mxu0 0.0
    %388 = vmatpush1.msra.mxu0 0.0
    %389 = vmatprep.subr.mxu0 0.0
    %390 = vmatpush1.msra.mxu0 0.0
    %391 = vmatprep.subr.mxu0 0.0
    %392 = vmatpush1.msra.mxu0 0.0
    %393 = vmatprep.subr.mxu0 0.0
    %394 = vmatpush1.msra.mxu0 0.0
    %395 = vmatprep.subr.mxu0 0.0
    %396 = vmatpush1.msra.mxu0 0.0
    %397 = vmatprep.subr.mxu0 0.0
    %398 = vmatpush1.msra.mxu0 0.0
    %399 = vmatprep.subr.mxu0 0.0
    %400 = vmatpush1.msra.mxu0 0.0
    %401 = vmatprep.subr.mxu0 0.0
    %402 = vmatpush1.msra.mxu0 0.0
    %403 = vmatprep.subr.mxu0 0.0
    %404 = vmatpush1.msra.mxu0 0.0
    %405 = vmatprep.subr.mxu0 0.0
    %406 = vmatpush1.msra.mxu0 0.0
    %407 = vmatprep.subr.mxu0 0.0
    %408 = vmatpush1.msra.mxu0 0.0
    %409 = vmatprep.subr.mxu0 0.0
    %410 = vmatpush1.msra.mxu0 0.0
    %411 = vmatprep.subr.mxu0 0.0
    %412 = vmatpush1.msra.mxu0 0.0
    %413 = vmatprep.subr.mxu0 0.0
    %414 = vmatpush1.msra.mxu0 0.0
    %415 = vmatprep.subr.mxu0 0.0
    %416 = vmatpush1.msra.mxu0 0.0
    %417 = vmatprep.subr.mxu0 0.0
    %418 = vmatpush1.msra.mxu0 0.0
    %419 = vmatprep.subr.mxu0 0.0
    %420 = vmatpush1.msra.mxu0 0.0
    %421 = vmatprep.subr.mxu0 0.0
    %422 = vmatpush1.msra.mxu0 0.0
    %423 = vmatprep.subr.mxu0 0.0
    %424 = vmatpush1.msra.mxu0 0.0
    %425 = vmatprep.subr.mxu0 0.0
    %426 = vmatpush1.msra.mxu0 0.0
    %427 = vmatprep.mubr.f32.mxu0 0.0
    %428 = vmatmul.mubr.f32.gmra.mrb[0].mxu0 %v361
    %v429 = vpop.f32.mrb[0].mxu0
    %v430 = vadd.f32 0.0, %v429
    %v431 = vpop.f32.mrb[0].mxu0
    %432 = vdwg.mxu0
    %433 = vrot.lane.b32.xlu0 %v167, 64
    %v434 = vpop.permute.xlu0 %433
    %v437 = vsel %vm183, %v356, 0
    %439 = vmatprep.subr.mxu0 0.0
    %440 = vmatpush1.msra.mxu0 %v434
    %441 = vmatprep.subr.mxu0 0.0
    %442 = vmatpush1.msra.mxu0 0.0
    %443 = vmatprep.subr.mxu0 0.0
    %444 = vmatpush1.msra.mxu0 0.0
    %445 = vmatprep.subr.mxu0 0.0
    %446 = vmatpush1.msra.mxu0 0.0
    %447 = vmatprep.subr.mxu0 0.0
    %448 = vmatpush1.msra.mxu0 0.0
    %449 = vmatprep.subr.mxu0 0.0
    %450 = vmatpush1.msra.mxu0 0.0
    %451 = vmatprep.subr.mxu0 0.0
    %452 = vmatpush1.msra.mxu0 0.0
    %453 = vmatprep.subr.mxu0 0.0
    %454 = vmatpush1.msra.mxu0 0.0
    %455 = vmatprep.subr.mxu0 0.0
    %456 = vmatpush1.msra.mxu0 0.0
    %457 = vmatprep.subr.mxu0 0.0
    %458 = vmatpush1.msra.mxu0 0.0
    %459 = vmatprep.subr.mxu0 0.0
    %460 = vmatpush1.msra.mxu0 0.0
    %461 = vmatprep.subr.mxu0 0.0
    %462 = vmatpush1.msra.mxu0 0.0
    %463 = vmatprep.subr.mxu0 0.0
    %464 = vmatpush1.msra.mxu0 0.0
    %465 = vmatprep.subr.mxu0 0.0
    %466 = vmatpush1.msra.mxu0 0.0
    %467 = vmatprep.subr.mxu0 0.0
    %468 = vmatpush1.msra.mxu0 0.0
    %469 = vmatprep.subr.mxu0 0.0
    %470 = vmatpush1.msra.mxu0 0.0
    %471 = vmatprep.subr.mxu0 0.0
    %472 = vmatpush1.msra.mxu0 0.0
    %473 = vmatprep.subr.mxu0 0.0
    %474 = vmatpush1.msra.mxu0 0.0
    %475 = vmatprep.subr.mxu0 0.0
    %476 = vmatpush1.msra.mxu0 0.0
    %477 = vmatprep.subr.mxu0 0.0
    %478 = vmatpush1.msra.mxu0 0.0
    %479 = vmatprep.subr.mxu0 0.0
    %480 = vmatpush1.msra.mxu0 0.0
    %481 = vmatprep.subr.mxu0 0.0
    %482 = vmatpush1.msra.mxu0 0.0
    %483 = vmatprep.subr.mxu0 0.0
    %484 = vmatpush1.msra.mxu0 0.0
    %485 = vmatprep.subr.mxu0 0.0
    %486 = vmatpush1.msra.mxu0 0.0
    %487 = vmatprep.subr.mxu0 0.0
    %488 = vmatpush1.msra.mxu0 0.0
    %489 = vmatprep.subr.mxu0 0.0
    %490 = vmatpush1.msra.mxu0 0.0
    %491 = vmatprep.subr.mxu0 0.0
    %492 = vmatpush1.msra.mxu0 0.0
    %493 = vmatprep.subr.mxu0 0.0
    %494 = vmatpush1.msra.mxu0 0.0
    %495 = vmatprep.subr.mxu0 0.0
    %496 = vmatpush1.msra.mxu0 0.0
    %497 = vmatprep.subr.mxu0 0.0
    %498 = vmatpush1.msra.mxu0 0.0
    %499 = vmatprep.subr.mxu0 0.0
    %500 = vmatpush1.msra.mxu0 0.0
    %501 = vmatprep.subr.mxu0 0.0
    %502 = vmatpush1.msra.mxu0 0.0
    %503 = vmatprep.mubr.f32.mxu0 0.0
    %504 = vmatmul.mubr.f32.gmra.mrb[0].mxu0 %v437
    %v505 = vpop.f32.mrb[0].mxu0
    %v506 = vadd.f32 0.0, %v505
    %v507 = vpop.f32.mrb[0].mxu0
    %508 = vdwg.mxu0
    %509 = vrot.lane.b32.xlu0 %v164, 120
    %v510 = vpop.permute.xlu0 %509
    %511 = vrot.lane.b32.xlu0 %v164, 88
    %v512 = vpop.permute.xlu0 %511
    %v513 = vsel %vm183, %v510, 0
    %v515 = vsel %vm183, %v512, 0
    %517 = vmatprep.subr.mxu0 0.0
    %518 = vmatpush1.xpose.msra.mxu0 %v515
    %519 = vmatprep.subr.mxu0 0.0
    %520 = vmatpush1.xpose.msra.mxu0 0.0
    %521 = vmatprep.subr.mxu0 0.0
    %522 = vmatpush1.xpose.msra.mxu0 0.0
    %523 = vmatprep.subr.mxu0 0.0
    %524 = vmatpush1.xpose.msra.mxu0 0.0
    %525 = vmatprep.subr.mxu0 0.0
    %526 = vmatpush1.xpose.msra.mxu0 0.0
    %527 = vmatprep.subr.mxu0 0.0
    %528 = vmatpush1.xpose.msra.mxu0 0.0
    %529 = vmatprep.subr.mxu0 0.0
    %530 = vmatpush1.xpose.msra.mxu0 0.0
    %531 = vmatprep.subr.mxu0 0.0
    %532 = vmatpush1.xpose.msra.mxu0 0.0
    %533 = vmatprep.subr.mxu0 0.0
    %534 = vmatpush1.xpose.msra.mxu0 0.0
    %535 = vmatprep.subr.mxu0 0.0
    %536 = vmatpush1.xpose.msra.mxu0 0.0
    %537 = vmatprep.subr.mxu0 0.0
    %538 = vmatpush1.xpose.msra.mxu0 0.0
    %539 = vmatprep.subr.mxu0 0.0
    %540 = vmatpush1.xpose.msra.mxu0 0.0
    %541 = vmatprep.subr.mxu0 0.0
    %542 = vmatpush1.xpose.msra.mxu0 0.0
    %543 = vmatprep.subr.mxu0 0.0
    %544 = vmatpush1.xpose.msra.mxu0 0.0
    %545 = vmatprep.subr.mxu0 0.0
    %546 = vmatpush1.xpose.msra.mxu0 0.0
    %547 = vmatprep.subr.mxu0 0.0
    %548 = vmatpush1.xpose.msra.mxu0 0.0
    %549 = vmatprep.subr.mxu0 0.0
    %550 = vmatpush1.xpose.msra.mxu0 0.0
    %551 = vmatprep.subr.mxu0 0.0
    %552 = vmatpush1.xpose.msra.mxu0 0.0
    %553 = vmatprep.subr.mxu0 0.0
    %554 = vmatpush1.xpose.msra.mxu0 0.0
    %555 = vmatprep.subr.mxu0 0.0
    %556 = vmatpush1.xpose.msra.mxu0 0.0
    %557 = vmatprep.subr.mxu0 0.0
    %558 = vmatpush1.xpose.msra.mxu0 0.0
    %559 = vmatprep.subr.mxu0 0.0
    %560 = vmatpush1.xpose.msra.mxu0 0.0
    %561 = vmatprep.subr.mxu0 0.0
    %562 = vmatpush1.xpose.msra.mxu0 0.0
    %563 = vmatprep.subr.mxu0 0.0
    %564 = vmatpush1.xpose.msra.mxu0 0.0
    %565 = vmatprep.subr.mxu0 0.0
    %566 = vmatpush1.xpose.msra.mxu0 0.0
    %567 = vmatprep.subr.mxu0 0.0
    %568 = vmatpush1.xpose.msra.mxu0 0.0
    %569 = vmatprep.subr.mxu0 0.0
    %570 = vmatpush1.xpose.msra.mxu0 0.0
    %571 = vmatprep.subr.mxu0 0.0
    %572 = vmatpush1.xpose.msra.mxu0 0.0
    %573 = vmatprep.subr.mxu0 0.0
    %574 = vmatpush1.xpose.msra.mxu0 0.0
    %575 = vmatprep.subr.mxu0 0.0
    %576 = vmatpush1.xpose.msra.mxu0 0.0
    %577 = vmatprep.subr.mxu0 0.0
    %578 = vmatpush1.xpose.msra.mxu0 0.0
    %579 = vmatprep.subr.mxu0 0.0
    %580 = vmatpush1.xpose.msra.mxu0 0.0
    %581 = vmatprep.mubr.f32.mxu0 0.0
    %582 = vmatmul.mubr.f32.gmra.mrb[0].mxu0 %v513
    %v583 = vpop.f32.mrb[0].mxu0
    %v584 = vadd.f32 %v173, %v583
    %v585 = vpop.f32.mrb[0].mxu0
    %586 = vdwg.mxu0
    %587 = vrot.lane.b32.xlu0 %v167, 120
    %v588 = vpop.permute.xlu0 %587
    %589 = vrot.lane.b32.xlu0 %v167, 88
    %v590 = vpop.permute.xlu0 %589
    %v591 = vsel %vm183, %v588, 0
    %v593 = vsel %vm183, %v590, 0
    %595 = vmatprep.subr.mxu0 0.0
    %596 = vmatpush1.xpose.msra.mxu0 %v593
    %597 = vmatprep.subr.mxu0 0.0
    %598 = vmatpush1.xpose.msra.mxu0 0.0
    %599 = vmatprep.subr.mxu0 0.0
    %600 = vmatpush1.xpose.msra.mxu0 0.0
    %601 = vmatprep.subr.mxu0 0.0
    %602 = vmatpush1.xpose.msra.mxu0 0.0
    %603 = vmatprep.subr.mxu0 0.0
    %604 = vmatpush1.xpose.msra.mxu0 0.0
    %605 = vmatprep.subr.mxu0 0.0
    %606 = vmatpush1.xpose.msra.mxu0 0.0
    %607 = vmatprep.subr.mxu0 0.0
    %608 = vmatpush1.xpose.msra.mxu0 0.0
    %609 = vmatprep.subr.mxu0 0.0
    %610 = vmatpush1.xpose.msra.mxu0 0.0
    %611 = vmatprep.subr.mxu0 0.0
    %612 = vmatpush1.xpose.msra.mxu0 0.0
    %613 = vmatprep.subr.mxu0 0.0
    %614 = vmatpush1.xpose.msra.mxu0 0.0
    %615 = vmatprep.subr.mxu0 0.0
    %616 = vmatpush1.xpose.msra.mxu0 0.0
    %617 = vmatprep.subr.mxu0 0.0
    %618 = vmatpush1.xpose.msra.mxu0 0.0
    %619 = vmatprep.subr.mxu0 0.0
    %620 = vmatpush1.xpose.msra.mxu0 0.0
    %621 = vmatprep.subr.mxu0 0.0
    %622 = vmatpush1.xpose.msra.mxu0 0.0
    %623 = vmatprep.subr.mxu0 0.0
    %624 = vmatpush1.xpose.msra.mxu0 0.0
    %625 = vmatprep.subr.mxu0 0.0
    %626 = vmatpush1.xpose.msra.mxu0 0.0
    %627 = vmatprep.subr.mxu0 0.0
    %628 = vmatpush1.xpose.msra.mxu0 0.0
    %629 = vmatprep.subr.mxu0 0.0
    %630 = vmatpush1.xpose.msra.mxu0 0.0
    %631 = vmatprep.subr.mxu0 0.0
    %632 = vmatpush1.xpose.msra.mxu0 0.0
    %633 = vmatprep.subr.mxu0 0.0
    %634 = vmatpush1.xpose.msra.mxu0 0.0
    %635 = vmatprep.subr.mxu0 0.0
    %636 = vmatpush1.xpose.msra.mxu0 0.0
    %637 = vmatprep.subr.mxu0 0.0
    %638 = vmatpush1.xpose.msra.mxu0 0.0
    %639 = vmatprep.subr.mxu0 0.0
    %640 = vmatpush1.xpose.msra.mxu0 0.0
    %641 = vmatprep.subr.mxu0 0.0
    %642 = vmatpush1.xpose.msra.mxu0 0.0
    %643 = vmatprep.subr.mxu0 0.0
    %644 = vmatpush1.xpose.msra.mxu0 0.0
    %645 = vmatprep.subr.mxu0 0.0
    %646 = vmatpush1.xpose.msra.mxu0 0.0
    %647 = vmatprep.subr.mxu0 0.0
    %648 = vmatpush1.xpose.msra.mxu0 0.0
    %649 = vmatprep.subr.mxu0 0.0
    %650 = vmatpush1.xpose.msra.mxu0 0.0
    %651 = vmatprep.subr.mxu0 0.0
    %652 = vmatpush1.xpose.msra.mxu0 0.0
    %653 = vmatprep.subr.mxu0 0.0
    %654 = vmatpush1.xpose.msra.mxu0 0.0
    %655 = vmatprep.subr.mxu0 0.0
    %656 = vmatpush1.xpose.msra.mxu0 0.0
    %657 = vmatprep.subr.mxu0 0.0
    %658 = vmatpush1.xpose.msra.mxu0 0.0
    %659 = vmatprep.mubr.f32.mxu0 0.0
    %660 = vmatmul.mubr.f32.gmra.mrb[0].mxu0 %v591
    %v661 = vpop.f32.mrb[0].mxu0
    %v662 = vadd.f32 %v177, %v661
    %v663 = vpop.f32.mrb[0].mxu0
    %664 = vdwg.mxu0
    %v665 = vsel %vm183, %v584, -inf
    %666 = vmax.xlane.f32.xlu0 %v665
    %v667 = vpop.xlane.xlu0 %666
    %v668 = vsel %vm183, %v662, -inf
    %669 = vmax.xlane.f32.xlu0 %v668
    %v670 = vpop.xlane.xlu0 %669
    %v671 = vsub.f32 %v584, %v667
    %v672 = vsub.f32 %v662, %v670
    %v673 = vmul.f32 %v671, 1.442695
    %v674 = vpow.pop %v673
    %v675 = vmul.f32 %v672, 1.442695
    %v676 = vpow.pop %v675
    %v677 = vsel %vm183, %v674, 0.0
    %678 = vadd.xlane.f32.xlu0 %v677
    %v679 = vpop.xlane.xlu0 %678
    %v680 = vsel %vm183, %v676, 0.0
    %681 = vadd.xlane.f32.xlu0 %v680
    %v682 = vpop.xlane.xlu0 %681
    %v683 = vrcp.pop %v679
    %v684 = vrcp.pop %v682
    %v685 = vmul.f32 %v674, %v683
    %v686 = vmul.f32 %v676, %v684
    %687 = vrot.lane.b32.xlu0 %v164, 56
    %v688 = vpop.permute.xlu0 %687
    %v691 = vsel %vm183, %v685, 0
    %693 = vmatprep.subr.mxu0 0.0
    %694 = vmatpush1.msra.mxu0 %v688
    %695 = vmatprep.subr.mxu0 0.0
    %696 = vmatpush1.msra.mxu0 0.0
    %697 = vmatprep.subr.mxu0 0.0
    %698 = vmatpush1.msra.mxu0 0.0
    %699 = vmatprep.subr.mxu0 0.0
    %700 = vmatpush1.msra.mxu0 0.0
    %701 = vmatprep.subr.mxu0 0.0
    %702 = vmatpush1.msra.mxu0 0.0
    %703 = vmatprep.subr.mxu0 0.0
    %704 = vmatpush1.msra.mxu0 0.0
    %705 = vmatprep.subr.mxu0 0.0
    %706 = vmatpush1.msra.mxu0 0.0
    %707 = vmatprep.subr.mxu0 0.0
    %708 = vmatpush1.msra.mxu0 0.0
    %709 = vmatprep.subr.mxu0 0.0
    %710 = vmatpush1.msra.mxu0 0.0
    %711 = vmatprep.subr.mxu0 0.0
    %712 = vmatpush1.msra.mxu0 0.0
    %713 = vmatprep.subr.mxu0 0.0
    %714 = vmatpush1.msra.mxu0 0.0
    %715 = vmatprep.subr.mxu0 0.0
    %716 = vmatpush1.msra.mxu0 0.0
    %717 = vmatprep.subr.mxu0 0.0
    %718 = vmatpush1.msra.mxu0 0.0
    %719 = vmatprep.subr.mxu0 0.0
    %720 = vmatpush1.msra.mxu0 0.0
    %721 = vmatprep.subr.mxu0 0.0
    %722 = vmatpush1.msra.mxu0 0.0
    %723 = vmatprep.subr.mxu0 0.0
    %724 = vmatpush1.msra.mxu0 0.0
    %725 = vmatprep.subr.mxu0 0.0
    %726 = vmatpush1.msra.mxu0 0.0
    %727 = vmatprep.subr.mxu0 0.0
    %728 = vmatpush1.msra.mxu0 0.0
    %729 = vmatprep.subr.mxu0 0.0
    %730 = vmatpush1.msra.mxu0 0.0
    %731 = vmatprep.subr.mxu0 0.0
    %732 = vmatpush1.msra.mxu0 0.0
    %733 = vmatprep.subr.mxu0 0.0
    %734 = vmatpush1.msra.mxu0 0.0
    %735 = vmatprep.subr.mxu0 0.0
    %736 = vmatpush1.msra.mxu0 0.0
    %737 = vmatprep.subr.mxu0 0.0
    %738 = vmatpush1.msra.mxu0 0.0
    %739 = vmatprep.subr.mxu0 0.0
    %740 = vmatpush1.msra.mxu0 0.0
    %741 = vmatprep.subr.mxu0 0.0
    %742 = vmatpush1.msra.mxu0 0.0
    %743 = vmatprep.subr.mxu0 0.0
    %744 = vmatpush1.msra.mxu0 0.0
    %745 = vmatprep.subr.mxu0 0.0
    %746 = vmatpush1.msra.mxu0 0.0
    %747 = vmatprep.subr.mxu0 0.0
    %748 = vmatpush1.msra.mxu0 0.0
    %749 = vmatprep.subr.mxu0 0.0
    %750 = vmatpush1.msra.mxu0 0.0
    %751 = vmatprep.subr.mxu0 0.0
    %752 = vmatpush1.msra.mxu0 0.0
    %753 = vmatprep.subr.mxu0 0.0
    %754 = vmatpush1.msra.mxu0 0.0
    %755 = vmatprep.subr.mxu0 0.0
    %756 = vmatpush1.msra.mxu0 0.0
    %757 = vmatprep.mubr.f32.mxu0 0.0
    %758 = vmatmul.mubr.f32.gmra.mrb[0].mxu0 %v691
    %v759 = vpop.f32.mrb[0].mxu0
    %v760 = vadd.f32 0.0, %v759
    %v761 = vpop.f32.mrb[0].mxu0
    %762 = vdwg.mxu0
    %763 = vrot.lane.b32.xlu0 %v167, 56
    %v764 = vpop.permute.xlu0 %763
    %v767 = vsel %vm183, %v686, 0
    %769 = vmatprep.subr.mxu0 0.0
    %770 = vmatpush1.msra.mxu0 %v764
    %771 = vmatprep.subr.mxu0 0.0
    %772 = vmatpush1.msra.mxu0 0.0
    %773 = vmatprep.subr.mxu0 0.0
    %774 = vmatpush1.msra.mxu0 0.0
    %775 = vmatprep.subr.mxu0 0.0
    %776 = vmatpush1.msra.mxu0 0.0
    %777 = vmatprep.subr.mxu0 0.0
    %778 = vmatpush1.msra.mxu0 0.0
    %779 = vmatprep.subr.mxu0 0.0
    %780 = vmatpush1.msra.mxu0 0.0
    %781 = vmatprep.subr.mxu0 0.0
    %782 = vmatpush1.msra.mxu0 0.0
    %783 = vmatprep.subr.mxu0 0.0
    %784 = vmatpush1.msra.mxu0 0.0
    %785 = vmatprep.subr.mxu0 0.0
    %786 = vmatpush1.msra.mxu0 0.0
    %787 = vmatprep.subr.mxu0 0.0
    %788 = vmatpush1.msra.mxu0 0.0
    %789 = vmatprep.subr.mxu0 0.0
    %790 = vmatpush1.msra.mxu0 0.0
    %791 = vmatprep.subr.mxu0 0.0
    %792 = vmatpush1.msra.mxu0 0.0
    %793 = vmatprep.subr.mxu0 0.0
    %794 = vmatpush1.msra.mxu0 0.0
    %795 = vmatprep.subr.mxu0 0.0
    %796 = vmatpush1.msra.mxu0 0.0
    %797 = vmatprep.subr.mxu0 0.0
    %798 = vmatpush1.msra.mxu0 0.0
    %799 = vmatprep.subr.mxu0 0.0
    %800 = vmatpush1.msra.mxu0 0.0
    %801 = vmatprep.subr.mxu0 0.0
    %802 = vmatpush1.msra.mxu0 0.0
    %803 = vmatprep.subr.mxu0 0.0
    %804 = vmatpush1.msra.mxu0 0.0
    %805 = vmatprep.subr.mxu0 0.0
    %806 = vmatpush1.msra.mxu0 0.0
    %807 = vmatprep.subr.mxu0 0.0
    %808 = vmatpush1.msra.mxu0 0.0
    %809 = vmatprep.subr.mxu0 0.0
    %810 = vmatpush1.msra.mxu0 0.0
    %811 = vmatprep.subr.mxu0 0.0
    %812 = vmatpush1.msra.mxu0 0.0
    %813 = vmatprep.subr.mxu0 0.0
    %814 = vmatpush1.msra.mxu0 0.0
    %815 = vmatprep.subr.mxu0 0.0
    %816 = vmatpush1.msra.mxu0 0.0
    %817 = vmatprep.subr.mxu0 0.0
    %818 = vmatpush1.msra.mxu0 0.0
    %819 = vmatprep.subr.mxu0 0.0
    %820 = vmatpush1.msra.mxu0 0.0
    %821 = vmatprep.subr.mxu0 0.0
    %822 = vmatpush1.msra.mxu0 0.0
    %823 = vmatprep.subr.mxu0 0.0
    %824 = vmatpush1.msra.mxu0 0.0
    %825 = vmatprep.subr.mxu0 0.0
    %826 = vmatpush1.msra.mxu0 0.0
    %827 = vmatprep.subr.mxu0 0.0
    %828 = vmatpush1.msra.mxu0 0.0
    %829 = vmatprep.subr.mxu0 0.0
    %830 = vmatpush1.msra.mxu0 0.0
    %831 = vmatprep.subr.mxu0 0.0
    %832 = vmatpush1.msra.mxu0 0.0
    %833 = vmatprep.mubr.f32.mxu0 0.0
    %834 = vmatmul.mubr.f32.gmra.mrb[0].mxu0 %v767
    %v835 = vpop.f32.mrb[0].mxu0
    %v836 = vadd.f32 0.0, %v835
    %v837 = vpop.f32.mrb[0].mxu0
    %838 = vdwg.mxu0
    %839 = vrot.lane.b32.xlu0 %v164, 112
    %v840 = vpop.permute.xlu0 %839
    %841 = vrot.lane.b32.xlu0 %v164, 80
    %v842 = vpop.permute.xlu0 %841
    %v843 = vsel %vm183, %v840, 0
    %v845 = vsel %vm183, %v842, 0
    %847 = vmatprep.subr.mxu0 0.0
    %848 = vmatpush1.xpose.msra.mxu0 %v845
    %849 = vmatprep.subr.mxu0 0.0
    %850 = vmatpush1.xpose.msra.mxu0 0.0
    %851 = vmatprep.subr.mxu0 0.0
    %852 = vmatpush1.xpose.msra.mxu0 0.0
    %853 = vmatprep.subr.mxu0 0.0
    %854 = vmatpush1.xpose.msra.mxu0 0.0
    %855 = vmatprep.subr.mxu0 0.0
    %856 = vmatpush1.xpose.msra.mxu0 0.0
    %857 = vmatprep.subr.mxu0 0.0
    %858 = vmatpush1.xpose.msra.mxu0 0.0
    %859 = vmatprep.subr.mxu0 0.0
    %860 = vmatpush1.xpose.msra.mxu0 0.0
    %861 = vmatprep.subr.mxu0 0.0
    %862 = vmatpush1.xpose.msra.mxu0 0.0
    %863 = vmatprep.subr.mxu0 0.0
    %864 = vmatpush1.xpose.msra.mxu0 0.0
    %865 = vmatprep.subr.mxu0 0.0
    %866 = vmatpush1.xpose.msra.mxu0 0.0
    %867 = vmatprep.subr.mxu0 0.0
    %868 = vmatpush1.xpose.msra.mxu0 0.0
    %869 = vmatprep.subr.mxu0 0.0
    %870 = vmatpush1.xpose.msra.mxu0 0.0
    %871 = vmatprep.subr.mxu0 0.0
    %872 = vmatpush1.xpose.msra.mxu0 0.0
    %873 = vmatprep.subr.mxu0 0.0
    %874 = vmatpush1.xpose.msra.mxu0 0.0
    %875 = vmatprep.subr.mxu0 0.0
    %876 = vmatpush1.xpose.msra.mxu0 0.0
    %877 = vmatprep.subr.mxu0 0.0
    %878 = vmatpush1.xpose.msra.mxu0 0.0
    %879 = vmatprep.subr.mxu0 0.0
    %880 = vmatpush1.xpose.msra.mxu0 0.0
    %881 = vmatprep.subr.mxu0 0.0
    %882 = vmatpush1.xpose.msra.mxu0 0.0
    %883 = vmatprep.subr.mxu0 0.0
    %884 = vmatpush1.xpose.msra.mxu0 0.0
    %885 = vmatprep.subr.mxu0 0.0
    %886 = vmatpush1.xpose.msra.mxu0 0.0
    %887 = vmatprep.subr.mxu0 0.0
    %888 = vmatpush1.xpose.msra.mxu0 0.0
    %889 = vmatprep.subr.mxu0 0.0
    %890 = vmatpush1.xpose.msra.mxu0 0.0
    %891 = vmatprep.subr.mxu0 0.0
    %892 = vmatpush1.xpose.msra.mxu0 0.0
    %893 = vmatprep.subr.mxu0 0.0
    %894 = vmatpush1.xpose.msra.mxu0 0.0
    %895 = vmatprep.subr.mxu0 0.0
    %896 = vmatpush1.xpose.msra.mxu0 0.0
    %897 = vmatprep.subr.mxu0 0.0
    %898 = vmatpush1.xpose.msra.mxu0 0.0
    %899 = vmatprep.subr.mxu0 0.0
    %900 = vmatpush1.xpose.msra.mxu0 0.0
    %901 = vmatprep.subr.mxu0 0.0
    %902 = vmatpush1.xpose.msra.mxu0 0.0
    %903 = vmatprep.subr.mxu0 0.0
    %904 = vmatpush1.xpose.msra.mxu0 0.0
    %905 = vmatprep.subr.mxu0 0.0
    %906 = vmatpush1.xpose.msra.mxu0 0.0
    %907 = vmatprep.subr.mxu0 0.0
    %908 = vmatpush1.xpose.msra.mxu0 0.0
    %909 = vmatprep.subr.mxu0 0.0
    %910 = vmatpush1.xpose.msra.mxu0 0.0
    %911 = vmatprep.mubr.f32.mxu0 0.0
    %912 = vmatmul.mubr.f32.gmra.mrb[0].mxu0 %v843
    %v913 = vpop.f32.mrb[0].mxu0
    %v914 = vadd.f32 %v173, %v913
    %v915 = vpop.f32.mrb[0].mxu0
    %916 = vdwg.mxu0
    %917 = vrot.lane.b32.xlu0 %v167, 112
    %v918 = vpop.permute.xlu0 %917
    %919 = vrot.lane.b32.xlu0 %v167, 80
    %v920 = vpop.permute.xlu0 %919
    %v921 = vsel %vm183, %v918, 0
    %v923 = vsel %vm183, %v920, 0
    %925 = vmatprep.subr.mxu0 0.0
    %926 = vmatpush1.xpose.msra.mxu0 %v923
    %927 = vmatprep.subr.mxu0 0.0
    %928 = vmatpush1.xpose.msra.mxu0 0.0
    %929 = vmatprep.subr.mxu0 0.0
    %930 = vmatpush1.xpose.msra.mxu0 0.0
    %931 = vmatprep.subr.mxu0 0.0
    %932 = vmatpush1.xpose.msra.mxu0 0.0
    %933 = vmatprep.subr.mxu0 0.0
    %934 = vmatpush1.xpose.msra.mxu0 0.0
    %935 = vmatprep.subr.mxu0 0.0
    %936 = vmatpush1.xpose.msra.mxu0 0.0
    %937 = vmatprep.subr.mxu0 0.0
    %938 = vmatpush1.xpose.msra.mxu0 0.0
    %939 = vmatprep.subr.mxu0 0.0
    %940 = vmatpush1.xpose.msra.mxu0 0.0
    %941 = vmatprep.subr.mxu0 0.0
    %942 = vmatpush1.xpose.msra.mxu0 0.0
    %943 = vmatprep.subr.mxu0 0.0
    %944 = vmatpush1.xpose.msra.mxu0 0.0
    %945 = vmatprep.subr.mxu0 0.0
    %946 = vmatpush1.xpose.msra.mxu0 0.0
    %947 = vmatprep.subr.mxu0 0.0
    %948 = vmatpush1.xpose.msra.mxu0 0.0
    %949 = vmatprep.subr.mxu0 0.0
    %950 = vmatpush1.xpose.msra.mxu0 0.0
    %951 = vmatprep.subr.mxu0 0.0
    %952 = vmatpush1.xpose.msra.mxu0 0.0
    %953 = vmatprep.subr.mxu0 0.0
    %954 = vmatpush1.xpose.msra.mxu0 0.0
    %955 = vmatprep.subr.mxu0 0.0
    %956 = vmatpush1.xpose.msra.mxu0 0.0
    %957 = vmatprep.subr.mxu0 0.0
    %958 = vmatpush1.xpose.msra.mxu0 0.0
    %959 = vmatprep.subr.mxu0 0.0
    %960 = vmatpush1.xpose.msra.mxu0 0.0
    %961 = vmatprep.subr.mxu0 0.0
    %962 = vmatpush1.xpose.msra.mxu0 0.0
    %963 = vmatprep.subr.mxu0 0.0
    %964 = vmatpush1.xpose.msra.mxu0 0.0
    %965 = vmatprep.subr.mxu0 0.0
    %966 = vmatpush1.xpose.msra.mxu0 0.0
    %967 = vmatprep.subr.mxu0 0.0
    %968 = vmatpush1.xpose.msra.mxu0 0.0
    %969 = vmatprep.subr.mxu0 0.0
    %970 = vmatpush1.xpose.msra.mxu0 0.0
    %971 = vmatprep.subr.mxu0 0.0
    %972 = vmatpush1.xpose.msra.mxu0 0.0
    %973 = vmatprep.subr.mxu0 0.0
    %974 = vmatpush1.xpose.msra.mxu0 0.0
    %975 = vmatprep.subr.mxu0 0.0
    %976 = vmatpush1.xpose.msra.mxu0 0.0
    %977 = vmatprep.subr.mxu0 0.0
    %978 = vmatpush1.xpose.msra.mxu0 0.0
    %979 = vmatprep.subr.mxu0 0.0
    %980 = vmatpush1.xpose.msra.mxu0 0.0
    %981 = vmatprep.subr.mxu0 0.0
    %982 = vmatpush1.xpose.msra.mxu0 0.0
    %983 = vmatprep.subr.mxu0 0.0
    %984 = vmatpush1.xpose.msra.mxu0 0.0
    %985 = vmatprep.subr.mxu0 0.0
    %986 = vmatpush1.xpose.msra.mxu0 0.0
    %987 = vmatprep.subr.mxu0 0.0
    %988 = vmatpush1.xpose.msra.mxu0 0.0
    %989 = vmatprep.mubr.f32.mxu0 0.0
    %990 = vmatmul.mubr.f32.gmra.mrb[0].mxu0 %v921
    %v991 = vpop.f32.mrb[0].mxu0
    %v992 = vadd.f32 %v177, %v991
    %v993 = vpop.f32.mrb[0].mxu0
    %994 = vdwg.mxu0
    %v995 = vsel %vm183, %v914, -inf
    %996 = vmax.xlane.f32.xlu0 %v995
    %v997 = vpop.xlane.xlu0 %996
    %v998 = vsel %vm183, %v992, -inf
    %999 = vmax.xlane.f32.xlu0 %v998
    %v1000 = vpop.xlane.xlu0 %999
    %v1001 = vsub.f32 %v914, %v997
    %v1002 = vsub.f32 %v992, %v1000
    %v1003 = vmul.f32 %v1001, 1.442695
    %v1004 = vpow.pop %v1003
    %v1005 = vmul.f32 %v1002, 1.442695
    %v1006 = vpow.pop %v1005
    %v1007 = vsel %vm183, %v1004, 0.0
    %1008 = vadd.xlane.f32.xlu0 %v1007
    %v1009 = vpop.xlane.xlu0 %1008
    %v1010 = vsel %vm183, %v1006, 0.0
    %1011 = vadd.xlane.f32.xlu0 %v1010
    %v1012 = vpop.xlane.xlu0 %1011
    %v1013 = vrcp.pop %v1009
    %v1014 = vrcp.pop %v1012
    %v1015 = vmul.f32 %v1004, %v1013
    %v1016 = vmul.f32 %v1006, %v1014
    %1017 = vrot.lane.b32.xlu0 %v164, 48
    %v1018 = vpop.permute.xlu0 %1017
    %v1021 = vsel %vm183, %v1015, 0
    %1023 = vmatprep.subr.mxu0 0.0
    %1024 = vmatpush1.msra.mxu0 %v1018
    %1025 = vmatprep.subr.mxu0 0.0
    %1026 = vmatpush1.msra.mxu0 0.0
    %1027 = vmatprep.subr.mxu0 0.0
    %1028 = vmatpush1.msra.mxu0 0.0
    %1029 = vmatprep.subr.mxu0 0.0
    %1030 = vmatpush1.msra.mxu0 0.0
    %1031 = vmatprep.subr.mxu0 0.0
    %1032 = vmatpush1.msra.mxu0 0.0
    %1033 = vmatprep.subr.mxu0 0.0
    %1034 = vmatpush1.msra.mxu0 0.0
    %1035 = vmatprep.subr.mxu0 0.0
    %1036 = vmatpush1.msra.mxu0 0.0
    %1037 = vmatprep.subr.mxu0 0.0
    %1038 = vmatpush1.msra.mxu0 0.0
    %1039 = vmatprep.subr.mxu0 0.0
    %1040 = vmatpush1.msra.mxu0 0.0
    %1041 = vmatprep.subr.mxu0 0.0
    %1042 = vmatpush1.msra.mxu0 0.0
    %1043 = vmatprep.subr.mxu0 0.0
    %1044 = vmatpush1.msra.mxu0 0.0
    %1045 = vmatprep.subr.mxu0 0.0
    %1046 = vmatpush1.msra.mxu0 0.0
    %1047 = vmatprep.subr.mxu0 0.0
    %1048 = vmatpush1.msra.mxu0 0.0
    %1049 = vmatprep.subr.mxu0 0.0
    %1050 = vmatpush1.msra.mxu0 0.0
    %1051 = vmatprep.subr.mxu0 0.0
    %1052 = vmatpush1.msra.mxu0 0.0
    %1053 = vmatprep.subr.mxu0 0.0
    %1054 = vmatpush1.msra.mxu0 0.0
    %1055 = vmatprep.subr.mxu0 0.0
    %1056 = vmatpush1.msra.mxu0 0.0
    %1057 = vmatprep.subr.mxu0 0.0
    %1058 = vmatpush1.msra.mxu0 0.0
    %1059 = vmatprep.subr.mxu0 0.0
    %1060 = vmatpush1.msra.mxu0 0.0
    %1061 = vmatprep.subr.mxu0 0.0
    %1062 = vmatpush1.msra.mxu0 0.0
    %1063 = vmatprep.subr.mxu0 0.0
    %1064 = vmatpush1.msra.mxu0 0.0
    %1065 = vmatprep.subr.mxu0 0.0
    %1066 = vmatpush1.msra.mxu0 0.0
    %1067 = vmatprep.subr.mxu0 0.0
    %1068 = vmatpush1.msra.mxu0 0.0
    %1069 = vmatprep.subr.mxu0 0.0
    %1070 = vmatpush1.msra.mxu0 0.0
    %1071 = vmatprep.subr.mxu0 0.0
    %1072 = vmatpush1.msra.mxu0 0.0
    %1073 = vmatprep.subr.mxu0 0.0
    %1074 = vmatpush1.msra.mxu0 0.0
    %1075 = vmatprep.subr.mxu0 0.0
    %1076 = vmatpush1.msra.mxu0 0.0
    %1077 = vmatprep.subr.mxu0 0.0
    %1078 = vmatpush1.msra.mxu0 0.0
    %1079 = vmatprep.subr.mxu0 0.0
    %1080 = vmatpush1.msra.mxu0 0.0
    %1081 = vmatprep.subr.mxu0 0.0
    %1082 = vmatpush1.msra.mxu0 0.0
    %1083 = vmatprep.subr.mxu0 0.0
    %1084 = vmatpush1.msra.mxu0 0.0
    %1085 = vmatprep.subr.mxu0 0.0
    %1086 = vmatpush1.msra.mxu0 0.0
    %1087 = vmatprep.mubr.f32.mxu0 0.0
    %1088 = vmatmul.mubr.f32.gmra.mrb[0].mxu0 %v1021
    %v1089 = vpop.f32.mrb[0].mxu0
    %v1090 = vadd.f32 0.0, %v1089
    %v1091 = vpop.f32.mrb[0].mxu0
    %1092 = vdwg.mxu0
    %1093 = vrot.lane.b32.xlu0 %v167, 48
    %v1094 = vpop.permute.xlu0 %1093
    %v1097 = vsel %vm183, %v1016, 0
    %1099 = vmatprep.subr.mxu0 0.0
    %1100 = vmatpush1.msra.mxu0 %v1094
    %1101 = vmatprep.subr.mxu0 0.0
    %1102 = vmatpush1.msra.mxu0 0.0
    %1103 = vmatprep.subr.mxu0 0.0
    %1104 = vmatpush1.msra.mxu0 0.0
    %1105 = vmatprep.subr.mxu0 0.0
    %1106 = vmatpush1.msra.mxu0 0.0
    %1107 = vmatprep.subr.mxu0 0.0
    %1108 = vmatpush1.msra.mxu0 0.0
    %1109 = vmatprep.subr.mxu0 0.0
    %1110 = vmatpush1.msra.mxu0 0.0
    %1111 = vmatprep.subr.mxu0 0.0
    %1112 = vmatpush1.msra.mxu0 0.0
    %1113 = vmatprep.subr.mxu0 0.0
    %1114 = vmatpush1.msra.mxu0 0.0
    %1115 = vmatprep.subr.mxu0 0.0
    %1116 = vmatpush1.msra.mxu0 0.0
    %1117 = vmatprep.subr.mxu0 0.0
    %1118 = vmatpush1.msra.mxu0 0.0
    %1119 = vmatprep.subr.mxu0 0.0
    %1120 = vmatpush1.msra.mxu0 0.0
    %1121 = vmatprep.subr.mxu0 0.0
    %1122 = vmatpush1.msra.mxu0 0.0
    %1123 = vmatprep.subr.mxu0 0.0
    %1124 = vmatpush1.msra.mxu0 0.0
    %1125 = vmatprep.subr.mxu0 0.0
    %1126 = vmatpush1.msra.mxu0 0.0
    %1127 = vmatprep.subr.mxu0 0.0
    %1128 = vmatpush1.msra.mxu0 0.0
    %1129 = vmatprep.subr.mxu0 0.0
    %1130 = vmatpush1.msra.mxu0 0.0
    %1131 = vmatprep.subr.mxu0 0.0
    %1132 = vmatpush1.msra.mxu0 0.0
    %1133 = vmatprep.subr.mxu0 0.0
    %1134 = vmatpush1.msra.mxu0 0.0
    %1135 = vmatprep.subr.mxu0 0.0
    %1136 = vmatpush1.msra.mxu0 0.0
    %1137 = vmatprep.subr.mxu0 0.0
    %1138 = vmatpush1.msra.mxu0 0.0
    %1139 = vmatprep.subr.mxu0 0.0
    %1140 = vmatpush1.msra.mxu0 0.0
    %1141 = vmatprep.subr.mxu0 0.0
    %1142 = vmatpush1.msra.mxu0 0.0
    %1143 = vmatprep.subr.mxu0 0.0
    %1144 = vmatpush1.msra.mxu0 0.0
    %1145 = vmatprep.subr.mxu0 0.0
    %1146 = vmatpush1.msra.mxu0 0.0
    %1147 = vmatprep.subr.mxu0 0.0
    %1148 = vmatpush1.msra.mxu0 0.0
    %1149 = vmatprep.subr.mxu0 0.0
    %1150 = vmatpush1.msra.mxu0 0.0
    %1151 = vmatprep.subr.mxu0 0.0
    %1152 = vmatpush1.msra.mxu0 0.0
    %1153 = vmatprep.subr.mxu0 0.0
    %1154 = vmatpush1.msra.mxu0 0.0
    %1155 = vmatprep.subr.mxu0 0.0
    %1156 = vmatpush1.msra.mxu0 0.0
    %1157 = vmatprep.subr.mxu0 0.0
    %1158 = vmatpush1.msra.mxu0 0.0
    %1159 = vmatprep.subr.mxu0 0.0
    %1160 = vmatpush1.msra.mxu0 0.0
    %1161 = vmatprep.subr.mxu0 0.0
    %1162 = vmatpush1.msra.mxu0 0.0
    %1163 = vmatprep.mubr.f32.mxu0 0.0
    %1164 = vmatmul.mubr.f32.gmra.mrb[0].mxu0 %v1097
    %v1165 = vpop.f32.mrb[0].mxu0
    %v1166 = vadd.f32 0.0, %v1165
    %v1167 = vpop.f32.mrb[0].mxu0
    %1168 = vdwg.mxu0
    %1169 = vrot.lane.b32.xlu0 %v164, 104
    %v1170 = vpop.permute.xlu0 %1169
    %1171 = vrot.lane.b32.xlu0 %v164, 72
    %v1172 = vpop.permute.xlu0 %1171
    %v1173 = vsel %vm183, %v1170, 0
    %v1175 = vsel %vm183, %v1172, 0
    %1177 = vmatprep.subr.mxu0 0.0
    %1178 = vmatpush1.xpose.msra.mxu0 %v1175
    %1179 = vmatprep.subr.mxu0 0.0
    %1180 = vmatpush1.xpose.msra.mxu0 0.0
    %1181 = vmatprep.subr.mxu0 0.0
    %1182 = vmatpush1.xpose.msra.mxu0 0.0
    %1183 = vmatprep.subr.mxu0 0.0
    %1184 = vmatpush1.xpose.msra.mxu0 0.0
    %1185 = vmatprep.subr.mxu0 0.0
    %1186 = vmatpush1.xpose.msra.mxu0 0.0
    %1187 = vmatprep.subr.mxu0 0.0
    %1188 = vmatpush1.xpose.msra.mxu0 0.0
    %1189 = vmatprep.subr.mxu0 0.0
    %1190 = vmatpush1.xpose.msra.mxu0 0.0
    %1191 = vmatprep.subr.mxu0 0.0
    %1192 = vmatpush1.xpose.msra.mxu0 0.0
    %1193 = vmatprep.subr.mxu0 0.0
    %1194 = vmatpush1.xpose.msra.mxu0 0.0
    %1195 = vmatprep.subr.mxu0 0.0
    %1196 = vmatpush1.xpose.msra.mxu0 0.0
    %1197 = vmatprep.subr.mxu0 0.0
    %1198 = vmatpush1.xpose.msra.mxu0 0.0
    %1199 = vmatprep.subr.mxu0 0.0
    %1200 = vmatpush1.xpose.msra.mxu0 0.0
    %1201 = vmatprep.subr.mxu0 0.0
    %1202 = vmatpush1.xpose.msra.mxu0 0.0
    %1203 = vmatprep.subr.mxu0 0.0
    %1204 = vmatpush1.xpose.msra.mxu0 0.0
    %1205 = vmatprep.subr.mxu0 0.0
    %1206 = vmatpush1.xpose.msra.mxu0 0.0
    %1207 = vmatprep.subr.mxu0 0.0
    %1208 = vmatpush1.xpose.msra.mxu0 0.0
    %1209 = vmatprep.subr.mxu0 0.0
    %1210 = vmatpush1.xpose.msra.mxu0 0.0
    %1211 = vmatprep.subr.mxu0 0.0
    %1212 = vmatpush1.xpose.msra.mxu0 0.0
    %1213 = vmatprep.subr.mxu0 0.0
    %1214 = vmatpush1.xpose.msra.mxu0 0.0
    %1215 = vmatprep.subr.mxu0 0.0
    %1216 = vmatpush1.xpose.msra.mxu0 0.0
    %1217 = vmatprep.subr.mxu0 0.0
    %1218 = vmatpush1.xpose.msra.mxu0 0.0
    %1219 = vmatprep.subr.mxu0 0.0
    %1220 = vmatpush1.xpose.msra.mxu0 0.0
    %1221 = vmatprep.subr.mxu0 0.0
    %1222 = vmatpush1.xpose.msra.mxu0 0.0
    %1223 = vmatprep.subr.mxu0 0.0
    %1224 = vmatpush1.xpose.msra.mxu0 0.0
    %1225 = vmatprep.subr.mxu0 0.0
    %1226 = vmatpush1.xpose.msra.mxu0 0.0
    %1227 = vmatprep.subr.mxu0 0.0
    %1228 = vmatpush1.xpose.msra.mxu0 0.0
    %1229 = vmatprep.subr.mxu0 0.0
    %1230 = vmatpush1.xpose.msra.mxu0 0.0
    %1231 = vmatprep.subr.mxu0 0.0
    %1232 = vmatpush1.xpose.msra.mxu0 0.0
    %1233 = vmatprep.subr.mxu0 0.0
    %1234 = vmatpush1.xpose.msra.mxu0 0.0
    %1235 = vmatprep.subr.mxu0 0.0
    %1236 = vmatpush1.xpose.msra.mxu0 0.0
    %1237 = vmatprep.subr.mxu0 0.0
    %1238 = vmatpush1.xpose.msra.mxu0 0.0
    %1239 = vmatprep.subr.mxu0 0.0
    %1240 = vmatpush1.xpose.msra.mxu0 0.0
    %1241 = vmatprep.mubr.f32.mxu0 0.0
    %1242 = vmatmul.mubr.f32.gmra.mrb[0].mxu0 %v1173
    %v1243 = vpop.f32.mrb[0].mxu0
    %v1244 = vadd.f32 %v173, %v1243
    %v1245 = vpop.f32.mrb[0].mxu0
    %1246 = vdwg.mxu0
    %1247 = vrot.lane.b32.xlu0 %v167, 104
    %v1248 = vpop.permute.xlu0 %1247
    %1249 = vrot.lane.b32.xlu0 %v167, 72
    %v1250 = vpop.permute.xlu0 %1249
    %v1251 = vsel %vm183, %v1248, 0
    %v1253 = vsel %vm183, %v1250, 0
    %1255 = vmatprep.subr.mxu0 0.0
    %1256 = vmatpush1.xpose.msra.mxu0 %v1253
    %1257 = vmatprep.subr.mxu0 0.0
    %1258 = vmatpush1.xpose.msra.mxu0 0.0
    %1259 = vmatprep.subr.mxu0 0.0
    %1260 = vmatpush1.xpose.msra.mxu0 0.0
    %1261 = vmatprep.subr.mxu0 0.0
    %1262 = vmatpush1.xpose.msra.mxu0 0.0
    %1263 = vmatprep.subr.mxu0 0.0
    %1264 = vmatpush1.xpose.msra.mxu0 0.0
    %1265 = vmatprep.subr.mxu0 0.0
    %1266 = vmatpush1.xpose.msra.mxu0 0.0
    %1267 = vmatprep.subr.mxu0 0.0
    %1268 = vmatpush1.xpose.msra.mxu0 0.0
    %1269 = vmatprep.subr.mxu0 0.0
    %1270 = vmatpush1.xpose.msra.mxu0 0.0
    %1271 = vmatprep.subr.mxu0 0.0
    %1272 = vmatpush1.xpose.msra.mxu0 0.0
    %1273 = vmatprep.subr.mxu0 0.0
    %1274 = vmatpush1.xpose.msra.mxu0 0.0
    %1275 = vmatprep.subr.mxu0 0.0
    %1276 = vmatpush1.xpose.msra.mxu0 0.0
    %1277 = vmatprep.subr.mxu0 0.0
    %1278 = vmatpush1.xpose.msra.mxu0 0.0
    %1279 = vmatprep.subr.mxu0 0.0
    %1280 = vmatpush1.xpose.msra.mxu0 0.0
    %1281 = vmatprep.subr.mxu0 0.0
    %1282 = vmatpush1.xpose.msra.mxu0 0.0
    %1283 = vmatprep.subr.mxu0 0.0
    %1284 = vmatpush1.xpose.msra.mxu0 0.0
    %1285 = vmatprep.subr.mxu0 0.0
    %1286 = vmatpush1.xpose.msra.mxu0 0.0
    %1287 = vmatprep.subr.mxu0 0.0
    %1288 = vmatpush1.xpose.msra.mxu0 0.0
    %1289 = vmatprep.subr.mxu0 0.0
    %1290 = vmatpush1.xpose.msra.mxu0 0.0
    %1291 = vmatprep.subr.mxu0 0.0
    %1292 = vmatpush1.xpose.msra.mxu0 0.0
    %1293 = vmatprep.subr.mxu0 0.0
    %1294 = vmatpush1.xpose.msra.mxu0 0.0
    %1295 = vmatprep.subr.mxu0 0.0
    %1296 = vmatpush1.xpose.msra.mxu0 0.0
    %1297 = vmatprep.subr.mxu0 0.0
    %1298 = vmatpush1.xpose.msra.mxu0 0.0
    %1299 = vmatprep.subr.mxu0 0.0
    %1300 = vmatpush1.xpose.msra.mxu0 0.0
    %1301 = vmatprep.subr.mxu0 0.0
    %1302 = vmatpush1.xpose.msra.mxu0 0.0
    %1303 = vmatprep.subr.mxu0 0.0
    %1304 = vmatpush1.xpose.msra.mxu0 0.0
    %1305 = vmatprep.subr.mxu0 0.0
    %1306 = vmatpush1.xpose.msra.mxu0 0.0
    %1307 = vmatprep.subr.mxu0 0.0
    %1308 = vmatpush1.xpose.msra.mxu0 0.0
    %1309 = vmatprep.subr.mxu0 0.0
    %1310 = vmatpush1.xpose.msra.mxu0 0.0
    %1311 = vmatprep.subr.mxu0 0.0
    %1312 = vmatpush1.xpose.msra.mxu0 0.0
    %1313 = vmatprep.subr.mxu0 0.0
    %1314 = vmatpush1.xpose.msra.mxu0 0.0
    %1315 = vmatprep.subr.mxu0 0.0
    %1316 = vmatpush1.xpose.msra.mxu0 0.0
    %1317 = vmatprep.subr.mxu0 0.0
    %1318 = vmatpush1.xpose.msra.mxu0 0.0
    %1319 = vmatprep.mubr.f32.mxu0 0.0
    %1320 = vmatmul.mubr.f32.gmra.mrb[0].mxu0 %v1251
    %v1321 = vpop.f32.mrb[0].mxu0
    %v1322 = vadd.f32 %v177, %v1321
    %v1323 = vpop.f32.mrb[0].mxu0
    %1324 = vdwg.mxu0
    %v1325 = vsel %vm183, %v1244, -inf
    %1326 = vmax.xlane.f32.xlu0 %v1325
    %v1327 = vpop.xlane.xlu0 %1326
    %v1328 = vsel %vm183, %v1322, -inf
    %1329 = vmax.xlane.f32.xlu0 %v1328
    %v1330 = vpop.xlane.xlu0 %1329
    %v1331 = vsub.f32 %v1244, %v1327
    %v1332 = vsub.f32 %v1322, %v1330
    %v1333 = vmul.f32 %v1331, 1.442695
    %v1334 = vpow.pop %v1333
    %v1335 = vmul.f32 %v1332, 1.442695
    %v1336 = vpow.pop %v1335
    %v1337 = vsel %vm183, %v1334, 0.0
    %1338 = vadd.xlane.f32.xlu0 %v1337
    %v1339 = vpop.xlane.xlu0 %1338
    %v1340 = vsel %vm183, %v1336, 0.0
    %1341 = vadd.xlane.f32.xlu0 %v1340
    %v1342 = vpop.xlane.xlu0 %1341
    %v1343 = vrcp.pop %v1339
    %v1344 = vrcp.pop %v1342
    %v1345 = vmul.f32 %v1334, %v1343
    %v1346 = vmul.f32 %v1336, %v1344
    %1347 = vrot.lane.b32.xlu0 %v164, 40
    %v1348 = vpop.permute.xlu0 %1347
    %v1351 = vsel %vm183, %v1345, 0
    %1353 = vmatprep.subr.mxu0 0.0
    %1354 = vmatpush1.msra.mxu0 %v1348
    %1355 = vmatprep.subr.mxu0 0.0
    %1356 = vmatpush1.msra.mxu0 0.0
    %1357 = vmatprep.subr.mxu0 0.0
    %1358 = vmatpush1.msra.mxu0 0.0
    %1359 = vmatprep.subr.mxu0 0.0
    %1360 = vmatpush1.msra.mxu0 0.0
    %1361 = vmatprep.subr.mxu0 0.0
    %1362 = vmatpush1.msra.mxu0 0.0
    %1363 = vmatprep.subr.mxu0 0.0
    %1364 = vmatpush1.msra.mxu0 0.0
    %1365 = vmatprep.subr.mxu0 0.0
    %1366 = vmatpush1.msra.mxu0 0.0
    %1367 = vmatprep.subr.mxu0 0.0
    %1368 = vmatpush1.msra.mxu0 0.0
    %1369 = vmatprep.subr.mxu0 0.0
    %1370 = vmatpush1.msra.mxu0 0.0
    %1371 = vmatprep.subr.mxu0 0.0
    %1372 = vmatpush1.msra.mxu0 0.0
    %1373 = vmatprep.subr.mxu0 0.0
    %1374 = vmatpush1.msra.mxu0 0.0
    %1375 = vmatprep.subr.mxu0 0.0
    %1376 = vmatpush1.msra.mxu0 0.0
    %1377 = vmatprep.subr.mxu0 0.0
    %1378 = vmatpush1.msra.mxu0 0.0
    %1379 = vmatprep.subr.mxu0 0.0
    %1380 = vmatpush1.msra.mxu0 0.0
    %1381 = vmatprep.subr.mxu0 0.0
    %1382 = vmatpush1.msra.mxu0 0.0
    %1383 = vmatprep.subr.mxu0 0.0
    %1384 = vmatpush1.msra.mxu0 0.0
    %1385 = vmatprep.subr.mxu0 0.0
    %1386 = vmatpush1.msra.mxu0 0.0
    %1387 = vmatprep.subr.mxu0 0.0
    %1388 = vmatpush1.msra.mxu0 0.0
    %1389 = vmatprep.subr.mxu0 0.0
    %1390 = vmatpush1.msra.mxu0 0.0
    %1391 = vmatprep.subr.mxu0 0.0
    %1392 = vmatpush1.msra.mxu0 0.0
    %1393 = vmatprep.subr.mxu0 0.0
    %1394 = vmatpush1.msra.mxu0 0.0
    %1395 = vmatprep.subr.mxu0 0.0
    %1396 = vmatpush1.msra.mxu0 0.0
    %1397 = vmatprep.subr.mxu0 0.0
    %1398 = vmatpush1.msra.mxu0 0.0
    %1399 = vmatprep.subr.mxu0 0.0
    %1400 = vmatpush1.msra.mxu0 0.0
    %1401 = vmatprep.subr.mxu0 0.0
    %1402 = vmatpush1.msra.mxu0 0.0
    %1403 = vmatprep.subr.mxu0 0.0
    %1404 = vmatpush1.msra.mxu0 0.0
    %1405 = vmatprep.subr.mxu0 0.0
    %1406 = vmatpush1.msra.mxu0 0.0
    %1407 = vmatprep.subr.mxu0 0.0
    %1408 = vmatpush1.msra.mxu0 0.0
    %1409 = vmatprep.subr.mxu0 0.0
    %1410 = vmatpush1.msra.mxu0 0.0
    %1411 = vmatprep.subr.mxu0 0.0
    %1412 = vmatpush1.msra.mxu0 0.0
    %1413 = vmatprep.subr.mxu0 0.0
    %1414 = vmatpush1.msra.mxu0 0.0
    %1415 = vmatprep.subr.mxu0 0.0
    %1416 = vmatpush1.msra.mxu0 0.0
    %1417 = vmatprep.mubr.f32.mxu0 0.0
    %1418 = vmatmul.mubr.f32.gmra.mrb[0].mxu0 %v1351
    %v1419 = vpop.f32.mrb[0].mxu0
    %v1420 = vadd.f32 0.0, %v1419
    %v1421 = vpop.f32.mrb[0].mxu0
    %1422 = vdwg.mxu0
    %1423 = vrot.lane.b32.xlu0 %v167, 40
    %v1424 = vpop.permute.xlu0 %1423
    %v1427 = vsel %vm183, %v1346, 0
    %1429 = vmatprep.subr.mxu0 0.0
    %1430 = vmatpush1.msra.mxu0 %v1424
    %1431 = vmatprep.subr.mxu0 0.0
    %1432 = vmatpush1.msra.mxu0 0.0
    %1433 = vmatprep.subr.mxu0 0.0
    %1434 = vmatpush1.msra.mxu0 0.0
    %1435 = vmatprep.subr.mxu0 0.0
    %1436 = vmatpush1.msra.mxu0 0.0
    %1437 = vmatprep.subr.mxu0 0.0
    %1438 = vmatpush1.msra.mxu0 0.0
    %1439 = vmatprep.subr.mxu0 0.0
    %1440 = vmatpush1.msra.mxu0 0.0
    %1441 = vmatprep.subr.mxu0 0.0
    %1442 = vmatpush1.msra.mxu0 0.0
    %1443 = vmatprep.subr.mxu0 0.0
    %1444 = vmatpush1.msra.mxu0 0.0
    %1445 = vmatprep.subr.mxu0 0.0
    %1446 = vmatpush1.msra.mxu0 0.0
    %1447 = vmatprep.subr.mxu0 0.0
    %1448 = vmatpush1.msra.mxu0 0.0
    %1449 = vmatprep.subr.mxu0 0.0
    %1450 = vmatpush1.msra.mxu0 0.0
    %1451 = vmatprep.subr.mxu0 0.0
    %1452 = vmatpush1.msra.mxu0 0.0
    %1453 = vmatprep.subr.mxu0 0.0
    %1454 = vmatpush1.msra.mxu0 0.0
    %1455 = vmatprep.subr.mxu0 0.0
    %1456 = vmatpush1.msra.mxu0 0.0
    %1457 = vmatprep.subr.mxu0 0.0
    %1458 = vmatpush1.msra.mxu0 0.0
    %1459 = vmatprep.subr.mxu0 0.0
    %1460 = vmatpush1.msra.mxu0 0.0
    %1461 = vmatprep.subr.mxu0 0.0
    %1462 = vmatpush1.msra.mxu0 0.0
    %1463 = vmatprep.subr.mxu0 0.0
    %1464 = vmatpush1.msra.mxu0 0.0
    %1465 = vmatprep.subr.mxu0 0.0
    %1466 = vmatpush1.msra.mxu0 0.0
    %1467 = vmatprep.subr.mxu0 0.0
    %1468 = vmatpush1.msra.mxu0 0.0
    %1469 = vmatprep.subr.mxu0 0.0
    %1470 = vmatpush1.msra.mxu0 0.0
    %1471 = vmatprep.subr.mxu0 0.0
    %1472 = vmatpush1.msra.mxu0 0.0
    %1473 = vmatprep.subr.mxu0 0.0
    %1474 = vmatpush1.msra.mxu0 0.0
    %1475 = vmatprep.subr.mxu0 0.0
    %1476 = vmatpush1.msra.mxu0 0.0
    %1477 = vmatprep.subr.mxu0 0.0
    %1478 = vmatpush1.msra.mxu0 0.0
    %1479 = vmatprep.subr.mxu0 0.0
    %1480 = vmatpush1.msra.mxu0 0.0
    %1481 = vmatprep.subr.mxu0 0.0
    %1482 = vmatpush1.msra.mxu0 0.0
    %1483 = vmatprep.subr.mxu0 0.0
    %1484 = vmatpush1.msra.mxu0 0.0
    %1485 = vmatprep.subr.mxu0 0.0
    %1486 = vmatpush1.msra.mxu0 0.0
    %1487 = vmatprep.subr.mxu0 0.0
    %1488 = vmatpush1.msra.mxu0 0.0
    %1489 = vmatprep.subr.mxu0 0.0
    %1490 = vmatpush1.msra.mxu0 0.0
    %1491 = vmatprep.subr.mxu0 0.0
    %1492 = vmatpush1.msra.mxu0 0.0
    %1493 = vmatprep.mubr.f32.mxu0 0.0
    %1494 = vmatmul.mubr.f32.gmra.mrb[0].mxu0 %v1427
    %v1495 = vpop.f32.mrb[0].mxu0
    %v1496 = vadd.f32 0.0, %v1495
    %v1497 = vpop.f32.mrb[0].mxu0
    %1498 = vdwg.mxu0
    %1501 = vrot.lane.b32.xlu0 %v760, 8
    %v1502 = vpop.permute.xlu0 %1501
    %1503 = vrot.lane.b32.xlu0 %v836, 8
    %v1504 = vpop.permute.xlu0 %1503
    %1509 = vrot.lane.b32.xlu0 %v1090, 16
    %v1510 = vpop.permute.xlu0 %1509
    %1511 = vrot.lane.b32.xlu0 %v1166, 16
    %v1512 = vpop.permute.xlu0 %1511
    %1517 = vrot.lane.b32.xlu0 %v1420, 24
    %v1518 = vpop.permute.xlu0 %1517
    %1519 = vrot.lane.b32.xlu0 %v1496, 24
    %v1520 = vpop.permute.xlu0 %1519
    %v1523 = vsel %vm183, %v430, %v1502
    %v1524 = vsel %vm183, %v506, %v1504
    %vm1525 = vcmask 130048
    %v1526 = vsel %vm1525, %v1523, %v1510
    %v1527 = vsel %vm1525, %v1524, %v1512
    %vm1528 = vcmask 195584
    %v1529 = vsel %vm1528, %v1526, %v1518
    %v1530 = vsel %vm1528, %v1527, %v1520
    %v1531 = vpack.c.bf16 %v1530, %v1529
    %v1532 = vld [vmem:[%s5] sm:$0xf]
    %v1533 = vld [vmem:[%s5 + $0x4] sm:$0xf]
    %v1534 = vld [vmem:[%s5 + $0x8] sm:$0xf]
    %v1535 = vld [vmem:[%s5 + $0xc] sm:$0xf]
    %v1536 = vlaneseq
    %v1537 = vshrl.u32 %v1536, 7
    %v1538 = vsub.s32 1, %v1537
    %v1539 = vrot.slane %v104, %v1538
    %v1544 = vunpack.c.l.b16 %v1532
    %v1545 = vunpack.c.l.b16 %v1533
    %v1546 = vunpack.c.l.b16 %v1534
    %v1547 = vunpack.c.l.b16 %v1535
    %v1548 = vpack.c.b16 %v1545, %v1544
    %v1549 = vpack.c.b16 %v1547, %v1546
    %v1553 = vsel %vm64, %v1531, 0
    %1555 = vmatprep.subr.bf16.mxu0 0
    %1556 = vmatpush1.bf16.msra.mxu0 %v1548
    %1557 = vmatprep.subr.bf16.mxu0 0
    %1558 = vmatpush1.bf16.msra.mxu0 %v1549
    %1559 = vmatprep.subr.bf16.mxu0 0
    %1560 = vmatpush1.bf16.msra.mxu0 0
    %1561 = vmatprep.subr.bf16.mxu0 0
    %1562 = vmatpush1.bf16.msra.mxu0 0
    %1563 = vmatprep.subr.bf16.mxu0 0
    %1564 = vmatpush1.bf16.msra.mxu0 0
    %1565 = vmatprep.subr.bf16.mxu0 0
    %1566 = vmatpush1.bf16.msra.mxu0 0
    %1567 = vmatprep.subr.bf16.mxu0 0
    %1568 = vmatpush1.bf16.msra.mxu0 0
    %1569 = vmatprep.subr.bf16.mxu0 0
    %1570 = vmatpush1.bf16.msra.mxu0 0
    %1571 = vmatprep.subr.bf16.mxu0 0
    %1572 = vmatpush1.bf16.msra.mxu0 0
    %1573 = vmatprep.subr.bf16.mxu0 0
    %1574 = vmatpush1.bf16.msra.mxu0 0
    %1575 = vmatprep.subr.bf16.mxu0 0
    %1576 = vmatpush1.bf16.msra.mxu0 0
    %1577 = vmatprep.subr.bf16.mxu0 0
    %1578 = vmatpush1.bf16.msra.mxu0 0
    %1579 = vmatprep.subr.bf16.mxu0 0
    %1580 = vmatpush1.bf16.msra.mxu0 0
    %1581 = vmatprep.subr.bf16.mxu0 0
    %1582 = vmatpush1.bf16.msra.mxu0 0
    %1583 = vmatprep.subr.bf16.mxu0 0
    %1584 = vmatpush1.bf16.msra.mxu0 0
    %1585 = vmatprep.subr.bf16.mxu0 0
    %1586 = vmatpush1.bf16.msra.mxu0 0
    %1587 = vmatprep.mubr.bf16.mxu0 0
    %1588 = vmatmul.mubr.bf16.gmra.mrb[0].mxu0 %v1553
    %v1589 = vpop.f32.mrb[0].mxu0
    %v1590 = vadd.f32 %v1539, %v1589
    %v1591 = vpop.f32.mrb[0].mxu0
    %v1592 = vpop.f32.mrb[0].mxu0
    %v1593 = vadd.f32 %v1539, %v1592
    %v1594 = vpop.f32.mrb[0].mxu0
    %1595 = vdwg.mxu0
    %v1596 = vadd.f32 %v1590, %v102
    %v1597 = vadd.f32 %v1593, %v103
    %v1598 = vsel %vm64, %v1596, 0.0
    %1599 = vadd.xlane.f32.xlu0 %v1598
    %v1600 = vpop.xlane.xlu0 %1599
    %v1601 = vsel %vm64, %v1597, 0.0
    %1602 = vadd.xlane.f32.xlu0 %v1601
    %v1603 = vpop.xlane.xlu0 %1602
    %v1604 = vmul.f32 %v1600, %v71
    %v1605 = vmul.f32 %v1603, %v71
    %v1606 = vsub.f32 %v1596, %v1604
    %v1607 = vsub.f32 %v1597, %v1605
    %v1608 = vmul.f32 %v1606, %v1606
    %v1609 = vmul.f32 %v1607, %v1607
    %v1610 = vsel %vm64, %v1608, 0.0
    %1611 = vadd.xlane.f32.xlu0 %v1610
    %v1612 = vpop.xlane.xlu0 %1611
    %v1613 = vsel %vm64, %v1609, 0.0
    %1614 = vadd.xlane.f32.xlu0 %v1613
    %v1615 = vpop.xlane.xlu0 %1614
    %v1616 = vmul.f32 %v1612, %v71
    %v1617 = vmul.f32 %v1615, %v71
    %v1618 = vadd.f32 %v1616, 1e-12
    %v1619 = vadd.f32 %v1617, 1e-12
    %v1620 = vrsqrt.pop %v1618
    %v1621 = vrsqrt.pop %v1619
    %v1622 = vmul.f32 %v1606, %v1620
    %v1623 = vmul.f32 %v1607, %v1621
    %v1624 = vlaneseq
    %v1625 = vshrl.u32 %v1624, 7
    %v1626 = vsub.s32 2, %v1625
    %v1627 = vrot.slane %v104, %v1626
    %v1628 = vmul.f32 %v1622, %v1627
    %v1629 = vmul.f32 %v1623, %v1627
    %v1630 = vlaneseq
    %v1631 = vshrl.u32 %v1630, 7
    %v1632 = vsub.s32 3, %v1631
    %v1633 = vrot.slane %v104, %v1632
    %v1634 = vadd.f32 %v1628, %v1633
    %v1635 = vadd.f32 %v1629, %v1633
    %v1636 = vpack.c.bf16 %v1635, %v1634
    %v1637 = vld [vmem:[%s6] sm:$0xf]
    %v1638 = vld [vmem:[%s6 + $0x4] sm:$0xf]
    %v1639 = vld [vmem:[%s6 + $0x8] sm:$0xf]
    %v1640 = vld [vmem:[%s6 + $0xc] sm:$0xf]
    %v1641 = vlaneseq
    %v1642 = vshrl.u32 %v1641, 7
    %v1643 = vsub.s32 4, %v1642
    %v1644 = vrot.slane %v104, %v1643
    %v1649 = vunpack.c.l.b16 %v1637
    %v1650 = vunpack.c.l.b16 %v1638
    %v1651 = vunpack.c.l.b16 %v1639
    %v1652 = vunpack.c.l.b16 %v1640
    %v1653 = vpack.c.b16 %v1650, %v1649
    %v1654 = vpack.c.b16 %v1652, %v1651
    %v1658 = vsel %vm64, %v1636, 0
    %1660 = vmatprep.subr.bf16.mxu0 0
    %1661 = vmatpush1.bf16.msra.mxu0 %v1653
    %1662 = vmatprep.subr.bf16.mxu0 0
    %1663 = vmatpush1.bf16.msra.mxu0 %v1654
    %1664 = vmatprep.subr.bf16.mxu0 0
    %1665 = vmatpush1.bf16.msra.mxu0 0
    %1666 = vmatprep.subr.bf16.mxu0 0
    %1667 = vmatpush1.bf16.msra.mxu0 0
    %1668 = vmatprep.subr.bf16.mxu0 0
    %1669 = vmatpush1.bf16.msra.mxu0 0
    %1670 = vmatprep.subr.bf16.mxu0 0
    %1671 = vmatpush1.bf16.msra.mxu0 0
    %1672 = vmatprep.subr.bf16.mxu0 0
    %1673 = vmatpush1.bf16.msra.mxu0 0
    %1674 = vmatprep.subr.bf16.mxu0 0
    %1675 = vmatpush1.bf16.msra.mxu0 0
    %1676 = vmatprep.subr.bf16.mxu0 0
    %1677 = vmatpush1.bf16.msra.mxu0 0
    %1678 = vmatprep.subr.bf16.mxu0 0
    %1679 = vmatpush1.bf16.msra.mxu0 0
    %1680 = vmatprep.subr.bf16.mxu0 0
    %1681 = vmatpush1.bf16.msra.mxu0 0
    %1682 = vmatprep.subr.bf16.mxu0 0
    %1683 = vmatpush1.bf16.msra.mxu0 0
    %1684 = vmatprep.subr.bf16.mxu0 0
    %1685 = vmatpush1.bf16.msra.mxu0 0
    %1686 = vmatprep.subr.bf16.mxu0 0
    %1687 = vmatpush1.bf16.msra.mxu0 0
    %1688 = vmatprep.subr.bf16.mxu0 0
    %1689 = vmatpush1.bf16.msra.mxu0 0
    %1690 = vmatprep.subr.bf16.mxu0 0
    %1691 = vmatpush1.bf16.msra.mxu0 0
    %1692 = vmatprep.mubr.bf16.mxu0 0
    %1693 = vmatmul.mubr.bf16.gmra.mrb[0].mxu0 %v1658
    %v1694 = vpop.f32.mrb[0].mxu0
    %v1695 = vadd.f32 %v1644, %v1694
    %v1696 = vpop.f32.mrb[0].mxu0
    %v1697 = vpop.f32.mrb[0].mxu0
    %v1698 = vadd.f32 %v1644, %v1697
    %v1699 = vpop.f32.mrb[0].mxu0
    %1700 = vdwg.mxu0
    %v1701 = vmul.f32 %v1695, 0.5
    %v1702 = vmul.f32 %v1698, 0.5
    %v1703 = vmul.f32 %v1695, 0.044715
    %v1704 = vmul.f32 %v1698, 0.044715
    %v1705 = vmul.f32 %v1703, %v1695
    %v1706 = vmul.f32 %v1704, %v1698
    %v1707 = vmul.f32 %v1705, %v1695
    %v1708 = vmul.f32 %v1706, %v1698
    %v1709 = vadd.f32 %v1695, %v1707
    %v1710 = vadd.f32 %v1698, %v1708
    %v1711 = vmul.f32 %v1709, 0.7978846
    %v1712 = vmul.f32 %v1710, 0.7978846
    %v1713 = vtanh.pop %v1711
    %v1714 = vtanh.pop %v1712
    %v1715 = vadd.f32 %v1713, 1.0
    %v1716 = vadd.f32 %v1714, 1.0
    %v1717 = vmul.f32 %v1701, %v1715
    %v1718 = vmul.f32 %v1702, %v1716
    %v1719 = vpack.c.bf16 %v1718, %v1717
    %v1720 = vld [vmem:[%s7] sm:$0xf]
    %v1721 = vld [vmem:[%s7 + $0x4] sm:$0xf]
    %v1722 = vld [vmem:[%s7 + $0x8] sm:$0xf]
    %v1723 = vld [vmem:[%s7 + $0xc] sm:$0xf]
    %v1724 = vld [vmem:[%s7 + $0x10] sm:$0xf]
    %v1725 = vld [vmem:[%s7 + $0x14] sm:$0xf]
    %v1726 = vld [vmem:[%s7 + $0x18] sm:$0xf]
    %v1727 = vld [vmem:[%s7 + $0x1c] sm:$0xf]
    %v1728 = vlaneseq
    %v1729 = vshrl.u32 %v1728, 7
    %v1730 = vsub.s32 5, %v1729
    %v1731 = vrot.slane %v104, %v1730
    %v1740 = vunpack.c.l.b16 %v1720
    %v1741 = vunpack.c.l.b16 %v1721
    %v1742 = vunpack.c.l.b16 %v1722
    %v1743 = vunpack.c.l.b16 %v1723
    %v1744 = vunpack.c.l.b16 %v1724
    %v1745 = vunpack.c.l.b16 %v1725
    %v1746 = vunpack.c.l.b16 %v1726
    %v1747 = vunpack.c.l.b16 %v1727
    %v1748 = vpack.c.b16 %v1741, %v1740
    %v1749 = vpack.c.b16 %v1743, %v1742
    %v1750 = vpack.c.b16 %v1745, %v1744
    %v1751 = vpack.c.b16 %v1747, %v1746
    %vm1756 = vcmask 523264
    %v1758 = vsel %vm1756, %v1719, 0
    %1760 = vmatprep.subr.bf16.mxu0 0
    %1761 = vmatpush1.bf16.msra.mxu0 %v1748
    %1762 = vmatprep.subr.bf16.mxu0 0
    %1763 = vmatpush1.bf16.msra.mxu0 %v1749
    %1764 = vmatprep.subr.bf16.mxu0 0
    %1765 = vmatpush1.bf16.msra.mxu0 %v1750
    %1766 = vmatprep.subr.bf16.mxu0 0
    %1767 = vmatpush1.bf16.msra.mxu0 %v1751
    %1768 = vmatprep.subr.bf16.mxu0 0
    %1769 = vmatpush1.bf16.msra.mxu0 0
    %1770 = vmatprep.subr.bf16.mxu0 0
    %1771 = vmatpush1.bf16.msra.mxu0 0
    %1772 = vmatprep.subr.bf16.mxu0 0
    %1773 = vmatpush1.bf16.msra.mxu0 0
    %1774 = vmatprep.subr.bf16.mxu0 0
    %1775 = vmatpush1.bf16.msra.mxu0 0
    %1776 = vmatprep.subr.bf16.mxu0 0
    %1777 = vmatpush1.bf16.msra.mxu0 0
    %1778 = vmatprep.subr.bf16.mxu0 0
    %1779 = vmatpush1.bf16.msra.mxu0 0
    %1780 = vmatprep.subr.bf16.mxu0 0
    %1781 = vmatpush1.bf16.msra.mxu0 0
    %1782 = vmatprep.subr.bf16.mxu0 0
    %1783 = vmatpush1.bf16.msra.mxu0 0
    %1784 = vmatprep.subr.bf16.mxu0 0
    %1785 = vmatpush1.bf16.msra.mxu0 0
    %1786 = vmatprep.subr.bf16.mxu0 0
    %1787 = vmatpush1.bf16.msra.mxu0 0
    %1788 = vmatprep.subr.bf16.mxu0 0
    %1789 = vmatpush1.bf16.msra.mxu0 0
    %1790 = vmatprep.subr.bf16.mxu0 0
    %1791 = vmatpush1.bf16.msra.mxu0 0
    %1792 = vmatprep.mubr.bf16.mxu0 0
    %1793 = vmatmul.mubr.bf16.gmra.mrb[0].mxu0 %v1758
    %v1794 = vpop.f32.mrb[0].mxu0
    %v1795 = vadd.f32 %v1731, %v1794
    %v1796 = vpop.f32.mrb[0].mxu0
    %v1797 = vpop.f32.mrb[0].mxu0
    %v1798 = vadd.f32 %v1731, %v1797
    %v1799 = vpop.f32.mrb[0].mxu0
    %1800 = vdwg.mxu0
    %v1801 = vadd.f32 %v1795, %v1634
    %v1802 = vadd.f32 %v1798, %v1635
    %v1803 = vsel %vm64, %v1801, 0.0
    %1804 = vadd.xlane.f32.xlu0 %v1803
    %v1805 = vpop.xlane.xlu0 %1804
    %v1806 = vsel %vm64, %v1802, 0.0
    %1807 = vadd.xlane.f32.xlu0 %v1806
    %v1808 = vpop.xlane.xlu0 %1807
    %v1809 = vmul.f32 %v1805, %v71
    %v1810 = vmul.f32 %v1808, %v71
    %v1811 = vsub.f32 %v1801, %v1809
    %v1812 = vsub.f32 %v1802, %v1810
    %v1813 = vmul.f32 %v1811, %v1811
    %v1814 = vmul.f32 %v1812, %v1812
    %v1815 = vsel %vm64, %v1813, 0.0
    %1816 = vadd.xlane.f32.xlu0 %v1815
    %v1817 = vpop.xlane.xlu0 %1816
    %v1818 = vsel %vm64, %v1814, 0.0
    %1819 = vadd.xlane.f32.xlu0 %v1818
    %v1820 = vpop.xlane.xlu0 %1819
    %v1821 = vmul.f32 %v1817, %v71
    %v1822 = vmul.f32 %v1820, %v71
    %v1823 = vadd.f32 %v1821, 1e-12
    %v1824 = vadd.f32 %v1822, 1e-12
    %v1825 = vrsqrt.pop %v1823
    %v1826 = vrsqrt.pop %v1824
    %v1827 = vmul.f32 %v1811, %v1825
    %v1828 = vmul.f32 %v1812, %v1826
    %v1829 = vlaneseq
    %v1830 = vshrl.u32 %v1829, 7
    %v1831 = vsub.s32 6, %v1830
    %v1832 = vrot.slane %v104, %v1831
    %v1833 = vmul.f32 %v1827, %v1832
    %v1834 = vmul.f32 %v1828, %v1832
    %v1835 = vlaneseq
    %v1836 = vshrl.u32 %v1835, 7
    %v1837 = vsub.s32 7, %v1836
    %v1838 = vrot.slane %v104, %v1837
    %v1839 = vadd.f32 %v1833, %v1838
    %v1840 = vadd.f32 %v1834, %v1838
    %s1841 = scalar_lea.vmem %s3, 8
    %v1842 = vld [vmem:[%s1841] sm:$0xff]
    %v1843 = vpack.c.bf16 %v1840, %v1839
    %s1844 = scalar_lea.vmem %s4, 16
    %v1845 = vld [vmem:[%s1844] sm:$0xf]
    %v1846 = vld [vmem:[%s1844 + $0x4] sm:$0xf]
    %v1847 = vld [vmem:[%s1844 + $0x8] sm:$0xf]
    %v1848 = vld [vmem:[%s1844 + $0xc] sm:$0xf]
    %v1849 = vlaneseq
    %v1850 = vshrl.u32 %v1849, 7
    %v1851 = vsub.s32 0, %v1850
    %v1852 = vrot.slane %v1842, %v1851
    %v1857 = vunpack.c.l.b16 %v1845
    %v1858 = vunpack.c.l.b16 %v1846
    %v1859 = vunpack.c.l.b16 %v1847
    %v1860 = vunpack.c.l.b16 %v1848
    %v1861 = vpack.c.b16 %v1858, %v1857
    %v1862 = vpack.c.b16 %v1860, %v1859
    %v1866 = vsel %vm64, %v1843, 0
    %1868 = vmatprep.subr.bf16.mxu0 0
    %1869 = vmatpush1.bf16.msra.mxu0 %v1861
    %1870 = vmatprep.subr.bf16.mxu0 0
    %1871 = vmatpush1.bf16.msra.mxu0 %v1862
    %1872 = vmatprep.subr.bf16.mxu0 0
    %1873 = vmatpush1.bf16.msra.mxu0 0
    %1874 = vmatprep.subr.bf16.mxu0 0
    %1875 = vmatpush1.bf16.msra.mxu0 0
    %1876 = vmatprep.subr.bf16.mxu0 0
    %1877 = vmatpush1.bf16.msra.mxu0 0
    %1878 = vmatprep.subr.bf16.mxu0 0
    %1879 = vmatpush1.bf16.msra.mxu0 0
    %1880 = vmatprep.subr.bf16.mxu0 0
    %1881 = vmatpush1.bf16.msra.mxu0 0
    %1882 = vmatprep.subr.bf16.mxu0 0
    %1883 = vmatpush1.bf16.msra.mxu0 0
    %1884 = vmatprep.subr.bf16.mxu0 0
    %1885 = vmatpush1.bf16.msra.mxu0 0
    %1886 = vmatprep.subr.bf16.mxu0 0
    %1887 = vmatpush1.bf16.msra.mxu0 0
    %1888 = vmatprep.subr.bf16.mxu0 0
    %1889 = vmatpush1.bf16.msra.mxu0 0
    %1890 = vmatprep.subr.bf16.mxu0 0
    %1891 = vmatpush1.bf16.msra.mxu0 0
    %1892 = vmatprep.subr.bf16.mxu0 0
    %1893 = vmatpush1.bf16.msra.mxu0 0
    %1894 = vmatprep.subr.bf16.mxu0 0
    %1895 = vmatpush1.bf16.msra.mxu0 0
    %1896 = vmatprep.subr.bf16.mxu0 0
    %1897 = vmatpush1.bf16.msra.mxu0 0
    %1898 = vmatprep.subr.bf16.mxu0 0
    %1899 = vmatpush1.bf16.msra.mxu0 0
    %1900 = vmatprep.mubr.bf16.mxu0 0
    %1901 = vmatmul.mubr.bf16.gmra.mrb[0].mxu0 %v1866
    %v1902 = vpop.f32.mrb[0].mxu0
    %v1903 = vadd.f32 %v1852, %v1902
    %v1904 = vpop.f32.mrb[0].mxu0
    %v1905 = vpop.f32.mrb[0].mxu0
    %v1906 = vadd.f32 %v1852, %v1905
    %v1907 = vpop.f32.mrb[0].mxu0
    %1908 = vdwg.mxu0
    %1910 = vrot.lane.b32.xlu0 %v1903, 96
    %v1911 = vpop.permute.xlu0 %1910
    %v1912 = vsel %vm183, %v1903, 0
    %v1914 = vsel %vm183, %v1911, 0
    %1916 = vmatprep.subr.mxu0 0.0
    %1917 = vmatpush1.xpose.msra.mxu0 %v1914
    %1918 = vmatprep.subr.mxu0 0.0
    %1919 = vmatpush1.xpose.msra.mxu0 0.0
    %1920 = vmatprep.subr.mxu0 0.0
    %1921 = vmatpush1.xpose.msra.mxu0 0.0
    %1922 = vmatprep.subr.mxu0 0.0
    %1923 = vmatpush1.xpose.msra.mxu0 0.0
    %1924 = vmatprep.subr.mxu0 0.0
    %1925 = vmatpush1.xpose.msra.mxu0 0.0
    %1926 = vmatprep.subr.mxu0 0.0
    %1927 = vmatpush1.xpose.msra.mxu0 0.0
    %1928 = vmatprep.subr.mxu0 0.0
    %1929 = vmatpush1.xpose.msra.mxu0 0.0
    %1930 = vmatprep.subr.mxu0 0.0
    %1931 = vmatpush1.xpose.msra.mxu0 0.0
    %1932 = vmatprep.subr.mxu0 0.0
    %1933 = vmatpush1.xpose.msra.mxu0 0.0
    %1934 = vmatprep.subr.mxu0 0.0
    %1935 = vmatpush1.xpose.msra.mxu0 0.0
    %1936 = vmatprep.subr.mxu0 0.0
    %1937 = vmatpush1.xpose.msra.mxu0 0.0
    %1938 = vmatprep.subr.mxu0 0.0
    %1939 = vmatpush1.xpose.msra.mxu0 0.0
    %1940 = vmatprep.subr.mxu0 0.0
    %1941 = vmatpush1.xpose.msra.mxu0 0.0
    %1942 = vmatprep.subr.mxu0 0.0
    %1943 = vmatpush1.xpose.msra.mxu0 0.0
    %1944 = vmatprep.subr.mxu0 0.0
    %1945 = vmatpush1.xpose.msra.mxu0 0.0
    %1946 = vmatprep.subr.mxu0 0.0
    %1947 = vmatpush1.xpose.msra.mxu0 0.0
    %1948 = vmatprep.subr.mxu0 0.0
    %1949 = vmatpush1.xpose.msra.mxu0 0.0
    %1950 = vmatprep.subr.mxu0 0.0
    %1951 = vmatpush1.xpose.msra.mxu0 0.0
    %1952 = vmatprep.subr.mxu0 0.0
    %1953 = vmatpush1.xpose.msra.mxu0 0.0
    %1954 = vmatprep.subr.mxu0 0.0
    %1955 = vmatpush1.xpose.msra.mxu0 0.0
    %1956 = vmatprep.subr.mxu0 0.0
    %1957 = vmatpush1.xpose.msra.mxu0 0.0
    %1958 = vmatprep.subr.mxu0 0.0
    %1959 = vmatpush1.xpose.msra.mxu0 0.0
    %1960 = vmatprep.subr.mxu0 0.0
    %1961 = vmatpush1.xpose.msra.mxu0 0.0
    %1962 = vmatprep.subr.mxu0 0.0
    %1963 = vmatpush1.xpose.msra.mxu0 0.0
    %1964 = vmatprep.subr.mxu0 0.0
    %1965 = vmatpush1.xpose.msra.mxu0 0.0
    %1966 = vmatprep.subr.mxu0 0.0
    %1967 = vmatpush1.xpose.msra.mxu0 0.0
    %1968 = vmatprep.subr.mxu0 0.0
    %1969 = vmatpush1.xpose.msra.mxu0 0.0
    %1970 = vmatprep.subr.mxu0 0.0
    %1971 = vmatpush1.xpose.msra.mxu0 0.0
    %1972 = vmatprep.subr.mxu0 0.0
    %1973 = vmatpush1.xpose.msra.mxu0 0.0
    %1974 = vmatprep.subr.mxu0 0.0
    %1975 = vmatpush1.xpose.msra.mxu0 0.0
    %1976 = vmatprep.subr.mxu0 0.0
    %1977 = vmatpush1.xpose.msra.mxu0 0.0
    %1978 = vmatprep.subr.mxu0 0.0
    %1979 = vmatpush1.xpose.msra.mxu0 0.0
    %1980 = vmatprep.mubr.f32.mxu0 0.0
    %1981 = vmatmul.mubr.f32.gmra.mrb[0].mxu0 %v1912
    %v1982 = vpop.f32.mrb[0].mxu0
    %v1983 = vadd.f32 %v173, %v1982
    %v1984 = vpop.f32.mrb[0].mxu0
    %1985 = vdwg.mxu0
    %1987 = vrot.lane.b32.xlu0 %v1906, 96
    %v1988 = vpop.permute.xlu0 %1987
    %v1989 = vsel %vm183, %v1906, 0
    %v1991 = vsel %vm183, %v1988, 0
    %1993 = vmatprep.subr.mxu0 0.0
    %1994 = vmatpush1.xpose.msra.mxu0 %v1991
    %1995 = vmatprep.subr.mxu0 0.0
    %1996 = vmatpush1.xpose.msra.mxu0 0.0
    %1997 = vmatprep.subr.mxu0 0.0
    %1998 = vmatpush1.xpose.msra.mxu0 0.0
    %1999 = vmatprep.subr.mxu0 0.0
    %2000 = vmatpush1.xpose.msra.mxu0 0.0
    %2001 = vmatprep.subr.mxu0 0.0
    %2002 = vmatpush1.xpose.msra.mxu0 0.0
    %2003 = vmatprep.subr.mxu0 0.0
    %2004 = vmatpush1.xpose.msra.mxu0 0.0
    %2005 = vmatprep.subr.mxu0 0.0
    %2006 = vmatpush1.xpose.msra.mxu0 0.0
    %2007 = vmatprep.subr.mxu0 0.0
    %2008 = vmatpush1.xpose.msra.mxu0 0.0
    %2009 = vmatprep.subr.mxu0 0.0
    %2010 = vmatpush1.xpose.msra.mxu0 0.0
    %2011 = vmatprep.subr.mxu0 0.0
    %2012 = vmatpush1.xpose.msra.mxu0 0.0
    %2013 = vmatprep.subr.mxu0 0.0
    %2014 = vmatpush1.xpose.msra.mxu0 0.0
    %2015 = vmatprep.subr.mxu0 0.0
    %2016 = vmatpush1.xpose.msra.mxu0 0.0
    %2017 = vmatprep.subr.mxu0 0.0
    %2018 = vmatpush1.xpose.msra.mxu0 0.0
    %2019 = vmatprep.subr.mxu0 0.0
    %2020 = vmatpush1.xpose.msra.mxu0 0.0
    %2021 = vmatprep.subr.mxu0 0.0
    %2022 = vmatpush1.xpose.msra.mxu0 0.0
    %2023 = vmatprep.subr.mxu0 0.0
    %2024 = vmatpush1.xpose.msra.mxu0 0.0
    %2025 = vmatprep.subr.mxu0 0.0
    %2026 = vmatpush1.xpose.msra.mxu0 0.0
    %2027 = vmatprep.subr.mxu0 0.0
    %2028 = vmatpush1.xpose.msra.mxu0 0.0
    %2029 = vmatprep.subr.mxu0 0.0
    %2030 = vmatpush1.xpose.msra.mxu0 0.0
    %2031 = vmatprep.subr.mxu0 0.0
    %2032 = vmatpush1.xpose.msra.mxu0 0.0
    %2033 = vmatprep.subr.mxu0 0.0
    %2034 = vmatpush1.xpose.msra.mxu0 0.0
    %2035 = vmatprep.subr.mxu0 0.0
    %2036 = vmatpush1.xpose.msra.mxu0 0.0
    %2037 = vmatprep.subr.mxu0 0.0
    %2038 = vmatpush1.xpose.msra.mxu0 0.0
    %2039 = vmatprep.subr.mxu0 0.0
    %2040 = vmatpush1.xpose.msra.mxu0 0.0
    %2041 = vmatprep.subr.mxu0 0.0
    %2042 = vmatpush1.xpose.msra.mxu0 0.0
    %2043 = vmatprep.subr.mxu0 0.0
    %2044 = vmatpush1.xpose.msra.mxu0 0.0
    %2045 = vmatprep.subr.mxu0 0.0
    %2046 = vmatpush1.xpose.msra.mxu0 0.0
    %2047 = vmatprep.subr.mxu0 0.0
    %2048 = vmatpush1.xpose.msra.mxu0 0.0
    %2049 = vmatprep.subr.mxu0 0.0
    %2050 = vmatpush1.xpose.msra.mxu0 0.0
    %2051 = vmatprep.subr.mxu0 0.0
    %2052 = vmatpush1.xpose.msra.mxu0 0.0
    %2053 = vmatprep.subr.mxu0 0.0
    %2054 = vmatpush1.xpose.msra.mxu0 0.0
    %2055 = vmatprep.subr.mxu0 0.0
    %2056 = vmatpush1.xpose.msra.mxu0 0.0
    %2057 = vmatprep.mubr.f32.mxu0 0.0
    %2058 = vmatmul.mubr.f32.gmra.mrb[0].mxu0 %v1989
    %v2059 = vpop.f32.mrb[0].mxu0
    %v2060 = vadd.f32 %v177, %v2059
    %v2061 = vpop.f32.mrb[0].mxu0
    %2062 = vdwg.mxu0
    %v2063 = vsel %vm183, %v1983, -inf
    %2064 = vmax.xlane.f32.xlu0 %v2063
    %v2065 = vpop.xlane.xlu0 %2064
    %v2066 = vsel %vm183, %v2060, -inf
    %2067 = vmax.xlane.f32.xlu0 %v2066
    %v2068 = vpop.xlane.xlu0 %2067
    %v2069 = vsub.f32 %v1983, %v2065
    %v2070 = vsub.f32 %v2060, %v2068
    %v2071 = vmul.f32 %v2069, 1.442695
    %v2072 = vpow.pop %v2071
    %v2073 = vmul.f32 %v2070, 1.442695
    %v2074 = vpow.pop %v2073
    %v2075 = vsel %vm183, %v2072, 0.0
    %2076 = vadd.xlane.f32.xlu0 %v2075
    %v2077 = vpop.xlane.xlu0 %2076
    %v2078 = vsel %vm183, %v2074, 0.0
    %2079 = vadd.xlane.f32.xlu0 %v2078
    %v2080 = vpop.xlane.xlu0 %2079
    %v2081 = vrcp.pop %v2077
    %v2082 = vrcp.pop %v2080
    %v2083 = vmul.f32 %v2072, %v2081
    %v2084 = vmul.f32 %v2074, %v2082
    %2085 = vrot.lane.b32.xlu0 %v1903, 64
    %v2086 = vpop.permute.xlu0 %2085
    %v2089 = vsel %vm183, %v2083, 0
    %2091 = vmatprep.subr.mxu0 0.0
    %2092 = vmatpush1.msra.mxu0 %v2086
    %2093 = vmatprep.subr.mxu0 0.0
    %2094 = vmatpush1.msra.mxu0 0.0
    %2095 = vmatprep.subr.mxu0 0.0
    %2096 = vmatpush1.msra.mxu0 0.0
    %2097 = vmatprep.subr.mxu0 0.0
    %2098 = vmatpush1.msra.mxu0 0.0
    %2099 = vmatprep.subr.mxu0 0.0
    %2100 = vmatpush1.msra.mxu0 0.0
    %2101 = vmatprep.subr.mxu0 0.0
    %2102 = vmatpush1.msra.mxu0 0.0
    %2103 = vmatprep.subr.mxu0 0.0
    %2104 = vmatpush1.msra.mxu0 0.0
    %2105 = vmatprep.subr.mxu0 0.0
    %2106 = vmatpush1.msra.mxu0 0.0
    %2107 = vmatprep.subr.mxu0 0.0
    %2108 = vmatpush1.msra.mxu0 0.0
    %2109 = vmatprep.subr.mxu0 0.0
    %2110 = vmatpush1.msra.mxu0 0.0
    %2111 = vmatprep.subr.mxu0 0.0
    %2112 = vmatpush1.msra.mxu0 0.0
    %2113 = vmatprep.subr.mxu0 0.0
    %2114 = vmatpush1.msra.mxu0 0.0
    %2115 = vmatprep.subr.mxu0 0.0
    %2116 = vmatpush1.msra.mxu0 0.0
    %2117 = vmatprep.subr.mxu0 0.0
    %2118 = vmatpush1.msra.mxu0 0.0
    %2119 = vmatprep.subr.mxu0 0.0
    %2120 = vmatpush1.msra.mxu0 0.0
    %2121 = vmatprep.subr.mxu0 0.0
    %2122 = vmatpush1.msra.mxu0 0.0
    %2123 = vmatprep.subr.mxu0 0.0
    %2124 = vmatpush1.msra.mxu0 0.0
    %2125 = vmatprep.subr.mxu0 0.0
    %2126 = vmatpush1.msra.mxu0 0.0
    %2127 = vmatprep.subr.mxu0 0.0
    %2128 = vmatpush1.msra.mxu0 0.0
    %2129 = vmatprep.subr.mxu0 0.0
    %2130 = vmatpush1.msra.mxu0 0.0
    %2131 = vmatprep.subr.mxu0 0.0
    %2132 = vmatpush1.msra.mxu0 0.0
    %2133 = vmatprep.subr.mxu0 0.0
    %2134 = vmatpush1.msra.mxu0 0.0
    %2135 = vmatprep.subr.mxu0 0.0
    %2136 = vmatpush1.msra.mxu0 0.0
    %2137 = vmatprep.subr.mxu0 0.0
    %2138 = vmatpush1.msra.mxu0 0.0
    %2139 = vmatprep.subr.mxu0 0.0
    %2140 = vmatpush1.msra.mxu0 0.0
    %2141 = vmatprep.subr.mxu0 0.0
    %2142 = vmatpush1.msra.mxu0 0.0
    %2143 = vmatprep.subr.mxu0 0.0
    %2144 = vmatpush1.msra.mxu0 0.0
    %2145 = vmatprep.subr.mxu0 0.0
    %2146 = vmatpush1.msra.mxu0 0.0
    %2147 = vmatprep.subr.mxu0 0.0
    %2148 = vmatpush1.msra.mxu0 0.0
    %2149 = vmatprep.subr.mxu0 0.0
    %2150 = vmatpush1.msra.mxu0 0.0
    %2151 = vmatprep.subr.mxu0 0.0
    %2152 = vmatpush1.msra.mxu0 0.0
    %2153 = vmatprep.subr.mxu0 0.0
    %2154 = vmatpush1.msra.mxu0 0.0
    %2155 = vmatprep.mubr.f32.mxu0 0.0
    %2156 = vmatmul.mubr.f32.gmra.mrb[0].mxu0 %v2089
    %v2157 = vpop.f32.mrb[0].mxu0
    %v2158 = vadd.f32 0.0, %v2157
    %v2159 = vpop.f32.mrb[0].mxu0
    %2160 = vdwg.mxu0
    %2161 = vrot.lane.b32.xlu0 %v1906, 64
    %v2162 = vpop.permute.xlu0 %2161
    %v2165 = vsel %vm183, %v2084, 0
    %2167 = vmatprep.subr.mxu0 0.0
    %2168 = vmatpush1.msra.mxu0 %v2162
    %2169 = vmatprep.subr.mxu0 0.0
    %2170 = vmatpush1.msra.mxu0 0.0
    %2171 = vmatprep.subr.mxu0 0.0
    %2172 = vmatpush1.msra.mxu0 0.0
    %2173 = vmatprep.subr.mxu0 0.0
    %2174 = vmatpush1.msra.mxu0 0.0
    %2175 = vmatprep.subr.mxu0 0.0
    %2176 = vmatpush1.msra.mxu0 0.0
    %2177 = vmatprep.subr.mxu0 0.0
    %2178 = vmatpush1.msra.mxu0 0.0
    %2179 = vmatprep.subr.mxu0 0.0
    %2180 = vmatpush1.msra.mxu0 0.0
    %2181 = vmatprep.subr.mxu0 0.0
    %2182 = vmatpush1.msra.mxu0 0.0
    %2183 = vmatprep.subr.mxu0 0.0
    %2184 = vmatpush1.msra.mxu0 0.0
    %2185 = vmatprep.subr.mxu0 0.0
    %2186 = vmatpush1.msra.mxu0 0.0
    %2187 = vmatprep.subr.mxu0 0.0
    %2188 = vmatpush1.msra.mxu0 0.0
    %2189 = vmatprep.subr.mxu0 0.0
    %2190 = vmatpush1.msra.mxu0 0.0
    %2191 = vmatprep.subr.mxu0 0.0
    %2192 = vmatpush1.msra.mxu0 0.0
    %2193 = vmatprep.subr.mxu0 0.0
    %2194 = vmatpush1.msra.mxu0 0.0
    %2195 = vmatprep.subr.mxu0 0.0
    %2196 = vmatpush1.msra.mxu0 0.0
    %2197 = vmatprep.subr.mxu0 0.0
    %2198 = vmatpush1.msra.mxu0 0.0
    %2199 = vmatprep.subr.mxu0 0.0
    %2200 = vmatpush1.msra.mxu0 0.0
    %2201 = vmatprep.subr.mxu0 0.0
    %2202 = vmatpush1.msra.mxu0 0.0
    %2203 = vmatprep.subr.mxu0 0.0
    %2204 = vmatpush1.msra.mxu0 0.0
    %2205 = vmatprep.subr.mxu0 0.0
    %2206 = vmatpush1.msra.mxu0 0.0
    %2207 = vmatprep.subr.mxu0 0.0
    %2208 = vmatpush1.msra.mxu0 0.0
    %2209 = vmatprep.subr.mxu0 0.0
    %2210 = vmatpush1.msra.mxu0 0.0
    %2211 = vmatprep.subr.mxu0 0.0
    %2212 = vmatpush1.msra.mxu0 0.0
    %2213 = vmatprep.subr.mxu0 0.0
    %2214 = vmatpush1.msra.mxu0 0.0
    %2215 = vmatprep.subr.mxu0 0.0
    %2216 = vmatpush1.msra.mxu0 0.0
    %2217 = vmatprep.subr.mxu0 0.0
    %2218 = vmatpush1.msra.mxu0 0.0
    %2219 = vmatprep.subr.mxu0 0.0
    %2220 = vmatpush1.msra.mxu0 0.0
    %2221 = vmatprep.subr.mxu0 0.0
    %2222 = vmatpush1.msra.mxu0 0.0
    %2223 = vmatprep.subr.mxu0 0.0
    %2224 = vmatpush1.msra.mxu0 0.0
    %2225 = vmatprep.subr.mxu0 0.0
    %2226 = vmatpush1.msra.mxu0 0.0
    %2227 = vmatprep.subr.mxu0 0.0
    %2228 = vmatpush1.msra.mxu0 0.0
    %2229 = vmatprep.subr.mxu0 0.0
    %2230 = vmatpush1.msra.mxu0 0.0
    %2231 = vmatprep.mubr.f32.mxu0 0.0
    %2232 = vmatmul.mubr.f32.gmra.mrb[0].mxu0 %v2165
    %v2233 = vpop.f32.mrb[0].mxu0
    %v2234 = vadd.f32 0.0, %v2233
    %v2235 = vpop.f32.mrb[0].mxu0
    %2236 = vdwg.mxu0
    %2237 = vrot.lane.b32.xlu0 %v1903, 120
    %v2238 = vpop.permute.xlu0 %2237
    %2239 = vrot.lane.b32.xlu0 %v1903, 88
    %v2240 = vpop.permute.xlu0 %2239
    %v2241 = vsel %vm183, %v2238, 0
    %v2243 = vsel %vm183, %v2240, 0
    %2245 = vmatprep.subr.mxu0 0.0
    %2246 = vmatpush1.xpose.msra.mxu0 %v2243
    %2247 = vmatprep.subr.mxu0 0.0
    %2248 = vmatpush1.xpose.msra.mxu0 0.0
    %2249 = vmatprep.subr.mxu0 0.0
    %2250 = vmatpush1.xpose.msra.mxu0 0.0
    %2251 = vmatprep.subr.mxu0 0.0
    %2252 = vmatpush1.xpose.msra.mxu0 0.0
    %2253 = vmatprep.subr.mxu0 0.0
    %2254 = vmatpush1.xpose.msra.mxu0 0.0
    %2255 = vmatprep.subr.mxu0 0.0
    %2256 = vmatpush1.xpose.msra.mxu0 0.0
    %2257 = vmatprep.subr.mxu0 0.0
    %2258 = vmatpush1.xpose.msra.mxu0 0.0
    %2259 = vmatprep.subr.mxu0 0.0
    %2260 = vmatpush1.xpose.msra.mxu0 0.0
    %2261 = vmatprep.subr.mxu0 0.0
    %2262 = vmatpush1.xpose.msra.mxu0 0.0
    %2263 = vmatprep.subr.mxu0 0.0
    %2264 = vmatpush1.xpose.msra.mxu0 0.0
    %2265 = vmatprep.subr.mxu0 0.0
    %2266 = vmatpush1.xpose.msra.mxu0 0.0
    %2267 = vmatprep.subr.mxu0 0.0
    %2268 = vmatpush1.xpose.msra.mxu0 0.0
    %2269 = vmatprep.subr.mxu0 0.0
    %2270 = vmatpush1.xpose.msra.mxu0 0.0
    %2271 = vmatprep.subr.mxu0 0.0
    %2272 = vmatpush1.xpose.msra.mxu0 0.0
    %2273 = vmatprep.subr.mxu0 0.0
    %2274 = vmatpush1.xpose.msra.mxu0 0.0
    %2275 = vmatprep.subr.mxu0 0.0
    %2276 = vmatpush1.xpose.msra.mxu0 0.0
    %2277 = vmatprep.subr.mxu0 0.0
    %2278 = vmatpush1.xpose.msra.mxu0 0.0
    %2279 = vmatprep.subr.mxu0 0.0
    %2280 = vmatpush1.xpose.msra.mxu0 0.0
    %2281 = vmatprep.subr.mxu0 0.0
    %2282 = vmatpush1.xpose.msra.mxu0 0.0
    %2283 = vmatprep.subr.mxu0 0.0
    %2284 = vmatpush1.xpose.msra.mxu0 0.0
    %2285 = vmatprep.subr.mxu0 0.0
    %2286 = vmatpush1.xpose.msra.mxu0 0.0
    %2287 = vmatprep.subr.mxu0 0.0
    %2288 = vmatpush1.xpose.msra.mxu0 0.0
    %2289 = vmatprep.subr.mxu0 0.0
    %2290 = vmatpush1.xpose.msra.mxu0 0.0
    %2291 = vmatprep.subr.mxu0 0.0
    %2292 = vmatpush1.xpose.msra.mxu0 0.0
    %2293 = vmatprep.subr.mxu0 0.0
    %2294 = vmatpush1.xpose.msra.mxu0 0.0
    %2295 = vmatprep.subr.mxu0 0.0
    %2296 = vmatpush1.xpose.msra.mxu0 0.0
    %2297 = vmatprep.subr.mxu0 0.0
    %2298 = vmatpush1.xpose.msra.mxu0 0.0
    %2299 = vmatprep.subr.mxu0 0.0
    %2300 = vmatpush1.xpose.msra.mxu0 0.0
    %2301 = vmatprep.subr.mxu0 0.0
    %2302 = vmatpush1.xpose.msra.mxu0 0.0
    %2303 = vmatprep.subr.mxu0 0.0
    %2304 = vmatpush1.xpose.msra.mxu0 0.0
    %2305 = vmatprep.subr.mxu0 0.0
    %2306 = vmatpush1.xpose.msra.mxu0 0.0
    %2307 = vmatprep.subr.mxu0 0.0
    %2308 = vmatpush1.xpose.msra.mxu0 0.0
    %2309 = vmatprep.mubr.f32.mxu0 0.0
    %2310 = vmatmul.mubr.f32.gmra.mrb[0].mxu0 %v2241
    %v2311 = vpop.f32.mrb[0].mxu0
    %v2312 = vadd.f32 %v173, %v2311
    %v2313 = vpop.f32.mrb[0].mxu0
    %2314 = vdwg.mxu0
    %2315 = vrot.lane.b32.xlu0 %v1906, 120
    %v2316 = vpop.permute.xlu0 %2315
    %2317 = vrot.lane.b32.xlu0 %v1906, 88
    %v2318 = vpop.permute.xlu0 %2317
    %v2319 = vsel %vm183, %v2316, 0
    %v2321 = vsel %vm183, %v2318, 0
    %2323 = vmatprep.subr.mxu0 0.0
    %2324 = vmatpush1.xpose.msra.mxu0 %v2321
    %2325 = vmatprep.subr.mxu0 0.0
    %2326 = vmatpush1.xpose.msra.mxu0 0.0
    %2327 = vmatprep.subr.mxu0 0.0
    %2328 = vmatpush1.xpose.msra.mxu0 0.0
    %2329 = vmatprep.subr.mxu0 0.0
    %2330 = vmatpush1.xpose.msra.mxu0 0.0
    %2331 = vmatprep.subr.mxu0 0.0
    %2332 = vmatpush1.xpose.msra.mxu0 0.0
    %2333 = vmatprep.subr.mxu0 0.0
    %2334 = vmatpush1.xpose.msra.mxu0 0.0
    %2335 = vmatprep.subr.mxu0 0.0
    %2336 = vmatpush1.xpose.msra.mxu0 0.0
    %2337 = vmatprep.subr.mxu0 0.0
    %2338 = vmatpush1.xpose.msra.mxu0 0.0
    %2339 = vmatprep.subr.mxu0 0.0
    %2340 = vmatpush1.xpose.msra.mxu0 0.0
    %2341 = vmatprep.subr.mxu0 0.0
    %2342 = vmatpush1.xpose.msra.mxu0 0.0
    %2343 = vmatprep.subr.mxu0 0.0
    %2344 = vmatpush1.xpose.msra.mxu0 0.0
    %2345 = vmatprep.subr.mxu0 0.0
    %2346 = vmatpush1.xpose.msra.mxu0 0.0
    %2347 = vmatprep.subr.mxu0 0.0
    %2348 = vmatpush1.xpose.msra.mxu0 0.0
    %2349 = vmatprep.subr.mxu0 0.0
    %2350 = vmatpush1.xpose.msra.mxu0 0.0
    %2351 = vmatprep.subr.mxu0 0.0
    %2352 = vmatpush1.xpose.msra.mxu0 0.0
    %2353 = vmatprep.subr.mxu0 0.0
    %2354 = vmatpush1.xpose.msra.mxu0 0.0
    %2355 = vmatprep.subr.mxu0 0.0
    %2356 = vmatpush1.xpose.msra.mxu0 0.0
    %2357 = vmatprep.subr.mxu0 0.0
    %2358 = vmatpush1.xpose.msra.mxu0 0.0
    %2359 = vmatprep.subr.mxu0 0.0
    %2360 = vmatpush1.xpose.msra.mxu0 0.0
    %2361 = vmatprep.subr.mxu0 0.0
    %2362 = vmatpush1.xpose.msra.mxu0 0.0
    %2363 = vmatprep.subr.mxu0 0.0
    %2364 = vmatpush1.xpose.msra.mxu0 0.0
    %2365 = vmatprep.subr.mxu0 0.0
    %2366 = vmatpush1.xpose.msra.mxu0 0.0
    %2367 = vmatprep.subr.mxu0 0.0
    %2368 = vmatpush1.xpose.msra.mxu0 0.0
    %2369 = vmatprep.subr.mxu0 0.0
    %2370 = vmatpush1.xpose.msra.mxu0 0.0
    %2371 = vmatprep.subr.mxu0 0.0
    %2372 = vmatpush1.xpose.msra.mxu0 0.0
    %2373 = vmatprep.subr.mxu0 0.0
    %2374 = vmatpush1.xpose.msra.mxu0 0.0
    %2375 = vmatprep.subr.mxu0 0.0
    %2376 = vmatpush1.xpose.msra.mxu0 0.0
    %2377 = vmatprep.subr.mxu0 0.0
    %2378 = vmatpush1.xpose.msra.mxu0 0.0
    %2379 = vmatprep.subr.mxu0 0.0
    %2380 = vmatpush1.xpose.msra.mxu0 0.0
    %2381 = vmatprep.subr.mxu0 0.0
    %2382 = vmatpush1.xpose.msra.mxu0 0.0
    %2383 = vmatprep.subr.mxu0 0.0
    %2384 = vmatpush1.xpose.msra.mxu0 0.0
    %2385 = vmatprep.subr.mxu0 0.0
    %2386 = vmatpush1.xpose.msra.mxu0 0.0
    %2387 = vmatprep.mubr.f32.mxu0 0.0
    %2388 = vmatmul.mubr.f32.gmra.mrb[0].mxu0 %v2319
    %v2389 = vpop.f32.mrb[0].mxu0
    %v2390 = vadd.f32 %v177, %v2389
    %v2391 = vpop.f32.mrb[0].mxu0
    %2392 = vdwg.mxu0
    %v2393 = vsel %vm183, %v2312, -inf
    %2394 = vmax.xlane.f32.xlu0 %v2393
    %v2395 = vpop.xlane.xlu0 %2394
    %v2396 = vsel %vm183, %v2390, -inf
    %2397 = vmax.xlane.f32.xlu0 %v2396
    %v2398 = vpop.xlane.xlu0 %2397
    %v2399 = vsub.f32 %v2312, %v2395
    %v2400 = vsub.f32 %v2390, %v2398
    %v2401 = vmul.f32 %v2399, 1.442695
    %v2402 = vpow.pop %v2401
    %v2403 = vmul.f32 %v2400, 1.442695
    %v2404 = vpow.pop %v2403
    %v2405 = vsel %vm183, %v2402, 0.0
    %2406 = vadd.xlane.f32.xlu0 %v2405
    %v2407 = vpop.xlane.xlu0 %2406
    %v2408 = vsel %vm183, %v2404, 0.0
    %2409 = vadd.xlane.f32.xlu0 %v2408
    %v2410 = vpop.xlane.xlu0 %2409
    %v2411 = vrcp.pop %v2407
    %v2412 = vrcp.pop %v2410
    %v2413 = vmul.f32 %v2402, %v2411
    %v2414 = vmul.f32 %v2404, %v2412
    %2415 = vrot.lane.b32.xlu0 %v1903, 56
    %v2416 = vpop.permute.xlu0 %2415
    %v2419 = vsel %vm183, %v2413, 0
    %2421 = vmatprep.subr.mxu0 0.0
    %2422 = vmatpush1.msra.mxu0 %v2416
    %2423 = vmatprep.subr.mxu0 0.0
    %2424 = vmatpush1.msra.mxu0 0.0
    %2425 = vmatprep.subr.mxu0 0.0
    %2426 = vmatpush1.msra.mxu0 0.0
    %2427 = vmatprep.subr.mxu0 0.0
    %2428 = vmatpush1.msra.mxu0 0.0
    %2429 = vmatprep.subr.mxu0 0.0
    %2430 = vmatpush1.msra.mxu0 0.0
    %2431 = vmatprep.subr.mxu0 0.0
    %2432 = vmatpush1.msra.mxu0 0.0
    %2433 = vmatprep.subr.mxu0 0.0
    %2434 = vmatpush1.msra.mxu0 0.0
    %2435 = vmatprep.subr.mxu0 0.0
    %2436 = vmatpush1.msra.mxu0 0.0
    %2437 = vmatprep.subr.mxu0 0.0
    %2438 = vmatpush1.msra.mxu0 0.0
    %2439 = vmatprep.subr.mxu0 0.0
    %2440 = vmatpush1.msra.mxu0 0.0
    %2441 = vmatprep.subr.mxu0 0.0
    %2442 = vmatpush1.msra.mxu0 0.0
    %2443 = vmatprep.subr.mxu0 0.0
    %2444 = vmatpush1.msra.mxu0 0.0
    %2445 = vmatprep.subr.mxu0 0.0
    %2446 = vmatpush1.msra.mxu0 0.0
    %2447 = vmatprep.subr.mxu0 0.0
    %2448 = vmatpush1.msra.mxu0 0.0
    %2449 = vmatprep.subr.mxu0 0.0
    %2450 = vmatpush1.msra.mxu0 0.0
    %2451 = vmatprep.subr.mxu0 0.0
    %2452 = vmatpush1.msra.mxu0 0.0
    %2453 = vmatprep.subr.mxu0 0.0
    %2454 = vmatpush1.msra.mxu0 0.0
    %2455 = vmatprep.subr.mxu0 0.0
    %2456 = vmatpush1.msra.mxu0 0.0
    %2457 = vmatprep.subr.mxu0 0.0
    %2458 = vmatpush1.msra.mxu0 0.0
    %2459 = vmatprep.subr.mxu0 0.0
    %2460 = vmatpush1.msra.mxu0 0.0
    %2461 = vmatprep.subr.mxu0 0.0
    %2462 = vmatpush1.msra.mxu0 0.0
    %2463 = vmatprep.subr.mxu0 0.0
    %2464 = vmatpush1.msra.mxu0 0.0
    %2465 = vmatprep.subr.mxu0 0.0
    %2466 = vmatpush1.msra.mxu0 0.0
    %2467 = vmatprep.subr.mxu0 0.0
    %2468 = vmatpush1.msra.mxu0 0.0
    %2469 = vmatprep.subr.mxu0 0.0
    %2470 = vmatpush1.msra.mxu0 0.0
    %2471 = vmatprep.subr.mxu0 0.0
    %2472 = vmatpush1.msra.mxu0 0.0
    %2473 = vmatprep.subr.mxu0 0.0
    %2474 = vmatpush1.msra.mxu0 0.0
    %2475 = vmatprep.subr.mxu0 0.0
    %2476 = vmatpush1.msra.mxu0 0.0
    %2477 = vmatprep.subr.mxu0 0.0
    %2478 = vmatpush1.msra.mxu0 0.0
    %2479 = vmatprep.subr.mxu0 0.0
    %2480 = vmatpush1.msra.mxu0 0.0
    %2481 = vmatprep.subr.mxu0 0.0
    %2482 = vmatpush1.msra.mxu0 0.0
    %2483 = vmatprep.subr.mxu0 0.0
    %2484 = vmatpush1.msra.mxu0 0.0
    %2485 = vmatprep.mubr.f32.mxu0 0.0
    %2486 = vmatmul.mubr.f32.gmra.mrb[0].mxu0 %v2419
    %v2487 = vpop.f32.mrb[0].mxu0
    %v2488 = vadd.f32 0.0, %v2487
    %v2489 = vpop.f32.mrb[0].mxu0
    %2490 = vdwg.mxu0
    %2491 = vrot.lane.b32.xlu0 %v1906, 56
    %v2492 = vpop.permute.xlu0 %2491
    %v2495 = vsel %vm183, %v2414, 0
    %2497 = vmatprep.subr.mxu0 0.0
    %2498 = vmatpush1.msra.mxu0 %v2492
    %2499 = vmatprep.subr.mxu0 0.0
    %2500 = vmatpush1.msra.mxu0 0.0
    %2501 = vmatprep.subr.mxu0 0.0
    %2502 = vmatpush1.msra.mxu0 0.0
    %2503 = vmatprep.subr.mxu0 0.0
    %2504 = vmatpush1.msra.mxu0 0.0
    %2505 = vmatprep.subr.mxu0 0.0
    %2506 = vmatpush1.msra.mxu0 0.0
    %2507 = vmatprep.subr.mxu0 0.0
    %2508 = vmatpush1.msra.mxu0 0.0
    %2509 = vmatprep.subr.mxu0 0.0
    %2510 = vmatpush1.msra.mxu0 0.0
    %2511 = vmatprep.subr.mxu0 0.0
    %2512 = vmatpush1.msra.mxu0 0.0
    %2513 = vmatprep.subr.mxu0 0.0
    %2514 = vmatpush1.msra.mxu0 0.0
    %2515 = vmatprep.subr.mxu0 0.0
    %2516 = vmatpush1.msra.mxu0 0.0
    %2517 = vmatprep.subr.mxu0 0.0
    %2518 = vmatpush1.msra.mxu0 0.0
    %2519 = vmatprep.subr.mxu0 0.0
    %2520 = vmatpush1.msra.mxu0 0.0
    %2521 = vmatprep.subr.mxu0 0.0
    %2522 = vmatpush1.msra.mxu0 0.0
    %2523 = vmatprep.subr.mxu0 0.0
    %2524 = vmatpush1.msra.mxu0 0.0
    %2525 = vmatprep.subr.mxu0 0.0
    %2526 = vmatpush1.msra.mxu0 0.0
    %2527 = vmatprep.subr.mxu0 0.0
    %2528 = vmatpush1.msra.mxu0 0.0
    %2529 = vmatprep.subr.mxu0 0.0
    %2530 = vmatpush1.msra.mxu0 0.0
    %2531 = vmatprep.subr.mxu0 0.0
    %2532 = vmatpush1.msra.mxu0 0.0
    %2533 = vmatprep.subr.mxu0 0.0
    %2534 = vmatpush1.msra.mxu0 0.0
    %2535 = vmatprep.subr.mxu0 0.0
    %2536 = vmatpush1.msra.mxu0 0.0
    %2537 = vmatprep.subr.mxu0 0.0
    %2538 = vmatpush1.msra.mxu0 0.0
    %2539 = vmatprep.subr.mxu0 0.0
    %2540 = vmatpush1.msra.mxu0 0.0
    %2541 = vmatprep.subr.mxu0 0.0
    %2542 = vmatpush1.msra.mxu0 0.0
    %2543 = vmatprep.subr.mxu0 0.0
    %2544 = vmatpush1.msra.mxu0 0.0
    %2545 = vmatprep.subr.mxu0 0.0
    %2546 = vmatpush1.msra.mxu0 0.0
    %2547 = vmatprep.subr.mxu0 0.0
    %2548 = vmatpush1.msra.mxu0 0.0
    %2549 = vmatprep.subr.mxu0 0.0
    %2550 = vmatpush1.msra.mxu0 0.0
    %2551 = vmatprep.subr.mxu0 0.0
    %2552 = vmatpush1.msra.mxu0 0.0
    %2553 = vmatprep.subr.mxu0 0.0
    %2554 = vmatpush1.msra.mxu0 0.0
    %2555 = vmatprep.subr.mxu0 0.0
    %2556 = vmatpush1.msra.mxu0 0.0
    %2557 = vmatprep.subr.mxu0 0.0
    %2558 = vmatpush1.msra.mxu0 0.0
    %2559 = vmatprep.subr.mxu0 0.0
    %2560 = vmatpush1.msra.mxu0 0.0
    %2561 = vmatprep.mubr.f32.mxu0 0.0
    %2562 = vmatmul.mubr.f32.gmra.mrb[0].mxu0 %v2495
    %v2563 = vpop.f32.mrb[0].mxu0
    %v2564 = vadd.f32 0.0, %v2563
    %v2565 = vpop.f32.mrb[0].mxu0
    %2566 = vdwg.mxu0
    %2567 = vrot.lane.b32.xlu0 %v1903, 112
    %v2568 = vpop.permute.xlu0 %2567
    %2569 = vrot.lane.b32.xlu0 %v1903, 80
    %v2570 = vpop.permute.xlu0 %2569
    %v2571 = vsel %vm183, %v2568, 0
    %v2573 = vsel %vm183, %v2570, 0
    %2575 = vmatprep.subr.mxu0 0.0
    %2576 = vmatpush1.xpose.msra.mxu0 %v2573
    %2577 = vmatprep.subr.mxu0 0.0
    %2578 = vmatpush1.xpose.msra.mxu0 0.0
    %2579 = vmatprep.subr.mxu0 0.0
    %2580 = vmatpush1.xpose.msra.mxu0 0.0
    %2581 = vmatprep.subr.mxu0 0.0
    %2582 = vmatpush1.xpose.msra.mxu0 0.0
    %2583 = vmatprep.subr.mxu0 0.0
    %2584 = vmatpush1.xpose.msra.mxu0 0.0
    %2585 = vmatprep.subr.mxu0 0.0
    %2586 = vmatpush1.xpose.msra.mxu0 0.0
    %2587 = vmatprep.subr.mxu0 0.0
    %2588 = vmatpush1.xpose.msra.mxu0 0.0
    %2589 = vmatprep.subr.mxu0 0.0
    %2590 = vmatpush1.xpose.msra.mxu0 0.0
    %2591 = vmatprep.subr.mxu0 0.0
    %2592 = vmatpush1.xpose.msra.mxu0 0.0
    %2593 = vmatprep.subr.mxu0 0.0
    %2594 = vmatpush1.xpose.msra.mxu0 0.0
    %2595 = vmatprep.subr.mxu0 0.0
    %2596 = vmatpush1.xpose.msra.mxu0 0.0
    %2597 = vmatprep.subr.mxu0 0.0
    %2598 = vmatpush1.xpose.msra.mxu0 0.0
    %2599 = vmatprep.subr.mxu0 0.0
    %2600 = vmatpush1.xpose.msra.mxu0 0.0
    %2601 = vmatprep.subr.mxu0 0.0
    %2602 = vmatpush1.xpose.msra.mxu0 0.0
    %2603 = vmatprep.subr.mxu0 0.0
    %2604 = vmatpush1.xpose.msra.mxu0 0.0
    %2605 = vmatprep.subr.mxu0 0.0
    %2606 = vmatpush1.xpose.msra.mxu0 0.0
    %2607 = vmatprep.subr.mxu0 0.0
    %2608 = vmatpush1.xpose.msra.mxu0 0.0
    %2609 = vmatprep.subr.mxu0 0.0
    %2610 = vmatpush1.xpose.msra.mxu0 0.0
    %2611 = vmatprep.subr.mxu0 0.0
    %2612 = vmatpush1.xpose.msra.mxu0 0.0
    %2613 = vmatprep.subr.mxu0 0.0
    %2614 = vmatpush1.xpose.msra.mxu0 0.0
    %2615 = vmatprep.subr.mxu0 0.0
    %2616 = vmatpush1.xpose.msra.mxu0 0.0
    %2617 = vmatprep.subr.mxu0 0.0
    %2618 = vmatpush1.xpose.msra.mxu0 0.0
    %2619 = vmatprep.subr.mxu0 0.0
    %2620 = vmatpush1.xpose.msra.mxu0 0.0
    %2621 = vmatprep.subr.mxu0 0.0
    %2622 = vmatpush1.xpose.msra.mxu0 0.0
    %2623 = vmatprep.subr.mxu0 0.0
    %2624 = vmatpush1.xpose.msra.mxu0 0.0
    %2625 = vmatprep.subr.mxu0 0.0
    %2626 = vmatpush1.xpose.msra.mxu0 0.0
    %2627 = vmatprep.subr.mxu0 0.0
    %2628 = vmatpush1.xpose.msra.mxu0 0.0
    %2629 = vmatprep.subr.mxu0 0.0
    %2630 = vmatpush1.xpose.msra.mxu0 0.0
    %2631 = vmatprep.subr.mxu0 0.0
    %2632 = vmatpush1.xpose.msra.mxu0 0.0
    %2633 = vmatprep.subr.mxu0 0.0
    %2634 = vmatpush1.xpose.msra.mxu0 0.0
    %2635 = vmatprep.subr.mxu0 0.0
    %2636 = vmatpush1.xpose.msra.mxu0 0.0
    %2637 = vmatprep.subr.mxu0 0.0
    %2638 = vmatpush1.xpose.msra.mxu0 0.0
    %2639 = vmatprep.mubr.f32.mxu0 0.0
    %2640 = vmatmul.mubr.f32.gmra.mrb[0].mxu0 %v2571
    %v2641 = vpop.f32.mrb[0].mxu0
    %v2642 = vadd.f32 %v173, %v2641
    %v2643 = vpop.f32.mrb[0].mxu0
    %2644 = vdwg.mxu0
    %2645 = vrot.lane.b32.xlu0 %v1906, 112
    %v2646 = vpop.permute.xlu0 %2645
    %2647 = vrot.lane.b32.xlu0 %v1906, 80
    %v2648 = vpop.permute.xlu0 %2647
    %v2649 = vsel %vm183, %v2646, 0
    %v2651 = vsel %vm183, %v2648, 0
    %2653 = vmatprep.subr.mxu0 0.0
    %2654 = vmatpush1.xpose.msra.mxu0 %v2651
    %2655 = vmatprep.subr.mxu0 0.0
    %2656 = vmatpush1.xpose.msra.mxu0 0.0
    %2657 = vmatprep.subr.mxu0 0.0
    %2658 = vmatpush1.xpose.msra.mxu0 0.0
    %2659 = vmatprep.subr.mxu0 0.0
    %2660 = vmatpush1.xpose.msra.mxu0 0.0
    %2661 = vmatprep.subr.mxu0 0.0
    %2662 = vmatpush1.xpose.msra.mxu0 0.0
    %2663 = vmatprep.subr.mxu0 0.0
    %2664 = vmatpush1.xpose.msra.mxu0 0.0
    %2665 = vmatprep.subr.mxu0 0.0
    %2666 = vmatpush1.xpose.msra.mxu0 0.0
    %2667 = vmatprep.subr.mxu0 0.0
    %2668 = vmatpush1.xpose.msra.mxu0 0.0
    %2669 = vmatprep.subr.mxu0 0.0
    %2670 = vmatpush1.xpose.msra.mxu0 0.0
    %2671 = vmatprep.subr.mxu0 0.0
    %2672 = vmatpush1.xpose.msra.mxu0 0.0
    %2673 = vmatprep.subr.mxu0 0.0
    %2674 = vmatpush1.xpose.msra.mxu0 0.0
    %2675 = vmatprep.subr.mxu0 0.0
    %2676 = vmatpush1.xpose.msra.mxu0 0.0
    %2677 = vmatprep.subr.mxu0 0.0
    %2678 = vmatpush1.xpose.msra.mxu0 0.0
    %2679 = vmatprep.subr.mxu0 0.0
    %2680 = vmatpush1.xpose.msra.mxu0 0.0
    %2681 = vmatprep.subr.mxu0 0.0
    %2682 = vmatpush1.xpose.msra.mxu0 0.0
    %2683 = vmatprep.subr.mxu0 0.0
    %2684 = vmatpush1.xpose.msra.mxu0 0.0
    %2685 = vmatprep.subr.mxu0 0.0
    %2686 = vmatpush1.xpose.msra.mxu0 0.0
    %2687 = vmatprep.subr.mxu0 0.0
    %2688 = vmatpush1.xpose.msra.mxu0 0.0
    %2689 = vmatprep.subr.mxu0 0.0
    %2690 = vmatpush1.xpose.msra.mxu0 0.0
    %2691 = vmatprep.subr.mxu0 0.0
    %2692 = vmatpush1.xpose.msra.mxu0 0.0
    %2693 = vmatprep.subr.mxu0 0.0
    %2694 = vmatpush1.xpose.msra.mxu0 0.0
    %2695 = vmatprep.subr.mxu0 0.0
    %2696 = vmatpush1.xpose.msra.mxu0 0.0
    %2697 = vmatprep.subr.mxu0 0.0
    %2698 = vmatpush1.xpose.msra.mxu0 0.0
    %2699 = vmatprep.subr.mxu0 0.0
    %2700 = vmatpush1.xpose.msra.mxu0 0.0
    %2701 = vmatprep.subr.mxu0 0.0
    %2702 = vmatpush1.xpose.msra.mxu0 0.0
    %2703 = vmatprep.subr.mxu0 0.0
    %2704 = vmatpush1.xpose.msra.mxu0 0.0
    %2705 = vmatprep.subr.mxu0 0.0
    %2706 = vmatpush1.xpose.msra.mxu0 0.0
    %2707 = vmatprep.subr.mxu0 0.0
    %2708 = vmatpush1.xpose.msra.mxu0 0.0
    %2709 = vmatprep.subr.mxu0 0.0
    %2710 = vmatpush1.xpose.msra.mxu0 0.0
    %2711 = vmatprep.subr.mxu0 0.0
    %2712 = vmatpush1.xpose.msra.mxu0 0.0
    %2713 = vmatprep.subr.mxu0 0.0
    %2714 = vmatpush1.xpose.msra.mxu0 0.0
    %2715 = vmatprep.subr.mxu0 0.0
    %2716 = vmatpush1.xpose.msra.mxu0 0.0
    %2717 = vmatprep.mubr.f32.mxu0 0.0
    %2718 = vmatmul.mubr.f32.gmra.mrb[0].mxu0 %v2649
    %v2719 = vpop.f32.mrb[0].mxu0
    %v2720 = vadd.f32 %v177, %v2719
    %v2721 = vpop.f32.mrb[0].mxu0
    %2722 = vdwg.mxu0
    %v2723 = vsel %vm183, %v2642, -inf
    %2724 = vmax.xlane.f32.xlu0 %v2723
    %v2725 = vpop.xlane.xlu0 %2724
    %v2726 = vsel %vm183, %v2720, -inf
    %2727 = vmax.xlane.f32.xlu0 %v2726
    %v2728 = vpop.xlane.xlu0 %2727
    %v2729 = vsub.f32 %v2642, %v2725
    %v2730 = vsub.f32 %v2720, %v2728
    %v2731 = vmul.f32 %v2729, 1.442695
    %v2732 = vpow.pop %v2731
    %v2733 = vmul.f32 %v2730, 1.442695
    %v2734 = vpow.pop %v2733
    %v2735 = vsel %vm183, %v2732, 0.0
    %2736 = vadd.xlane.f32.xlu0 %v2735
    %v2737 = vpop.xlane.xlu0 %2736
    %v2738 = vsel %vm183, %v2734, 0.0
    %2739 = vadd.xlane.f32.xlu0 %v2738
    %v2740 = vpop.xlane.xlu0 %2739
    %v2741 = vrcp.pop %v2737
    %v2742 = vrcp.pop %v2740
    %v2743 = vmul.f32 %v2732, %v2741
    %v2744 = vmul.f32 %v2734, %v2742
    %2745 = vrot.lane.b32.xlu0 %v1903, 48
    %v2746 = vpop.permute.xlu0 %2745
    %v2749 = vsel %vm183, %v2743, 0
    %2751 = vmatprep.subr.mxu0 0.0
    %2752 = vmatpush1.msra.mxu0 %v2746
    %2753 = vmatprep.subr.mxu0 0.0
    %2754 = vmatpush1.msra.mxu0 0.0
    %2755 = vmatprep.subr.mxu0 0.0
    %2756 = vmatpush1.msra.mxu0 0.0
    %2757 = vmatprep.subr.mxu0 0.0
    %2758 = vmatpush1.msra.mxu0 0.0
    %2759 = vmatprep.subr.mxu0 0.0
    %2760 = vmatpush1.msra.mxu0 0.0
    %2761 = vmatprep.subr.mxu0 0.0
    %2762 = vmatpush1.msra.mxu0 0.0
    %2763 = vmatprep.subr.mxu0 0.0
    %2764 = vmatpush1.msra.mxu0 0.0
    %2765 = vmatprep.subr.mxu0 0.0
    %2766 = vmatpush1.msra.mxu0 0.0
    %2767 = vmatprep.subr.mxu0 0.0
    %2768 = vmatpush1.msra.mxu0 0.0
    %2769 = vmatprep.subr.mxu0 0.0
    %2770 = vmatpush1.msra.mxu0 0.0
    %2771 = vmatprep.subr.mxu0 0.0
    %2772 = vmatpush1.msra.mxu0 0.0
    %2773 = vmatprep.subr.mxu0 0.0
    %2774 = vmatpush1.msra.mxu0 0.0
    %2775 = vmatprep.subr.mxu0 0.0
    %2776 = vmatpush1.msra.mxu0 0.0
    %2777 = vmatprep.subr.mxu0 0.0
    %2778 = vmatpush1.msra.mxu0 0.0
    %2779 = vmatprep.subr.mxu0 0.0
    %2780 = vmatpush1.msra.mxu0 0.0
    %2781 = vmatprep.subr.mxu0 0.0
    %2782 = vmatpush1.msra.mxu0 0.0
    %2783 = vmatprep.subr.mxu0 0.0
    %2784 = vmatpush1.msra.mxu0 0.0
    %2785 = vmatprep.subr.mxu0 0.0
    %2786 = vmatpush1.msra.mxu0 0.0
    %2787 = vmatprep.subr.mxu0 0.0
    %2788 = vmatpush1.msra.mxu0 0.0
    %2789 = vmatprep.subr.mxu0 0.0
    %2790 = vmatpush1.msra.mxu0 0.0
    %2791 = vmatprep.subr.mxu0 0.0
    %2792 = vmatpush1.msra.mxu0 0.0
    %2793 = vmatprep.subr.mxu0 0.0
    %2794 = vmatpush1.msra.mxu0 0.0
    %2795 = vmatprep.subr.mxu0 0.0
    %2796 = vmatpush1.msra.mxu0 0.0
    %2797 = vmatprep.subr.mxu0 0.0
    %2798 = vmatpush1.msra.mxu0 0.0
    %2799 = vmatprep.subr.mxu0 0.0
    %2800 = vmatpush1.msra.mxu0 0.0
    %2801 = vmatprep.subr.mxu0 0.0
    %2802 = vmatpush1.msra.mxu0 0.0
    %2803 = vmatprep.subr.mxu0 0.0
    %2804 = vmatpush1.msra.mxu0 0.0
    %2805 = vmatprep.subr.mxu0 0.0
    %2806 = vmatpush1.msra.mxu0 0.0
    %2807 = vmatprep.subr.mxu0 0.0
    %2808 = vmatpush1.msra.mxu0 0.0
    %2809 = vmatprep.subr.mxu0 0.0
    %2810 = vmatpush1.msra.mxu0 0.0
    %2811 = vmatprep.subr.mxu0 0.0
    %2812 = vmatpush1.msra.mxu0 0.0
    %2813 = vmatprep.subr.mxu0 0.0
    %2814 = vmatpush1.msra.mxu0 0.0
    %2815 = vmatprep.mubr.f32.mxu0 0.0
    %2816 = vmatmul.mubr.f32.gmra.mrb[0].mxu0 %v2749
    %v2817 = vpop.f32.mrb[0].mxu0
    %v2818 = vadd.f32 0.0, %v2817
    %v2819 = vpop.f32.mrb[0].mxu0
    %2820 = vdwg.mxu0
    %2821 = vrot.lane.b32.xlu0 %v1906, 48
    %v2822 = vpop.permute.xlu0 %2821
    %v2825 = vsel %vm183, %v2744, 0
    %2827 = vmatprep.subr.mxu0 0.0
    %2828 = vmatpush1.msra.mxu0 %v2822
    %2829 = vmatprep.subr.mxu0 0.0
    %2830 = vmatpush1.msra.mxu0 0.0
    %2831 = vmatprep.subr.mxu0 0.0
    %2832 = vmatpush1.msra.mxu0 0.0
    %2833 = vmatprep.subr.mxu0 0.0
    %2834 = vmatpush1.msra.mxu0 0.0
    %2835 = vmatprep.subr.mxu0 0.0
    %2836 = vmatpush1.msra.mxu0 0.0
    %2837 = vmatprep.subr.mxu0 0.0
    %2838 = vmatpush1.msra.mxu0 0.0
    %2839 = vmatprep.subr.mxu0 0.0
    %2840 = vmatpush1.msra.mxu0 0.0
    %2841 = vmatprep.subr.mxu0 0.0
    %2842 = vmatpush1.msra.mxu0 0.0
    %2843 = vmatprep.subr.mxu0 0.0
    %2844 = vmatpush1.msra.mxu0 0.0
    %2845 = vmatprep.subr.mxu0 0.0
    %2846 = vmatpush1.msra.mxu0 0.0
    %2847 = vmatprep.subr.mxu0 0.0
    %2848 = vmatpush1.msra.mxu0 0.0
    %2849 = vmatprep.subr.mxu0 0.0
    %2850 = vmatpush1.msra.mxu0 0.0
    %2851 = vmatprep.subr.mxu0 0.0
    %2852 = vmatpush1.msra.mxu0 0.0
    %2853 = vmatprep.subr.mxu0 0.0
    %2854 = vmatpush1.msra.mxu0 0.0
    %2855 = vmatprep.subr.mxu0 0.0
    %2856 = vmatpush1.msra.mxu0 0.0
    %2857 = vmatprep.subr.mxu0 0.0
    %2858 = vmatpush1.msra.mxu0 0.0
    %2859 = vmatprep.subr.mxu0 0.0
    %2860 = vmatpush1.msra.mxu0 0.0
    %2861 = vmatprep.subr.mxu0 0.0
    %2862 = vmatpush1.msra.mxu0 0.0
    %2863 = vmatprep.subr.mxu0 0.0
    %2864 = vmatpush1.msra.mxu0 0.0
    %2865 = vmatprep.subr.mxu0 0.0
    %2866 = vmatpush1.msra.mxu0 0.0
    %2867 = vmatprep.subr.mxu0 0.0
    %2868 = vmatpush1.msra.mxu0 0.0
    %2869 = vmatprep.subr.mxu0 0.0
    %2870 = vmatpush1.msra.mxu0 0.0
    %2871 = vmatprep.subr.mxu0 0.0
    %2872 = vmatpush1.msra.mxu0 0.0
    %2873 = vmatprep.subr.mxu0 0.0
    %2874 = vmatpush1.msra.mxu0 0.0
    %2875 = vmatprep.subr.mxu0 0.0
    %2876 = vmatpush1.msra.mxu0 0.0
    %2877 = vmatprep.subr.mxu0 0.0
    %2878 = vmatpush1.msra.mxu0 0.0
    %2879 = vmatprep.subr.mxu0 0.0
    %2880 = vmatpush1.msra.mxu0 0.0
    %2881 = vmatprep.subr.mxu0 0.0
    %2882 = vmatpush1.msra.mxu0 0.0
    %2883 = vmatprep.subr.mxu0 0.0
    %2884 = vmatpush1.msra.mxu0 0.0
    %2885 = vmatprep.subr.mxu0 0.0
    %2886 = vmatpush1.msra.mxu0 0.0
    %2887 = vmatprep.subr.mxu0 0.0
    %2888 = vmatpush1.msra.mxu0 0.0
    %2889 = vmatprep.subr.mxu0 0.0
    %2890 = vmatpush1.msra.mxu0 0.0
    %2891 = vmatprep.mubr.f32.mxu0 0.0
    %2892 = vmatmul.mubr.f32.gmra.mrb[0].mxu0 %v2825
    %v2893 = vpop.f32.mrb[0].mxu0
    %v2894 = vadd.f32 0.0, %v2893
    %v2895 = vpop.f32.mrb[0].mxu0
    %2896 = vdwg.mxu0
    %2897 = vrot.lane.b32.xlu0 %v1903, 104
    %v2898 = vpop.permute.xlu0 %2897
    %2899 = vrot.lane.b32.xlu0 %v1903, 72
    %v2900 = vpop.permute.xlu0 %2899
    %v2901 = vsel %vm183, %v2898, 0
    %v2903 = vsel %vm183, %v2900, 0
    %2905 = vmatprep.subr.mxu0 0.0
    %2906 = vmatpush1.xpose.msra.mxu0 %v2903
    %2907 = vmatprep.subr.mxu0 0.0
    %2908 = vmatpush1.xpose.msra.mxu0 0.0
    %2909 = vmatprep.subr.mxu0 0.0
    %2910 = vmatpush1.xpose.msra.mxu0 0.0
    %2911 = vmatprep.subr.mxu0 0.0
    %2912 = vmatpush1.xpose.msra.mxu0 0.0
    %2913 = vmatprep.subr.mxu0 0.0
    %2914 = vmatpush1.xpose.msra.mxu0 0.0
    %2915 = vmatprep.subr.mxu0 0.0
    %2916 = vmatpush1.xpose.msra.mxu0 0.0
    %2917 = vmatprep.subr.mxu0 0.0
    %2918 = vmatpush1.xpose.msra.mxu0 0.0
    %2919 = vmatprep.subr.mxu0 0.0
    %2920 = vmatpush1.xpose.msra.mxu0 0.0
    %2921 = vmatprep.subr.mxu0 0.0
    %2922 = vmatpush1.xpose.msra.mxu0 0.0
    %2923 = vmatprep.subr.mxu0 0.0
    %2924 = vmatpush1.xpose.msra.mxu0 0.0
    %2925 = vmatprep.subr.mxu0 0.0
    %2926 = vmatpush1.xpose.msra.mxu0 0.0
    %2927 = vmatprep.subr.mxu0 0.0
    %2928 = vmatpush1.xpose.msra.mxu0 0.0
    %2929 = vmatprep.subr.mxu0 0.0
    %2930 = vmatpush1.xpose.msra.mxu0 0.0
    %2931 = vmatprep.subr.mxu0 0.0
    %2932 = vmatpush1.xpose.msra.mxu0 0.0
    %2933 = vmatprep.subr.mxu0 0.0
    %2934 = vmatpush1.xpose.msra.mxu0 0.0
    %2935 = vmatprep.subr.mxu0 0.0
    %2936 = vmatpush1.xpose.msra.mxu0 0.0
    %2937 = vmatprep.subr.mxu0 0.0
    %2938 = vmatpush1.xpose.msra.mxu0 0.0
    %2939 = vmatprep.subr.mxu0 0.0
    %2940 = vmatpush1.xpose.msra.mxu0 0.0
    %2941 = vmatprep.subr.mxu0 0.0
    %2942 = vmatpush1.xpose.msra.mxu0 0.0
    %2943 = vmatprep.subr.mxu0 0.0
    %2944 = vmatpush1.xpose.msra.mxu0 0.0
    %2945 = vmatprep.subr.mxu0 0.0
    %2946 = vmatpush1.xpose.msra.mxu0 0.0
    %2947 = vmatprep.subr.mxu0 0.0
    %2948 = vmatpush1.xpose.msra.mxu0 0.0
    %2949 = vmatprep.subr.mxu0 0.0
    %2950 = vmatpush1.xpose.msra.mxu0 0.0
    %2951 = vmatprep.subr.mxu0 0.0
    %2952 = vmatpush1.xpose.msra.mxu0 0.0
    %2953 = vmatprep.subr.mxu0 0.0
    %2954 = vmatpush1.xpose.msra.mxu0 0.0
    %2955 = vmatprep.subr.mxu0 0.0
    %2956 = vmatpush1.xpose.msra.mxu0 0.0
    %2957 = vmatprep.subr.mxu0 0.0
    %2958 = vmatpush1.xpose.msra.mxu0 0.0
    %2959 = vmatprep.subr.mxu0 0.0
    %2960 = vmatpush1.xpose.msra.mxu0 0.0
    %2961 = vmatprep.subr.mxu0 0.0
    %2962 = vmatpush1.xpose.msra.mxu0 0.0
    %2963 = vmatprep.subr.mxu0 0.0
    %2964 = vmatpush1.xpose.msra.mxu0 0.0
    %2965 = vmatprep.subr.mxu0 0.0
    %2966 = vmatpush1.xpose.msra.mxu0 0.0
    %2967 = vmatprep.subr.mxu0 0.0
    %2968 = vmatpush1.xpose.msra.mxu0 0.0
    %2969 = vmatprep.mubr.f32.mxu0 0.0
    %2970 = vmatmul.mubr.f32.gmra.mrb[0].mxu0 %v2901
    %v2971 = vpop.f32.mrb[0].mxu0
    %v2972 = vadd.f32 %v173, %v2971
    %v2973 = vpop.f32.mrb[0].mxu0
    %2974 = vdwg.mxu0
    %2975 = vrot.lane.b32.xlu0 %v1906, 104
    %v2976 = vpop.permute.xlu0 %2975
    %2977 = vrot.lane.b32.xlu0 %v1906, 72
    %v2978 = vpop.permute.xlu0 %2977
    %v2979 = vsel %vm183, %v2976, 0
    %v2981 = vsel %vm183, %v2978, 0
    %2983 = vmatprep.subr.mxu0 0.0
    %2984 = vmatpush1.xpose.msra.mxu0 %v2981
    %2985 = vmatprep.subr.mxu0 0.0
    %2986 = vmatpush1.xpose.msra.mxu0 0.0
    %2987 = vmatprep.subr.mxu0 0.0
    %2988 = vmatpush1.xpose.msra.mxu0 0.0
    %2989 = vmatprep.subr.mxu0 0.0
    %2990 = vmatpush1.xpose.msra.mxu0 0.0
    %2991 = vmatprep.subr.mxu0 0.0
    %2992 = vmatpush1.xpose.msra.mxu0 0.0
    %2993 = vmatprep.subr.mxu0 0.0
    %2994 = vmatpush1.xpose.msra.mxu0 0.0
    %2995 = vmatprep.subr.mxu0 0.0
    %2996 = vmatpush1.xpose.msra.mxu0 0.0
    %2997 = vmatprep.subr.mxu0 0.0
    %2998 = vmatpush1.xpose.msra.mxu0 0.0
    %2999 = vmatprep.subr.mxu0 0.0
    %3000 = vmatpush1.xpose.msra.mxu0 0.0
    %3001 = vmatprep.subr.mxu0 0.0
    %3002 = vmatpush1.xpose.msra.mxu0 0.0
    %3003 = vmatprep.subr.mxu0 0.0
    %3004 = vmatpush1.xpose.msra.mxu0 0.0
    %3005 = vmatprep.subr.mxu0 0.0
    %3006 = vmatpush1.xpose.msra.mxu0 0.0
    %3007 = vmatprep.subr.mxu0 0.0
    %3008 = vmatpush1.xpose.msra.mxu0 0.0
    %3009 = vmatprep.subr.mxu0 0.0
    %3010 = vmatpush1.xpose.msra.mxu0 0.0
    %3011 = vmatprep.subr.mxu0 0.0
    %3012 = vmatpush1.xpose.msra.mxu0 0.0
    %3013 = vmatprep.subr.mxu0 0.0
    %3014 = vmatpush1.xpose.msra.mxu0 0.0
    %3015 = vmatprep.subr.mxu0 0.0
    %3016 = vmatpush1.xpose.msra.mxu0 0.0
    %3017 = vmatprep.subr.mxu0 0.0
    %3018 = vmatpush1.xpose.msra.mxu0 0.0
    %3019 = vmatprep.subr.mxu0 0.0
    %3020 = vmatpush1.xpose.msra.mxu0 0.0
    %3021 = vmatprep.subr.mxu0 0.0
    %3022 = vmatpush1.xpose.msra.mxu0 0.0
    %3023 = vmatprep.subr.mxu0 0.0
    %3024 = vmatpush1.xpose.msra.mxu0 0.0
    %3025 = vmatprep.subr.mxu0 0.0
    %3026 = vmatpush1.xpose.msra.mxu0 0.0
    %3027 = vmatprep.subr.mxu0 0.0
    %3028 = vmatpush1.xpose.msra.mxu0 0.0
    %3029 = vmatprep.subr.mxu0 0.0
    %3030 = vmatpush1.xpose.msra.mxu0 0.0
    %3031 = vmatprep.subr.mxu0 0.0
    %3032 = vmatpush1.xpose.msra.mxu0 0.0
    %3033 = vmatprep.subr.mxu0 0.0
    %3034 = vmatpush1.xpose.msra.mxu0 0.0
    %3035 = vmatprep.subr.mxu0 0.0
    %3036 = vmatpush1.xpose.msra.mxu0 0.0
    %3037 = vmatprep.subr.mxu0 0.0
    %3038 = vmatpush1.xpose.msra.mxu0 0.0
    %3039 = vmatprep.subr.mxu0 0.0
    %3040 = vmatpush1.xpose.msra.mxu0 0.0
    %3041 = vmatprep.subr.mxu0 0.0
    %3042 = vmatpush1.xpose.msra.mxu0 0.0
    %3043 = vmatprep.subr.mxu0 0.0
    %3044 = vmatpush1.xpose.msra.mxu0 0.0
    %3045 = vmatprep.subr.mxu0 0.0
    %3046 = vmatpush1.xpose.msra.mxu0 0.0
    %3047 = vmatprep.mubr.f32.mxu0 0.0
    %3048 = vmatmul.mubr.f32.gmra.mrb[0].mxu0 %v2979
    %v3049 = vpop.f32.mrb[0].mxu0
    %v3050 = vadd.f32 %v177, %v3049
    %v3051 = vpop.f32.mrb[0].mxu0
    %3052 = vdwg.mxu0
    %v3053 = vsel %vm183, %v2972, -inf
    %3054 = vmax.xlane.f32.xlu0 %v3053
    %v3055 = vpop.xlane.xlu0 %3054
    %v3056 = vsel %vm183, %v3050, -inf
    %3057 = vmax.xlane.f32.xlu0 %v3056
    %v3058 = vpop.xlane.xlu0 %3057
    %v3059 = vsub.f32 %v2972, %v3055
    %v3060 = vsub.f32 %v3050, %v3058
    %v3061 = vmul.f32 %v3059, 1.442695
    %v3062 = vpow.pop %v3061
    %v3063 = vmul.f32 %v3060, 1.442695
    %v3064 = vpow.pop %v3063
    %v3065 = vsel %vm183, %v3062, 0.0
    %3066 = vadd.xlane.f32.xlu0 %v3065
    %v3067 = vpop.xlane.xlu0 %3066
    %v3068 = vsel %vm183, %v3064, 0.0
    %3069 = vadd.xlane.f32.xlu0 %v3068
    %v3070 = vpop.xlane.xlu0 %3069
    %v3071 = vrcp.pop %v3067
    %v3072 = vrcp.pop %v3070
    %v3073 = vmul.f32 %v3062, %v3071
    %v3074 = vmul.f32 %v3064, %v3072
    %3075 = vrot.lane.b32.xlu0 %v1903, 40
    %v3076 = vpop.permute.xlu0 %3075
    %v3079 = vsel %vm183, %v3073, 0
    %3081 = vmatprep.subr.mxu0 0.0
    %3082 = vmatpush1.msra.mxu0 %v3076
    %3083 = vmatprep.subr.mxu0 0.0
    %3084 = vmatpush1.msra.mxu0 0.0
    %3085 = vmatprep.subr.mxu0 0.0
    %3086 = vmatpush1.msra.mxu0 0.0
    %3087 = vmatprep.subr.mxu0 0.0
    %3088 = vmatpush1.msra.mxu0 0.0
    %3089 = vmatprep.subr.mxu0 0.0
    %3090 = vmatpush1.msra.mxu0 0.0
    %3091 = vmatprep.subr.mxu0 0.0
    %3092 = vmatpush1.msra.mxu0 0.0
    %3093 = vmatprep.subr.mxu0 0.0
    %3094 = vmatpush1.msra.mxu0 0.0
    %3095 = vmatprep.subr.mxu0 0.0
    %3096 = vmatpush1.msra.mxu0 0.0
    %3097 = vmatprep.subr.mxu0 0.0
    %3098 = vmatpush1.msra.mxu0 0.0
    %3099 = vmatprep.subr.mxu0 0.0
    %3100 = vmatpush1.msra.mxu0 0.0
    %3101 = vmatprep.subr.mxu0 0.0
    %3102 = vmatpush1.msra.mxu0 0.0
    %3103 = vmatprep.subr.mxu0 0.0
    %3104 = vmatpush1.msra.mxu0 0.0
    %3105 = vmatprep.subr.mxu0 0.0
    %3106 = vmatpush1.msra.mxu0 0.0
    %3107 = vmatprep.subr.mxu0 0.0
    %3108 = vmatpush1.msra.mxu0 0.0
    %3109 = vmatprep.subr.mxu0 0.0
    %3110 = vmatpush1.msra.mxu0 0.0
    %3111 = vmatprep.subr.mxu0 0.0
    %3112 = vmatpush1.msra.mxu0 0.0
    %3113 = vmatprep.subr.mxu0 0.0
    %3114 = vmatpush1.msra.mxu0 0.0
    %3115 = vmatprep.subr.mxu0 0.0
    %3116 = vmatpush1.msra.mxu0 0.0
    %3117 = vmatprep.subr.mxu0 0.0
    %3118 = vmatpush1.msra.mxu0 0.0
    %3119 = vmatprep.subr.mxu0 0.0
    %3120 = vmatpush1.msra.mxu0 0.0
    %3121 = vmatprep.subr.mxu0 0.0
    %3122 = vmatpush1.msra.mxu0 0.0
    %3123 = vmatprep.subr.mxu0 0.0
    %3124 = vmatpush1.msra.mxu0 0.0
    %3125 = vmatprep.subr.mxu0 0.0
    %3126 = vmatpush1.msra.mxu0 0.0
    %3127 = vmatprep.subr.mxu0 0.0
    %3128 = vmatpush1.msra.mxu0 0.0
    %3129 = vmatprep.subr.mxu0 0.0
    %3130 = vmatpush1.msra.mxu0 0.0
    %3131 = vmatprep.subr.mxu0 0.0
    %3132 = vmatpush1.msra.mxu0 0.0
    %3133 = vmatprep.subr.mxu0 0.0
    %3134 = vmatpush1.msra.mxu0 0.0
    %3135 = vmatprep.subr.mxu0 0.0
    %3136 = vmatpush1.msra.mxu0 0.0
    %3137 = vmatprep.subr.mxu0 0.0
    %3138 = vmatpush1.msra.mxu0 0.0
    %3139 = vmatprep.subr.mxu0 0.0
    %3140 = vmatpush1.msra.mxu0 0.0
    %3141 = vmatprep.subr.mxu0 0.0
    %3142 = vmatpush1.msra.mxu0 0.0
    %3143 = vmatprep.subr.mxu0 0.0
    %3144 = vmatpush1.msra.mxu0 0.0
    %3145 = vmatprep.mubr.f32.mxu0 0.0
    %3146 = vmatmul.mubr.f32.gmra.mrb[0].mxu0 %v3079
    %v3147 = vpop.f32.mrb[0].mxu0
    %v3148 = vadd.f32 0.0, %v3147
    %v3149 = vpop.f32.mrb[0].mxu0
    %3150 = vdwg.mxu0
    %3151 = vrot.lane.b32.xlu0 %v1906, 40
    %v3152 = vpop.permute.xlu0 %3151
    %v3155 = vsel %vm183, %v3074, 0
    %3157 = vmatprep.subr.mxu0 0.0
    %3158 = vmatpush1.msra.mxu0 %v3152
    %3159 = vmatprep.subr.mxu0 0.0
    %3160 = vmatpush1.msra.mxu0 0.0
    %3161 = vmatprep.subr.mxu0 0.0
    %3162 = vmatpush1.msra.mxu0 0.0
    %3163 = vmatprep.subr.mxu0 0.0
    %3164 = vmatpush1.msra.mxu0 0.0
    %3165 = vmatprep.subr.mxu0 0.0
    %3166 = vmatpush1.msra.mxu0 0.0
    %3167 = vmatprep.subr.mxu0 0.0
    %3168 = vmatpush1.msra.mxu0 0.0
    %3169 = vmatprep.subr.mxu0 0.0
    %3170 = vmatpush1.msra.mxu0 0.0
    %3171 = vmatprep.subr.mxu0 0.0
    %3172 = vmatpush1.msra.mxu0 0.0
    %3173 = vmatprep.subr.mxu0 0.0
    %3174 = vmatpush1.msra.mxu0 0.0
    %3175 = vmatprep.subr.mxu0 0.0
    %3176 = vmatpush1.msra.mxu0 0.0
    %3177 = vmatprep.subr.mxu0 0.0
    %3178 = vmatpush1.msra.mxu0 0.0
    %3179 = vmatprep.subr.mxu0 0.0
    %3180 = vmatpush1.msra.mxu0 0.0
    %3181 = vmatprep.subr.mxu0 0.0
    %3182 = vmatpush1.msra.mxu0 0.0
    %3183 = vmatprep.subr.mxu0 0.0
    %3184 = vmatpush1.msra.mxu0 0.0
    %3185 = vmatprep.subr.mxu0 0.0
    %3186 = vmatpush1.msra.mxu0 0.0
    %3187 = vmatprep.subr.mxu0 0.0
    %3188 = vmatpush1.msra.mxu0 0.0
    %3189 = vmatprep.subr.mxu0 0.0
    %3190 = vmatpush1.msra.mxu0 0.0
    %3191 = vmatprep.subr.mxu0 0.0
    %3192 = vmatpush1.msra.mxu0 0.0
    %3193 = vmatprep.subr.mxu0 0.0
    %3194 = vmatpush1.msra.mxu0 0.0
    %3195 = vmatprep.subr.mxu0 0.0
    %3196 = vmatpush1.msra.mxu0 0.0
    %3197 = vmatprep.subr.mxu0 0.0
    %3198 = vmatpush1.msra.mxu0 0.0
    %3199 = vmatprep.subr.mxu0 0.0
    %3200 = vmatpush1.msra.mxu0 0.0
    %3201 = vmatprep.subr.mxu0 0.0
    %3202 = vmatpush1.msra.mxu0 0.0
    %3203 = vmatprep.subr.mxu0 0.0
    %3204 = vmatpush1.msra.mxu0 0.0
    %3205 = vmatprep.subr.mxu0 0.0
    %3206 = vmatpush1.msra.mxu0 0.0
    %3207 = vmatprep.subr.mxu0 0.0
    %3208 = vmatpush1.msra.mxu0 0.0
    %3209 = vmatprep.subr.mxu0 0.0
    %3210 = vmatpush1.msra.mxu0 0.0
    %3211 = vmatprep.subr.mxu0 0.0
    %3212 = vmatpush1.msra.mxu0 0.0
    %3213 = vmatprep.subr.mxu0 0.0
    %3214 = vmatpush1.msra.mxu0 0.0
    %3215 = vmatprep.subr.mxu0 0.0
    %3216 = vmatpush1.msra.mxu0 0.0
    %3217 = vmatprep.subr.mxu0 0.0
    %3218 = vmatpush1.msra.mxu0 0.0
    %3219 = vmatprep.subr.mxu0 0.0
    %3220 = vmatpush1.msra.mxu0 0.0
    %3221 = vmatprep.mubr.f32.mxu0 0.0
    %3222 = vmatmul.mubr.f32.gmra.mrb[0].mxu0 %v3155
    %v3223 = vpop.f32.mrb[0].mxu0
    %v3224 = vadd.f32 0.0, %v3223
    %v3225 = vpop.f32.mrb[0].mxu0
    %3226 = vdwg.mxu0
    %3229 = vrot.lane.b32.xlu0 %v2488, 8
    %v3230 = vpop.permute.xlu0 %3229
    %3231 = vrot.lane.b32.xlu0 %v2564, 8
    %v3232 = vpop.permute.xlu0 %3231
    %3237 = vrot.lane.b32.xlu0 %v2818, 16
    %v3238 = vpop.permute.xlu0 %3237
    %3239 = vrot.lane.b32.xlu0 %v2894, 16
    %v3240 = vpop.permute.xlu0 %3239
    %3245 = vrot.lane.b32.xlu0 %v3148, 24
    %v3246 = vpop.permute.xlu0 %3245
    %3247 = vrot.lane.b32.xlu0 %v3224, 24
    %v3248 = vpop.permute.xlu0 %3247
    %v3251 = vsel %vm183, %v2158, %v3230
    %v3252 = vsel %vm183, %v2234, %v3232
    %v3253 = vsel %vm1525, %v3251, %v3238
    %v3254 = vsel %vm1525, %v3252, %v3240
    %v3255 = vsel %vm1528, %v3253, %v3246
    %v3256 = vsel %vm1528, %v3254, %v3248
    %v3257 = vpack.c.bf16 %v3256, %v3255
    %s3258 = scalar_lea.vmem %s5, 16
    %v3259 = vld [vmem:[%s3258] sm:$0xf]
    %v3260 = vld [vmem:[%s3258 + $0x4] sm:$0xf]
    %v3261 = vld [vmem:[%s3258 + $0x8] sm:$0xf]
    %v3262 = vld [vmem:[%s3258 + $0xc] sm:$0xf]
    %v3263 = vlaneseq
    %v3264 = vshrl.u32 %v3263, 7
    %v3265 = vsub.s32 1, %v3264
    %v3266 = vrot.slane %v1842, %v3265
    %v3271 = vunpack.c.l.b16 %v3259
    %v3272 = vunpack.c.l.b16 %v3260
    %v3273 = vunpack.c.l.b16 %v3261
    %v3274 = vunpack.c.l.b16 %v3262
    %v3275 = vpack.c.b16 %v3272, %v3271
    %v3276 = vpack.c.b16 %v3274, %v3273
    %v3280 = vsel %vm64, %v3257, 0
    %3282 = vmatprep.subr.bf16.mxu0 0
    %3283 = vmatpush1.bf16.msra.mxu0 %v3275
    %3284 = vmatprep.subr.bf16.mxu0 0
    %3285 = vmatpush1.bf16.msra.mxu0 %v3276
    %3286 = vmatprep.subr.bf16.mxu0 0
    %3287 = vmatpush1.bf16.msra.mxu0 0
    %3288 = vmatprep.subr.bf16.mxu0 0
    %3289 = vmatpush1.bf16.msra.mxu0 0
    %3290 = vmatprep.subr.bf16.mxu0 0
    %3291 = vmatpush1.bf16.msra.mxu0 0
    %3292 = vmatprep.subr.bf16.mxu0 0
    %3293 = vmatpush1.bf16.msra.mxu0 0
    %3294 = vmatprep.subr.bf16.mxu0 0
    %3295 = vmatpush1.bf16.msra.mxu0 0
    %3296 = vmatprep.subr.bf16.mxu0 0
    %3297 = vmatpush1.bf16.msra.mxu0 0
    %3298 = vmatprep.subr.bf16.mxu0 0
    %3299 = vmatpush1.bf16.msra.mxu0 0
    %3300 = vmatprep.subr.bf16.mxu0 0
    %3301 = vmatpush1.bf16.msra.mxu0 0
    %3302 = vmatprep.subr.bf16.mxu0 0
    %3303 = vmatpush1.bf16.msra.mxu0 0
    %3304 = vmatprep.subr.bf16.mxu0 0
    %3305 = vmatpush1.bf16.msra.mxu0 0
    %3306 = vmatprep.subr.bf16.mxu0 0
    %3307 = vmatpush1.bf16.msra.mxu0 0
    %3308 = vmatprep.subr.bf16.mxu0 0
    %3309 = vmatpush1.bf16.msra.mxu0 0
    %3310 = vmatprep.subr.bf16.mxu0 0
    %3311 = vmatpush1.bf16.msra.mxu0 0
    %3312 = vmatprep.subr.bf16.mxu0 0
    %3313 = vmatpush1.bf16.msra.mxu0 0
    %3314 = vmatprep.mubr.bf16.mxu0 0
    %3315 = vmatmul.mubr.bf16.gmra.mrb[0].mxu0 %v3280
    %v3316 = vpop.f32.mrb[0].mxu0
    %v3317 = vadd.f32 %v3266, %v3316
    %v3318 = vpop.f32.mrb[0].mxu0
    %v3319 = vpop.f32.mrb[0].mxu0
    %v3320 = vadd.f32 %v3266, %v3319
    %v3321 = vpop.f32.mrb[0].mxu0
    %3322 = vdwg.mxu0
    %v3323 = vadd.f32 %v3317, %v1839
    %v3324 = vadd.f32 %v3320, %v1840
    %v3325 = vsel %vm64, %v3323, 0.0
    %3326 = vadd.xlane.f32.xlu0 %v3325
    %v3327 = vpop.xlane.xlu0 %3326
    %v3328 = vsel %vm64, %v3324, 0.0
    %3329 = vadd.xlane.f32.xlu0 %v3328
    %v3330 = vpop.xlane.xlu0 %3329
    %v3331 = vmul.f32 %v3327, %v71
    %v3332 = vmul.f32 %v3330, %v71
    %v3333 = vsub.f32 %v3323, %v3331
    %v3334 = vsub.f32 %v3324, %v3332
    %v3335 = vmul.f32 %v3333, %v3333
    %v3336 = vmul.f32 %v3334, %v3334
    %v3337 = vsel %vm64, %v3335, 0.0
    %3338 = vadd.xlane.f32.xlu0 %v3337
    %v3339 = vpop.xlane.xlu0 %3338
    %v3340 = vsel %vm64, %v3336, 0.0
    %3341 = vadd.xlane.f32.xlu0 %v3340
    %v3342 = vpop.xlane.xlu0 %3341
    %v3343 = vmul.f32 %v3339, %v71
    %v3344 = vmul.f32 %v3342, %v71
    %v3345 = vadd.f32 %v3343, 1e-12
    %v3346 = vadd.f32 %v3344, 1e-12
    %v3347 = vrsqrt.pop %v3345
    %v3348 = vrsqrt.pop %v3346
    %v3349 = vmul.f32 %v3333, %v3347
    %v3350 = vmul.f32 %v3334, %v3348
    %v3351 = vlaneseq
    %v3352 = vshrl.u32 %v3351, 7
    %v3353 = vsub.s32 2, %v3352
    %v3354 = vrot.slane %v1842, %v3353
    %v3355 = vmul.f32 %v3349, %v3354
    %v3356 = vmul.f32 %v3350, %v3354
    %v3357 = vlaneseq
    %v3358 = vshrl.u32 %v3357, 7
    %v3359 = vsub.s32 3, %v3358
    %v3360 = vrot.slane %v1842, %v3359
    %v3361 = vadd.f32 %v3355, %v3360
    %v3362 = vadd.f32 %v3356, %v3360
    %v3363 = vpack.c.bf16 %v3362, %v3361
    %s3364 = scalar_lea.vmem %s6, 16
    %v3365 = vld [vmem:[%s3364] sm:$0xf]
    %v3366 = vld [vmem:[%s3364 + $0x4] sm:$0xf]
    %v3367 = vld [vmem:[%s3364 + $0x8] sm:$0xf]
    %v3368 = vld [vmem:[%s3364 + $0xc] sm:$0xf]
    %v3369 = vlaneseq
    %v3370 = vshrl.u32 %v3369, 7
    %v3371 = vsub.s32 4, %v3370
    %v3372 = vrot.slane %v1842, %v3371
    %v3377 = vunpack.c.l.b16 %v3365
    %v3378 = vunpack.c.l.b16 %v3366
    %v3379 = vunpack.c.l.b16 %v3367
    %v3380 = vunpack.c.l.b16 %v3368
    %v3381 = vpack.c.b16 %v3378, %v3377
    %v3382 = vpack.c.b16 %v3380, %v3379
    %v3386 = vsel %vm64, %v3363, 0
    %3388 = vmatprep.subr.bf16.mxu0 0
    %3389 = vmatpush1.bf16.msra.mxu0 %v3381
    %3390 = vmatprep.subr.bf16.mxu0 0
    %3391 = vmatpush1.bf16.msra.mxu0 %v3382
    %3392 = vmatprep.subr.bf16.mxu0 0
    %3393 = vmatpush1.bf16.msra.mxu0 0
    %3394 = vmatprep.subr.bf16.mxu0 0
    %3395 = vmatpush1.bf16.msra.mxu0 0
    %3396 = vmatprep.subr.bf16.mxu0 0
    %3397 = vmatpush1.bf16.msra.mxu0 0
    %3398 = vmatprep.subr.bf16.mxu0 0
    %3399 = vmatpush1.bf16.msra.mxu0 0
    %3400 = vmatprep.subr.bf16.mxu0 0
    %3401 = vmatpush1.bf16.msra.mxu0 0
    %3402 = vmatprep.subr.bf16.mxu0 0
    %3403 = vmatpush1.bf16.msra.mxu0 0
    %3404 = vmatprep.subr.bf16.mxu0 0
    %3405 = vmatpush1.bf16.msra.mxu0 0
    %3406 = vmatprep.subr.bf16.mxu0 0
    %3407 = vmatpush1.bf16.msra.mxu0 0
    %3408 = vmatprep.subr.bf16.mxu0 0
    %3409 = vmatpush1.bf16.msra.mxu0 0
    %3410 = vmatprep.subr.bf16.mxu0 0
    %3411 = vmatpush1.bf16.msra.mxu0 0
    %3412 = vmatprep.subr.bf16.mxu0 0
    %3413 = vmatpush1.bf16.msra.mxu0 0
    %3414 = vmatprep.subr.bf16.mxu0 0
    %3415 = vmatpush1.bf16.msra.mxu0 0
    %3416 = vmatprep.subr.bf16.mxu0 0
    %3417 = vmatpush1.bf16.msra.mxu0 0
    %3418 = vmatprep.subr.bf16.mxu0 0
    %3419 = vmatpush1.bf16.msra.mxu0 0
    %3420 = vmatprep.mubr.bf16.mxu0 0
    %3421 = vmatmul.mubr.bf16.gmra.mrb[0].mxu0 %v3386
    %v3422 = vpop.f32.mrb[0].mxu0
    %v3423 = vadd.f32 %v3372, %v3422
    %v3424 = vpop.f32.mrb[0].mxu0
    %v3425 = vpop.f32.mrb[0].mxu0
    %v3426 = vadd.f32 %v3372, %v3425
    %v3427 = vpop.f32.mrb[0].mxu0
    %3428 = vdwg.mxu0
    %v3429 = vmul.f32 %v3423, 0.5
    %v3430 = vmul.f32 %v3426, 0.5
    %v3431 = vmul.f32 %v3423, 0.044715
    %v3432 = vmul.f32 %v3426, 0.044715
    %v3433 = vmul.f32 %v3431, %v3423
    %v3434 = vmul.f32 %v3432, %v3426
    %v3435 = vmul.f32 %v3433, %v3423
    %v3436 = vmul.f32 %v3434, %v3426
    %v3437 = vadd.f32 %v3423, %v3435
    %v3438 = vadd.f32 %v3426, %v3436
    %v3439 = vmul.f32 %v3437, 0.7978846
    %v3440 = vmul.f32 %v3438, 0.7978846
    %v3441 = vtanh.pop %v3439
    %v3442 = vtanh.pop %v3440
    %v3443 = vadd.f32 %v3441, 1.0
    %v3444 = vadd.f32 %v3442, 1.0
    %v3445 = vmul.f32 %v3429, %v3443
    %v3446 = vmul.f32 %v3430, %v3444
    %v3447 = vpack.c.bf16 %v3446, %v3445
    %s3448 = scalar_lea.vmem %s7, 32
    %v3449 = vld [vmem:[%s3448] sm:$0xf]
    %v3450 = vld [vmem:[%s3448 + $0x4] sm:$0xf]
    %v3451 = vld [vmem:[%s3448 + $0x8] sm:$0xf]
    %v3452 = vld [vmem:[%s3448 + $0xc] sm:$0xf]
    %v3453 = vld [vmem:[%s3448 + $0x10] sm:$0xf]
    %v3454 = vld [vmem:[%s3448 + $0x14] sm:$0xf]
    %v3455 = vld [vmem:[%s3448 + $0x18] sm:$0xf]
    %v3456 = vld [vmem:[%s3448 + $0x1c] sm:$0xf]
    %v3457 = vlaneseq
    %v3458 = vshrl.u32 %v3457, 7
    %v3459 = vsub.s32 5, %v3458
    %v3460 = vrot.slane %v1842, %v3459
    %v3469 = vunpack.c.l.b16 %v3449
    %v3470 = vunpack.c.l.b16 %v3450
    %v3471 = vunpack.c.l.b16 %v3451
    %v3472 = vunpack.c.l.b16 %v3452
    %v3473 = vunpack.c.l.b16 %v3453
    %v3474 = vunpack.c.l.b16 %v3454
    %v3475 = vunpack.c.l.b16 %v3455
    %v3476 = vunpack.c.l.b16 %v3456
    %v3477 = vpack.c.b16 %v3470, %v3469
    %v3478 = vpack.c.b16 %v3472, %v3471
    %v3479 = vpack.c.b16 %v3474, %v3473
    %v3480 = vpack.c.b16 %v3476, %v3475
    %v3486 = vsel %vm1756, %v3447, 0
    %3488 = vmatprep.subr.bf16.mxu0 0
    %3489 = vmatpush1.bf16.msra.mxu0 %v3477
    %3490 = vmatprep.subr.bf16.mxu0 0
    %3491 = vmatpush1.bf16.msra.mxu0 %v3478
    %3492 = vmatprep.subr.bf16.mxu0 0
    %3493 = vmatpush1.bf16.msra.mxu0 %v3479
    %3494 = vmatprep.subr.bf16.mxu0 0
    %3495 = vmatpush1.bf16.msra.mxu0 %v3480
    %3496 = vmatprep.subr.bf16.mxu0 0
    %3497 = vmatpush1.bf16.msra.mxu0 0
    %3498 = vmatprep.subr.bf16.mxu0 0
    %3499 = vmatpush1.bf16.msra.mxu0 0
    %3500 = vmatprep.subr.bf16.mxu0 0
    %3501 = vmatpush1.bf16.msra.mxu0 0
    %3502 = vmatprep.subr.bf16.mxu0 0
    %3503 = vmatpush1.bf16.msra.mxu0 0
    %3504 = vmatprep.subr.bf16.mxu0 0
    %3505 = vmatpush1.bf16.msra.mxu0 0
    %3506 = vmatprep.subr.bf16.mxu0 0
    %3507 = vmatpush1.bf16.msra.mxu0 0
    %3508 = vmatprep.subr.bf16.mxu0 0
    %3509 = vmatpush1.bf16.msra.mxu0 0
    %3510 = vmatprep.subr.bf16.mxu0 0
    %3511 = vmatpush1.bf16.msra.mxu0 0
    %3512 = vmatprep.subr.bf16.mxu0 0
    %3513 = vmatpush1.bf16.msra.mxu0 0
    %3514 = vmatprep.subr.bf16.mxu0 0
    %3515 = vmatpush1.bf16.msra.mxu0 0
    %3516 = vmatprep.subr.bf16.mxu0 0
    %3517 = vmatpush1.bf16.msra.mxu0 0
    %3518 = vmatprep.subr.bf16.mxu0 0
    %3519 = vmatpush1.bf16.msra.mxu0 0
    %3520 = vmatprep.mubr.bf16.mxu0 0
    %3521 = vmatmul.mubr.bf16.gmra.mrb[0].mxu0 %v3486
    %v3522 = vpop.f32.mrb[0].mxu0
    %v3523 = vadd.f32 %v3460, %v3522
    %v3524 = vpop.f32.mrb[0].mxu0
    %v3525 = vpop.f32.mrb[0].mxu0
    %v3526 = vadd.f32 %v3460, %v3525
    %v3527 = vpop.f32.mrb[0].mxu0
    %3528 = vdwg.mxu0
    %v3529 = vadd.f32 %v3523, %v3361
    %v3530 = vadd.f32 %v3526, %v3362
    %v3531 = vsel %vm64, %v3529, 0.0
    %3532 = vadd.xlane.f32.xlu0 %v3531
    %v3533 = vpop.xlane.xlu0 %3532
    %v3534 = vsel %vm64, %v3530, 0.0
    %3535 = vadd.xlane.f32.xlu0 %v3534
    %v3536 = vpop.xlane.xlu0 %3535
    %v3537 = vmul.f32 %v3533, %v71
    %v3538 = vmul.f32 %v3536, %v71
    %v3539 = vsub.f32 %v3529, %v3537
    %v3540 = vsub.f32 %v3530, %v3538
    %v3541 = vmul.f32 %v3539, %v3539
    %v3542 = vmul.f32 %v3540, %v3540
    %v3543 = vsel %vm64, %v3541, 0.0
    %3544 = vadd.xlane.f32.xlu0 %v3543
    %v3545 = vpop.xlane.xlu0 %3544
    %v3546 = vsel %vm64, %v3542, 0.0
    %3547 = vadd.xlane.f32.xlu0 %v3546
    %v3548 = vpop.xlane.xlu0 %3547
    %v3549 = vmul.f32 %v3545, %v71
    %v3550 = vmul.f32 %v3548, %v71
    %v3551 = vadd.f32 %v3549, 1e-12
    %v3552 = vadd.f32 %v3550, 1e-12
    %v3553 = vrsqrt.pop %v3551
    %v3554 = vrsqrt.pop %v3552
    %v3555 = vmul.f32 %v3539, %v3553
    %v3556 = vmul.f32 %v3540, %v3554
    %v3557 = vlaneseq
    %v3558 = vshrl.u32 %v3557, 7
    %v3559 = vsub.s32 6, %v3558
    %v3560 = vrot.slane %v1842, %v3559
    %v3561 = vmul.f32 %v3555, %v3560
    %v3562 = vmul.f32 %v3556, %v3560
    %v3563 = vlaneseq
    %v3564 = vshrl.u32 %v3563, 7
    %v3565 = vsub.s32 7, %v3564
    %v3566 = vrot.slane %v1842, %v3565
    %v3567 = vadd.f32 %v3561, %v3566
    %v3568 = vadd.f32 %v3562, %v3566
    %v3569 = vpack.c.bf16 %v3567, %v3567
    %v3570 = vpack.c.bf16 %v3568, %v3568
    %v3571 = vld [vmem:[%s8 + $0x4] sm:$0xf]
    %v3572 = vld [vmem:[%s8 + $0xc] sm:$0xf]
    %v3573 = vld [vmem:[%s8 + $0x14] sm:$0xf]
    %v3574 = vld [vmem:[%s8 + $0x1c] sm:$0xf]
    %v3575 = vlaneseq
    %v3576 = vshrl.u32 %v3575, 7
    %v3577 = vsub.s32 2, %v3576
    %v3578 = vrot.slane %v61, %v3577
    %v3581 = vunpack.c.l.b16 %v3569
    %v3582 = vunpack.c.l.b16 %v3570
    %v3583 = vrot.slane %v3582, 7
    %vm3584 = vcmask 1041409
    %v3585 = vsel %vm3584, %v3583, %v3581
    %v3586 = vpack.c.b16 %v3585, %v3585
    %v3591 = vunpack.c.l.b16 %v3571
    %v3592 = vunpack.c.l.b16 %v3572
    %v3593 = vunpack.c.l.b16 %v3573
    %v3594 = vunpack.c.l.b16 %v3574
    %v3595 = vpack.c.b16 %v3592, %v3591
    %v3596 = vpack.c.b16 %v3594, %v3593
    %v3600 = vsel %vm64, %v3586, 0
    %3602 = vmatprep.subr.bf16.mxu0 0
    %3603 = vmatpush1.bf16.msra.mxu0 %v3595
    %3604 = vmatprep.subr.bf16.mxu0 0
    %3605 = vmatpush1.bf16.msra.mxu0 %v3596
    %3606 = vmatprep.subr.bf16.mxu0 0
    %3607 = vmatpush1.bf16.msra.mxu0 0
    %3608 = vmatprep.subr.bf16.mxu0 0
    %3609 = vmatpush1.bf16.msra.mxu0 0
    %3610 = vmatprep.subr.bf16.mxu0 0
    %3611 = vmatpush1.bf16.msra.mxu0 0
    %3612 = vmatprep.subr.bf16.mxu0 0
    %3613 = vmatpush1.bf16.msra.mxu0 0
    %3614 = vmatprep.subr.bf16.mxu0 0
    %3615 = vmatpush1.bf16.msra.mxu0 0
    %3616 = vmatprep.subr.bf16.mxu0 0
    %3617 = vmatpush1.bf16.msra.mxu0 0
    %3618 = vmatprep.subr.bf16.mxu0 0
    %3619 = vmatpush1.bf16.msra.mxu0 0
    %3620 = vmatprep.subr.bf16.mxu0 0
    %3621 = vmatpush1.bf16.msra.mxu0 0
    %3622 = vmatprep.subr.bf16.mxu0 0
    %3623 = vmatpush1.bf16.msra.mxu0 0
    %3624 = vmatprep.subr.bf16.mxu0 0
    %3625 = vmatpush1.bf16.msra.mxu0 0
    %3626 = vmatprep.subr.bf16.mxu0 0
    %3627 = vmatpush1.bf16.msra.mxu0 0
    %3628 = vmatprep.subr.bf16.mxu0 0
    %3629 = vmatpush1.bf16.msra.mxu0 0
    %3630 = vmatprep.subr.bf16.mxu0 0
    %3631 = vmatpush1.bf16.msra.mxu0 0
    %3632 = vmatprep.subr.bf16.mxu0 0
    %3633 = vmatpush1.bf16.msra.mxu0 0
    %3634 = vmatprep.mubr.bf16.mxu0 0
    %3635 = vmatmul.mubr.bf16.gmra.mrb[0].mxu0 %v3600
    %v3636 = vpop.f32.mrb[0].mxu0
    %v3637 = vadd.f32 %v3578, %v3636
    %v3638 = vpop.f32.mrb[0].mxu0
    %v3639 = vpop.f32.mrb[0].mxu0
    %v3640 = vpop.f32.mrb[0].mxu0
    %3641 = vdwg.mxu0
    %v3642 = vtanh.pop %v3637
    %v3643 = vpack.c.bf16 %v3642, %v3642
    %v3644 = vld [vmem:[%s8] sm:$0xf]
    %v3645 = vld [vmem:[%s8 + $0x8] sm:$0xf]
    %v3646 = vld [vmem:[%s8 + $0x10] sm:$0xf]
    %v3647 = vld [vmem:[%s8 + $0x18] sm:$0xf]
    %v3648 = vlaneseq
    %v3649 = vshrl.u32 %v3648, 7
    %v3650 = vsub.s32 3, %v3649
    %v3651 = vrot.slane %v61, %v3650
    %v3656 = vunpack.c.l.b16 %v3644
    %v3657 = vunpack.c.l.b16 %v3645
    %v3658 = vunpack.c.l.b16 %v3646
    %v3659 = vunpack.c.l.b16 %v3647
    %v3660 = vpack.c.b16 %v3657, %v3656
    %v3661 = vpack.c.b16 %v3659, %v3658
    %v3665 = vsel %vm64, %v3643, 0
    %3667 = vmatprep.subr.bf16.mxu0 0
    %3668 = vmatpush1.bf16.msra.mxu0 %v3660
    %3669 = vmatprep.subr.bf16.mxu0 0
    %3670 = vmatpush1.bf16.msra.mxu0 %v3661
    %3671 = vmatprep.subr.bf16.mxu0 0
    %3672 = vmatpush1.bf16.msra.mxu0 0
    %3673 = vmatprep.subr.bf16.mxu0 0
    %3674 = vmatpush1.bf16.msra.mxu0 0
    %3675 = vmatprep.subr.bf16.mxu0 0
    %3676 = vmatpush1.bf16.msra.mxu0 0
    %3677 = vmatprep.subr.bf16.mxu0 0
    %3678 = vmatpush1.bf16.msra.mxu0 0
    %3679 = vmatprep.subr.bf16.mxu0 0
    %3680 = vmatpush1.bf16.msra.mxu0 0
    %3681 = vmatprep.subr.bf16.mxu0 0
    %3682 = vmatpush1.bf16.msra.mxu0 0
    %3683 = vmatprep.subr.bf16.mxu0 0
    %3684 = vmatpush1.bf16.msra.mxu0 0
    %3685 = vmatprep.subr.bf16.mxu0 0
    %3686 = vmatpush1.bf16.msra.mxu0 0
    %3687 = vmatprep.subr.bf16.mxu0 0
    %3688 = vmatpush1.bf16.msra.mxu0 0
    %3689 = vmatprep.subr.bf16.mxu0 0
    %3690 = vmatpush1.bf16.msra.mxu0 0
    %3691 = vmatprep.subr.bf16.mxu0 0
    %3692 = vmatpush1.bf16.msra.mxu0 0
    %3693 = vmatprep.subr.bf16.mxu0 0
    %3694 = vmatpush1.bf16.msra.mxu0 0
    %3695 = vmatprep.subr.bf16.mxu0 0
    %3696 = vmatpush1.bf16.msra.mxu0 0
    %3697 = vmatprep.subr.bf16.mxu0 0
    %3698 = vmatpush1.bf16.msra.mxu0 0
    %3699 = vmatprep.mubr.bf16.mxu0 0
    %3700 = vmatmul.mubr.bf16.gmra.mrb[0].mxu0 %v3665
    %v3701 = vpop.f32.mrb[0].mxu0
    %v3702 = vadd.f32 %v3651, %v3701
    %v3703 = vpop.f32.mrb[0].mxu0
    %v3704 = vpop.f32.mrb[0].mxu0
    %v3705 = vpop.f32.mrb[0].mxu0
    %3706 = vdwg.mxu0
    %3707 = vst [vmem:[#allocation2] sm:$0x3] %v3702
    // Predicated region
    $region38: #{bert_classifier_forward.1} parent=1 // pred_check
      _
    $region39: #{bert_classifier_forward.1} parent=1 // pred_check_branch
      %3709 = sbr.rel (0) target = $region41
    $region40: #{bert_classifier_forward.1} parent=1 // pred_region
      %s3711 = ssub.s32 32, 32
      %3712 = vsyncadd [#allocation3], %s3711
      %s3714 = sshll.u32 [#allocation2], 4
      %s3715 = int_to_ptr.vmem [resolvable:$true] %s3714
      %3717 = dma.vmem_to_hbm [thread:$0]  %s3715, 32, %s9, [#allocation3]
    $region41: #{bert_classifier_forward.1} parent=1 // pred_fallthru
      _
    // Predicated region
    $region42: #{bert_classifier_forward.1} parent=1 // pred_check
      _
    $region43: #{bert_classifier_forward.1} parent=1 // pred_check_branch
      %3719 = sbr.rel (0) target = $region45
    $region44: #{bert_classifier_forward.1} parent=1 // pred_region
      %3720 = dma.done [#allocation3], 32
    $region45: #{bert_classifier_forward.1} parent=1 // pred_fallthru
      _
    %3721 = vsyncpa [#allocation3], 1

</llo_original>
